<compile_context>
chip_gen: v6e
topology: v6e:2x2x1
jax: 0.10.0
libtpu: 0.0.40
codegen_flags: <defaults>
</compile_context>

<pallas_src>
import jax
import jax.numpy as jnp
from jax.experimental import pallas as pl
from jax.experimental.pallas import tpu as pltpu


# ----------------------------------------------------------------------------
# Fused forward kernel factory.
#   Inputs: x_tm (L*B, C0) time-major activation slab, wb (rows, 128) weight blob.
#   Output: (B, 1).
# ----------------------------------------------------------------------------
def make_fused_kernel(B, L, H, n_cnn, n_lstm, T, layout):
    def kernel(x_ref, wb_ref, out_ref):
        def blk(name):
            r, nr, nc = layout[name]
            return wb_ref[r:r + nr, 0:nc]

        # ------------------- CNN blocks on the time-major slab ----------------
        # Conv1d(k=2,s=1,p=1) + folded BatchNorm + ReLU + MaxPool1d(k=2,s=1,p=1).
        # Row t*B+b of the slab holds batch b, position t; shifting the sequence
        # by one position == shifting the slab by B rows, so padding/pooling are
        # whole-slab concatenations (no per-batch loops, no masked stores).
        s = x_ref[...]                       # (L*B, C0)
        Lcur = L
        for l in range(n_cnn):
            wcat = blk(f"cnn{l}_w")          # (2*Cin, Cout) = [w0; w1] (BN folded)
            bias = blk(f"cnn{l}_b")          # (1, Cout)
            cin = s.shape[1]
            zc = jnp.zeros((B, cin), jnp.float32)
            xa = jnp.concatenate([zc, s], axis=0)          # x_pad[t]   ((Lcur+1)*B, Cin)
            xc = jnp.concatenate([s, zc], axis=0)          # x_pad[t+1] ((Lcur+1)*B, Cin)
            conv = jnp.dot(jnp.concatenate([xa, xc], axis=1), wcat,
                           preferred_element_type=jnp.float32) + bias
            z = jnp.maximum(conv, 0.0)                     # BN folded -> just ReLU
            # MaxPool1d(k=2,s=1,p=1): 0-pad is valid because z >= 0 after ReLU.
            zo = jnp.zeros((B, z.shape[1]), jnp.float32)
            s = jnp.maximum(jnp.concatenate([zo, z], axis=0),
                            jnp.concatenate([z, zo], axis=0))   # ((Lcur+2)*B, Cout)
            Lcur += 2
        # TODO(synk): CNN-tail Dropout and inter-layer LSTM dropout are identity in eval mode.

        # ------------------- LSTM layers (gate order [i, f, o, g]) ------------
        lstm_w = [(blk(f"lstm{l}_wih"), blk(f"lstm{l}_whh"), blk(f"lstm{l}_b"))
                  for l in range(n_lstm)]

        # Hoisted, batched, time-major input projection for layer 0:
        # one (T*B, Cin) x (Cin, 4H) matmul; step t reads rows [t*B, (t+1)*B).
        xp = jnp.dot(s, lstm_w[0][0], preferred_element_type=jnp.float32) + lstm_w[0][2]

        hs = [jnp.zeros((B, H), jnp.float32) for _ in range(n_lstm)]
        cs = [jnp.zeros((B, H), jnp.float32) for _ in range(n_lstm)]

        def cell(g, c):
            sg = jax.nn.sigmoid(g[:, 0:3 * H])    # one EUP pass for i, f, o
            i_g = sg[:, 0:H]
            f_g = sg[:, H:2 * H]
            o_g = sg[:, 2 * H:3 * H]
            g_g = jnp.tanh(g[:, 3 * H:4 * H])
            c_new = f_g * c + i_g * g_g
            return o_g * jnp.tanh(c_new), c_new

        # Static unroll.  Layer l>=1 at step t depends only on (h_{l-1,t}, h_{l,t-1}),
        # so the unrolled graph lets the scheduler wavefront the layers.
        for t in range(T):
            g0 = xp[t * B:(t + 1) * B, :] + jnp.dot(
                hs[0], lstm_w[0][1], preferred_element_type=jnp.float32)
            hs[0], cs[0] = cell(g0, cs[0])
            for l in range(1, n_lstm):
                gl = (jnp.dot(hs[l - 1], lstm_w[l][0], preferred_element_type=jnp.float32)
                      + lstm_w[l][2]
                      + jnp.dot(hs[l], lstm_w[l][1], preferred_element_type=jnp.float32))
                hs[l], cs[l] = cell(gl, cs[l])

        # ------------------- Linear head (fused) -------------------
        head = blk("head")                    # (1, H+1) = [lin_w^T | lin_b]
        out_ref[...] = (jnp.sum(hs[-1] * head[:, 0:H], axis=1, keepdims=True)
                        + head[:, H:H + 1])

    return kernel


# ----------------------------------------------------------------------------
# Host-side packing: fold BN, merge conv taps, reorder gates, pack everything
# into one lane-dense (rows, 128) blob with 8-aligned row offsets.
# ----------------------------------------------------------------------------
def _reorder_gates(w):  # columns [i, f, g, o] -> [i, f, o, g]
    i, f, g, o = jnp.split(w, 4, axis=-1)
    return jnp.concatenate([i, f, o, g], axis=-1)


def pack_params(params):
    blocks = {}
    order = []

    def add(name, arr):
        blocks[name] = jnp.asarray(arr, jnp.float32)
        order.append(name)

    for l, p in enumerate(params["cnn"]):
        w0 = p["w0"] * p["scale"]             # BN folded into conv
        w1 = p["w1"] * p["scale"]
        add(f"cnn{l}_w", jnp.concatenate([w0, w1], axis=0))     # (2Cin, Cout)
        add(f"cnn{l}_b", p["cb"] * p["scale"] + p["shift"])     # (1, Cout)
    for l, p in enumerate(params["lstm"]):
        add(f"lstm{l}_wih", _reorder_gates(p["wih"]))           # (Cin, 4H)
        add(f"lstm{l}_whh", _reorder_gates(p["whh"]))           # (H, 4H)
        add(f"lstm{l}_b", _reorder_gates(p["b"]))               # (1, 4H)
    add("head", jnp.concatenate([params["lin_w"].T, params["lin_b"]], axis=1))  # (1, H+1)

    layout = {}
    row = 0
    for name in order:
        a = blocks[name]
        layout[name] = (row, a.shape[0], a.shape[1])
        row += ((a.shape[0] + 7) // 8) * 8    # keep each block 8-row aligned
    blob = jnp.zeros((max(row, 8), 128), jnp.float32)
    for name in order:
        r, nr, nc = layout[name]
        blob = blob.at[r:r + nr, 0:nc].set(blocks[name])
    return blob, layout


# ----------------------------------------------------------------------------
# Wrapper: one pallas_call, two inputs (time-major activations + weight blob).
# ----------------------------------------------------------------------------
def model_forward(sequences, params):
    B, L, C0 = sequences.shape
    n_cnn = len(params["cnn"])
    n_lstm = len(params["lstm"])
    H = params["lstm"][0]["whh"].shape[0]
    T = L + 2 * n_cnn

    blob, layout = pack_params(params)
    # Time-major slab: row t*B + b = sequences[b, t, :]  (host-side XLA op).
    x_tm = jnp.transpose(sequences, (1, 0, 2)).reshape(L * B, C0)

    kernel = make_fused_kernel(B, L, H, n_cnn, n_lstm, T, layout)
    return pl.pallas_call(
        kernel,
        out_shape=jax.ShapeDtypeStruct((B, 1), jnp.float32),
        grid=(1,),
        in_specs=[pl.BlockSpec(x_tm.shape, lambda i: (0, 0)),
                  pl.BlockSpec(blob.shape, lambda i: (0, 0))],
        out_specs=pl.BlockSpec((B, 1), lambda i: (0, 0)),
        compiler_params=pltpu.CompilerParams(dimension_semantics=("arbitrary",)),
    )(x_tm, blob)


# ----------------------------------------------------------------------------
# Parameter init (deterministic, mirrors the PyTorch module's shapes).
# LSTM weights stored transposed & gate-concatenated: wih (Cin, 4H), whh (H, 4H),
# gate order [i, f, g, o] (PyTorch order); reordering happens in pack_params.
# ----------------------------------------------------------------------------
def init_params(key, n_features, cnn_layers, cnn_hidden, lstm_hidden, lstm_layers):
    params = {"cnn": [], "lstm": []}
    eps = 1e-5
    for i in range(cnn_layers):
        cin = n_features if i == 0 else cnn_hidden
        key, k1, k2 = jax.random.split(key, 3)
        bound = 1.0 / float((cin * 2) ** 0.5)
        w = jax.random.uniform(k1, (cnn_hidden, cin, 2), jnp.float32, -bound, bound)
        cb = jax.random.uniform(k2, (cnn_hidden,), jnp.float32, -bound, bound)
        # BatchNorm1d eval with fresh running stats: mean=0, var=1, gamma=1, beta=0
        scale = jnp.full((1, cnn_hidden), 1.0 / float((1.0 + eps) ** 0.5), jnp.float32)
        shift = jnp.zeros((1, cnn_hidden), jnp.float32)
        params["cnn"].append(dict(
            w0=jnp.transpose(w[:, :, 0]),    # (Cin, Cout)
            w1=jnp.transpose(w[:, :, 1]),    # (Cin, Cout)
            cb=cb.reshape(1, cnn_hidden),
            scale=scale, shift=shift))
    for l in range(lstm_layers):
        cin = cnn_hidden if l == 0 else lstm_hidden
        key, k1, k2, k3, k4 = jax.random.split(key, 5)
        bound = 1.0 / float(lstm_hidden ** 0.5)
        wih = jax.random.uniform(k1, (cin, 4 * lstm_hidden), jnp.float32, -bound, bound)
        whh = jax.random.uniform(k2, (lstm_hidden, 4 * lstm_hidden), jnp.float32, -bound, bound)
        bih = jax.random.uniform(k3, (1, 4 * lstm_hidden), jnp.float32, -bound, bound)
        bhh = jax.random.uniform(k4, (1, 4 * lstm_hidden), jnp.float32, -bound, bound)
        params["lstm"].append(dict(wih=wih, whh=whh, b=bih + bhh))
    key, k1, k2 = jax.random.split(key, 3)
    bound = 1.0 / float(lstm_hidden ** 0.5)
    params["lin_w"] = jax.random.uniform(k1, (lstm_hidden, 1), jnp.float32, -bound, bound)
    params["lin_b"] = jax.random.uniform(k2, (1, 1), jnp.float32, -bound, bound)
    return params, key


# ----------------------------------------------------------------------------
# Pure-JAX reference mirroring PyTorch eval-mode semantics (for self-check).
# ----------------------------------------------------------------------------
def reference_forward(sequences, params):
    x = sequences
    for p in params["cnn"]:
        xp = jnp.pad(x, ((0, 0), (1, 1), (0, 0)))
        conv = xp[:, :-1, :] @ p["w0"] + xp[:, 1:, :] @ p["w1"] + p["cb"][None]
        z = jnp.maximum(conv * p["scale"][None] + p["shift"][None], 0.0)
        zp = jnp.pad(z, ((0, 0), (1, 1), (0, 0)), constant_values=-jnp.inf)
        x = jnp.maximum(zp[:, :-1, :], zp[:, 1:, :])
    bsz = x.shape[0]
    h_seq = x
    for p in params["lstm"]:
        H = p["whh"].shape[0]

        def step(carry, x_t, p=p, H=H):
            h, c = carry
            g = x_t @ p["wih"] + h @ p["whh"] + p["b"]
            i = jax.nn.sigmoid(g[:, 0:H])
            f = jax.nn.sigmoid(g[:, H:2 * H])
            gg = jnp.tanh(g[:, 2 * H:3 * H])
            o = jax.nn.sigmoid(g[:, 3 * H:4 * H])
            c = f * c + i * gg
            h = o * jnp.tanh(c)
            return (h, c), h

        (_, _), hs = jax.lax.scan(
            step,
            (jnp.zeros((bsz, H), jnp.float32), jnp.zeros((bsz, H), jnp.float32)),
            jnp.transpose(h_seq, (1, 0, 2)))
        h_seq = jnp.transpose(hs, (1, 0, 2))
    last = h_seq[:, -1, :]
    return last @ params["lin_w"] + params["lin_b"]


if __name__ == "__main__":
    B, seq_len, n_features = 2, 8, 4
    cnn_layers, cnn_hidden = 2, 8
    lstm_hidden, lstm_layers = 16, 2

    key = jax.random.PRNGKey(0)
    params, key = init_params(key, n_features, cnn_layers, cnn_hidden,
                              lstm_hidden, lstm_layers)
    key, sk = jax.random.split(key)
    sequences = jax.random.normal(sk, (B, seq_len, n_features), dtype=jnp.float32)

    y = jax.jit(model_forward)(sequences, params)
    y = jax.block_until_ready(y)
    assert y.shape == (B, 1), y.shape

    y_ref = reference_forward(sequences, params)
    if not bool(jnp.allclose(y, y_ref, rtol=2e-3, atol=2e-3)):
        raise AssertionError(f"Pallas output {y} != reference {y_ref}")

    print("KERNEL_OK")
</pallas_src>

<mosaic_0001>
module attributes {stable_mosaic.version = 11 : i64} {
  func.func @kernel(%arg0: i32, %arg1: memref<16x4xf32, #tpu.memory_space<vmem>>, %arg2: memref<120x128xf32, #tpu.memory_space<vmem>>, %arg3: memref<2x1xf32, #tpu.memory_space<vmem>>) attributes {dimension_semantics = [#tpu.dimension_semantics<arbitrary>], iteration_bounds = array<i64: 1>, scalar_prefetch = 0 : i64, scratch_operands = 0 : i64, tpu.core_type = #tpu.core_type<tc>, window_params = [{pipeline_mode = #tpu.pipeline_mode<synchronous>, transform_indices = @transform_0, window_bounds = array<i64: 16, 4>}, {pipeline_mode = #tpu.pipeline_mode<synchronous>, transform_indices = @transform_1, window_bounds = array<i64: 120, 128>}, {pipeline_mode = #tpu.pipeline_mode<synchronous>, transform_indices = @transform_2, window_bounds = array<i64: 2, 1>}]} {
    %c0 = arith.constant 0 : index
    %c0_0 = arith.constant 0 : index
    %0 = vector.load %arg1[%c0, %c0_0] : memref<16x4xf32, #tpu.memory_space<vmem>>, vector<16x4xf32>
    %c0_1 = arith.constant 0 : index
    %c0_2 = arith.constant 0 : index
    %1 = vector.load %arg2[%c0_1, %c0_2] : memref<120x128xf32, #tpu.memory_space<vmem>>, vector<8x8xf32>
    %c8 = arith.constant 8 : index
    %c0_3 = arith.constant 0 : index
    %2 = vector.load %arg2[%c8, %c0_3] : memref<120x128xf32, #tpu.memory_space<vmem>>, vector<1x8xf32>
    %cst = arith.constant 0.000000e+00 : f32
    %3 = vector.broadcast %cst : f32 to vector<2x4xf32>
    %4 = tpu.concatenate %3, %0 in 0 : vector<2x4xf32>, vector<16x4xf32> -> vector<18x4xf32>
    %5 = tpu.concatenate %0, %3 in 0 : vector<16x4xf32>, vector<2x4xf32> -> vector<18x4xf32>
    %6 = tpu.concatenate %4, %5 in 1 : vector<18x4xf32>, vector<18x4xf32> -> vector<18x8xf32>
    %cst_4 = arith.constant dense<0.000000e+00> : vector<18x8xf32>
    %7 = tpu.matmul %6, %1, %cst_4 {dimension_numbers = #tpu.dot_dimension_numbers<[1], [0], [0], [1], [0, 0, 1, 1], [], []>} : vector<18x8xf32>, vector<8x8xf32>, vector<18x8xf32> -> vector<18x8xf32>
    %8 = vector.broadcast %2 : vector<1x8xf32> to vector<18x8xf32>
    %9 = arith.addf %7, %8 : vector<18x8xf32>
    %cst_5 = arith.constant 0.000000e+00 : f32
    %10 = vector.broadcast %cst_5 : f32 to vector<18x8xf32>
    %11 = arith.maximumf %9, %10 : vector<18x8xf32>
    %cst_6 = arith.constant 0.000000e+00 : f32
    %12 = vector.broadcast %cst_6 : f32 to vector<2x8xf32>
    %13 = tpu.concatenate %12, %11 in 0 : vector<2x8xf32>, vector<18x8xf32> -> vector<20x8xf32>
    %14 = tpu.concatenate %11, %12 in 0 : vector<18x8xf32>, vector<2x8xf32> -> vector<20x8xf32>
    %15 = arith.maximumf %13, %14 : vector<20x8xf32>
    %c16 = arith.constant 16 : index
    %c0_7 = arith.constant 0 : index
    %16 = vector.load %arg2[%c16, %c0_7] : memref<120x128xf32, #tpu.memory_space<vmem>>, vector<16x8xf32>
    %c32 = arith.constant 32 : index
    %c0_8 = arith.constant 0 : index
    %17 = vector.load %arg2[%c32, %c0_8] : memref<120x128xf32, #tpu.memory_space<vmem>>, vector<1x8xf32>
    %cst_9 = arith.constant 0.000000e+00 : f32
    %18 = vector.broadcast %cst_9 : f32 to vector<2x8xf32>
    %19 = tpu.concatenate %18, %15 in 0 : vector<2x8xf32>, vector<20x8xf32> -> vector<22x8xf32>
    %20 = tpu.concatenate %15, %18 in 0 : vector<20x8xf32>, vector<2x8xf32> -> vector<22x8xf32>
    %21 = tpu.concatenate %19, %20 in 1 : vector<22x8xf32>, vector<22x8xf32> -> vector<22x16xf32>
    %cst_10 = arith.constant dense<0.000000e+00> : vector<22x8xf32>
    %22 = tpu.matmul %21, %16, %cst_10 {dimension_numbers = #tpu.dot_dimension_numbers<[1], [0], [0], [1], [0, 0, 1, 1], [], []>} : vector<22x16xf32>, vector<16x8xf32>, vector<22x8xf32> -> vector<22x8xf32>
    %23 = vector.broadcast %17 : vector<1x8xf32> to vector<22x8xf32>
    %24 = arith.addf %22, %23 : vector<22x8xf32>
    %cst_11 = arith.constant 0.000000e+00 : f32
    %25 = vector.broadcast %cst_11 : f32 to vector<22x8xf32>
    %26 = arith.maximumf %24, %25 : vector<22x8xf32>
    %cst_12 = arith.constant 0.000000e+00 : f32
    %27 = vector.broadcast %cst_12 : f32 to vector<2x8xf32>
    %28 = tpu.concatenate %27, %26 in 0 : vector<2x8xf32>, vector<22x8xf32> -> vector<24x8xf32>
    %29 = tpu.concatenate %26, %27 in 0 : vector<22x8xf32>, vector<2x8xf32> -> vector<24x8xf32>
    %30 = arith.maximumf %28, %29 : vector<24x8xf32>
    %c40 = arith.constant 40 : index
    %c0_13 = arith.constant 0 : index
    %31 = vector.load %arg2[%c40, %c0_13] : memref<120x128xf32, #tpu.memory_space<vmem>>, vector<8x64xf32>
    %c48 = arith.constant 48 : index
    %c0_14 = arith.constant 0 : index
    %32 = vector.load %arg2[%c48, %c0_14] : memref<120x128xf32, #tpu.memory_space<vmem>>, vector<16x64xf32>
    %c64 = arith.constant 64 : index
    %c0_15 = arith.constant 0 : index
    %33 = vector.load %arg2[%c64, %c0_15] : memref<120x128xf32, #tpu.memory_space<vmem>>, vector<1x64xf32>
    %c72 = arith.constant 72 : index
    %c0_16 = arith.constant 0 : index
    %34 = vector.load %arg2[%c72, %c0_16] : memref<120x128xf32, #tpu.memory_space<vmem>>, vector<16x64xf32>
    %c88 = arith.constant 88 : index
    %c0_17 = arith.constant 0 : index
    %35 = vector.load %arg2[%c88, %c0_17] : memref<120x128xf32, #tpu.memory_space<vmem>>, vector<16x64xf32>
    %c104 = arith.constant 104 : index
    %c0_18 = arith.constant 0 : index
    %36 = vector.load %arg2[%c104, %c0_18] : memref<120x128xf32, #tpu.memory_space<vmem>>, vector<1x64xf32>
    %cst_19 = arith.constant dense<0.000000e+00> : vector<24x64xf32>
    %37 = tpu.matmul %30, %31, %cst_19 {dimension_numbers = #tpu.dot_dimension_numbers<[1], [0], [0], [1], [0, 0, 1, 1], [], []>} : vector<24x8xf32>, vector<8x64xf32>, vector<24x64xf32> -> vector<24x64xf32>
    %38 = vector.broadcast %33 : vector<1x64xf32> to vector<24x64xf32>
    %39 = arith.addf %37, %38 : vector<24x64xf32>
    %cst_20 = arith.constant 0.000000e+00 : f32
    %40 = vector.broadcast %cst_20 : f32 to vector<2x16xf32>
    %cst_21 = arith.constant 0.000000e+00 : f32
    %41 = vector.broadcast %cst_21 : f32 to vector<2x16xf32>
    %cst_22 = arith.constant 0.000000e+00 : f32
    %42 = vector.broadcast %cst_22 : f32 to vector<2x16xf32>
    %cst_23 = arith.constant 0.000000e+00 : f32
    %43 = vector.broadcast %cst_23 : f32 to vector<2x16xf32>
    %44 = vector.extract_strided_slice %39 {offsets = [0, 0], sizes = [2, 64], strides = [1, 1]} : vector<24x64xf32> to vector<2x64xf32>
    %cst_24 = arith.constant dense<0.000000e+00> : vector<2x64xf32>
    %45 = tpu.matmul %40, %32, %cst_24 {dimension_numbers = #tpu.dot_dimension_numbers<[1], [0], [0], [1], [0, 0, 1, 1], [], []>} : vector<2x16xf32>, vector<16x64xf32>, vector<2x64xf32> -> vector<2x64xf32>
    %46 = arith.addf %44, %45 : vector<2x64xf32>
    %47 = vector.extract_strided_slice %46 {offsets = [0, 0], sizes = [2, 48], strides = [1, 1]} : vector<2x64xf32> to vector<2x48xf32>
    %48 = arith.negf %47 : vector<2x48xf32>
    %49 = math.exp %48 : vector<2x48xf32>
    %cst_25 = arith.constant 1.000000e+00 : f32
    %50 = vector.broadcast %cst_25 : f32 to vector<2x48xf32>
    %51 = arith.addf %50, %49 : vector<2x48xf32>
    %52 = arith.divf %50, %51 : vector<2x48xf32>
    %53 = vector.extract_strided_slice %52 {offsets = [0, 0], sizes = [2, 16], strides = [1, 1]} : vector<2x48xf32> to vector<2x16xf32>
    %54 = vector.extract_strided_slice %52 {offsets = [0, 16], sizes = [2, 16], strides = [1, 1]} : vector<2x48xf32> to vector<2x16xf32>
    %55 = vector.extract_strided_slice %52 {offsets = [0, 32], sizes = [2, 16], strides = [1, 1]} : vector<2x48xf32> to vector<2x16xf32>
    %56 = vector.extract_strided_slice %46 {offsets = [0, 48], sizes = [2, 16], strides = [1, 1]} : vector<2x64xf32> to vector<2x16xf32>
    %57 = math.tanh %56 : vector<2x16xf32>
    %58 = arith.mulf %54, %42 : vector<2x16xf32>
    %59 = arith.mulf %53, %57 : vector<2x16xf32>
    %60 = arith.addf %58, %59 : vector<2x16xf32>
    %61 = math.tanh %60 : vector<2x16xf32>
    %62 = arith.mulf %55, %61 : vector<2x16xf32>
    %cst_26 = arith.constant dense<0.000000e+00> : vector<2x64xf32>
    %63 = tpu.matmul %62, %34, %cst_26 {dimension_numbers = #tpu.dot_dimension_numbers<[1], [0], [0], [1], [0, 0, 1, 1], [], []>} : vector<2x16xf32>, vector<16x64xf32>, vector<2x64xf32> -> vector<2x64xf32>
    %64 = vector.broadcast %36 : vector<1x64xf32> to vector<2x64xf32>
    %65 = arith.addf %63, %64 : vector<2x64xf32>
    %cst_27 = arith.constant dense<0.000000e+00> : vector<2x64xf32>
    %66 = tpu.matmul %41, %35, %cst_27 {dimension_numbers = #tpu.dot_dimension_numbers<[1], [0], [0], [1], [0, 0, 1, 1], [], []>} : vector<2x16xf32>, vector<16x64xf32>, vector<2x64xf32> -> vector<2x64xf32>
    %67 = arith.addf %65, %66 : vector<2x64xf32>
    %68 = vector.extract_strided_slice %67 {offsets = [0, 0], sizes = [2, 48], strides = [1, 1]} : vector<2x64xf32> to vector<2x48xf32>
    %69 = arith.negf %68 : vector<2x48xf32>
    %70 = math.exp %69 : vector<2x48xf32>
    %cst_28 = arith.constant 1.000000e+00 : f32
    %71 = vector.broadcast %cst_28 : f32 to vector<2x48xf32>
    %72 = arith.addf %71, %70 : vector<2x48xf32>
    %73 = arith.divf %71, %72 : vector<2x48xf32>
    %74 = vector.extract_strided_slice %73 {offsets = [0, 0], sizes = [2, 16], strides = [1, 1]} : vector<2x48xf32> to vector<2x16xf32>
    %75 = vector.extract_strided_slice %73 {offsets = [0, 16], sizes = [2, 16], strides = [1, 1]} : vector<2x48xf32> to vector<2x16xf32>
    %76 = vector.extract_strided_slice %73 {offsets = [0, 32], sizes = [2, 16], strides = [1, 1]} : vector<2x48xf32> to vector<2x16xf32>
    %77 = vector.extract_strided_slice %67 {offsets = [0, 48], sizes = [2, 16], strides = [1, 1]} : vector<2x64xf32> to vector<2x16xf32>
    %78 = math.tanh %77 : vector<2x16xf32>
    %79 = arith.mulf %75, %43 : vector<2x16xf32>
    %80 = arith.mulf %74, %78 : vector<2x16xf32>
    %81 = arith.addf %79, %80 : vector<2x16xf32>
    %82 = math.tanh %81 : vector<2x16xf32>
    %83 = arith.mulf %76, %82 : vector<2x16xf32>
    %84 = vector.extract_strided_slice %39 {offsets = [2, 0], sizes = [2, 64], strides = [1, 1]} : vector<24x64xf32> to vector<2x64xf32>
    %cst_29 = arith.constant dense<0.000000e+00> : vector<2x64xf32>
    %85 = tpu.matmul %62, %32, %cst_29 {dimension_numbers = #tpu.dot_dimension_numbers<[1], [0], [0], [1], [0, 0, 1, 1], [], []>} : vector<2x16xf32>, vector<16x64xf32>, vector<2x64xf32> -> vector<2x64xf32>
    %86 = arith.addf %84, %85 : vector<2x64xf32>
    %87 = vector.extract_strided_slice %86 {offsets = [0, 0], sizes = [2, 48], strides = [1, 1]} : vector<2x64xf32> to vector<2x48xf32>
    %88 = arith.negf %87 : vector<2x48xf32>
    %89 = math.exp %88 : vector<2x48xf32>
    %cst_30 = arith.constant 1.000000e+00 : f32
    %90 = vector.broadcast %cst_30 : f32 to vector<2x48xf32>
    %91 = arith.addf %90, %89 : vector<2x48xf32>
    %92 = arith.divf %90, %91 : vector<2x48xf32>
    %93 = vector.extract_strided_slice %92 {offsets = [0, 0], sizes = [2, 16], strides = [1, 1]} : vector<2x48xf32> to vector<2x16xf32>
    %94 = vector.extract_strided_slice %92 {offsets = [0, 16], sizes = [2, 16], strides = [1, 1]} : vector<2x48xf32> to vector<2x16xf32>
    %95 = vector.extract_strided_slice %92 {offsets = [0, 32], sizes = [2, 16], strides = [1, 1]} : vector<2x48xf32> to vector<2x16xf32>
    %96 = vector.extract_strided_slice %86 {offsets = [0, 48], sizes = [2, 16], strides = [1, 1]} : vector<2x64xf32> to vector<2x16xf32>
    %97 = math.tanh %96 : vector<2x16xf32>
    %98 = arith.mulf %94, %60 : vector<2x16xf32>
    %99 = arith.mulf %93, %97 : vector<2x16xf32>
    %100 = arith.addf %98, %99 : vector<2x16xf32>
    %101 = math.tanh %100 : vector<2x16xf32>
    %102 = arith.mulf %95, %101 : vector<2x16xf32>
    %cst_31 = arith.constant dense<0.000000e+00> : vector<2x64xf32>
    %103 = tpu.matmul %102, %34, %cst_31 {dimension_numbers = #tpu.dot_dimension_numbers<[1], [0], [0], [1], [0, 0, 1, 1], [], []>} : vector<2x16xf32>, vector<16x64xf32>, vector<2x64xf32> -> vector<2x64xf32>
    %104 = vector.broadcast %36 : vector<1x64xf32> to vector<2x64xf32>
    %105 = arith.addf %103, %104 : vector<2x64xf32>
    %cst_32 = arith.constant dense<0.000000e+00> : vector<2x64xf32>
    %106 = tpu.matmul %83, %35, %cst_32 {dimension_numbers = #tpu.dot_dimension_numbers<[1], [0], [0], [1], [0, 0, 1, 1], [], []>} : vector<2x16xf32>, vector<16x64xf32>, vector<2x64xf32> -> vector<2x64xf32>
    %107 = arith.addf %105, %106 : vector<2x64xf32>
    %108 = vector.extract_strided_slice %107 {offsets = [0, 0], sizes = [2, 48], strides = [1, 1]} : vector<2x64xf32> to vector<2x48xf32>
    %109 = arith.negf %108 : vector<2x48xf32>
    %110 = math.exp %109 : vector<2x48xf32>
    %cst_33 = arith.constant 1.000000e+00 : f32
    %111 = vector.broadcast %cst_33 : f32 to vector<2x48xf32>
    %112 = arith.addf %111, %110 : vector<2x48xf32>
    %113 = arith.divf %111, %112 : vector<2x48xf32>
    %114 = vector.extract_strided_slice %113 {offsets = [0, 0], sizes = [2, 16], strides = [1, 1]} : vector<2x48xf32> to vector<2x16xf32>
    %115 = vector.extract_strided_slice %113 {offsets = [0, 16], sizes = [2, 16], strides = [1, 1]} : vector<2x48xf32> to vector<2x16xf32>
    %116 = vector.extract_strided_slice %113 {offsets = [0, 32], sizes = [2, 16], strides = [1, 1]} : vector<2x48xf32> to vector<2x16xf32>
    %117 = vector.extract_strided_slice %107 {offsets = [0, 48], sizes = [2, 16], strides = [1, 1]} : vector<2x64xf32> to vector<2x16xf32>
    %118 = math.tanh %117 : vector<2x16xf32>
    %119 = arith.mulf %115, %81 : vector<2x16xf32>
    %120 = arith.mulf %114, %118 : vector<2x16xf32>
    %121 = arith.addf %119, %120 : vector<2x16xf32>
    %122 = math.tanh %121 : vector<2x16xf32>
    %123 = arith.mulf %116, %122 : vector<2x16xf32>
    %124 = vector.extract_strided_slice %39 {offsets = [4, 0], sizes = [2, 64], strides = [1, 1]} : vector<24x64xf32> to vector<2x64xf32>
    %cst_34 = arith.constant dense<0.000000e+00> : vector<2x64xf32>
    %125 = tpu.matmul %102, %32, %cst_34 {dimension_numbers = #tpu.dot_dimension_numbers<[1], [0], [0], [1], [0, 0, 1, 1], [], []>} : vector<2x16xf32>, vector<16x64xf32>, vector<2x64xf32> -> vector<2x64xf32>
    %126 = arith.addf %124, %125 : vector<2x64xf32>
    %127 = vector.extract_strided_slice %126 {offsets = [0, 0], sizes = [2, 48], strides = [1, 1]} : vector<2x64xf32> to vector<2x48xf32>
    %128 = arith.negf %127 : vector<2x48xf32>
    %129 = math.exp %128 : vector<2x48xf32>
    %cst_35 = arith.constant 1.000000e+00 : f32
    %130 = vector.broadcast %cst_35 : f32 to vector<2x48xf32>
    %131 = arith.addf %130, %129 : vector<2x48xf32>
    %132 = arith.divf %130, %131 : vector<2x48xf32>
    %133 = vector.extract_strided_slice %132 {offsets = [0, 0], sizes = [2, 16], strides = [1, 1]} : vector<2x48xf32> to vector<2x16xf32>
    %134 = vector.extract_strided_slice %132 {offsets = [0, 16], sizes = [2, 16], strides = [1, 1]} : vector<2x48xf32> to vector<2x16xf32>
    %135 = vector.extract_strided_slice %132 {offsets = [0, 32], sizes = [2, 16], strides = [1, 1]} : vector<2x48xf32> to vector<2x16xf32>
    %136 = vector.extract_strided_slice %126 {offsets = [0, 48], sizes = [2, 16], strides = [1, 1]} : vector<2x64xf32> to vector<2x16xf32>
    %137 = math.tanh %136 : vector<2x16xf32>
    %138 = arith.mulf %134, %100 : vector<2x16xf32>
    %139 = arith.mulf %133, %137 : vector<2x16xf32>
    %140 = arith.addf %138, %139 : vector<2x16xf32>
    %141 = math.tanh %140 : vector<2x16xf32>
    %142 = arith.mulf %135, %141 : vector<2x16xf32>
    %cst_36 = arith.constant dense<0.000000e+00> : vector<2x64xf32>
    %143 = tpu.matmul %142, %34, %cst_36 {dimension_numbers = #tpu.dot_dimension_numbers<[1], [0], [0], [1], [0, 0, 1, 1], [], []>} : vector<2x16xf32>, vector<16x64xf32>, vector<2x64xf32> -> vector<2x64xf32>
    %144 = vector.broadcast %36 : vector<1x64xf32> to vector<2x64xf32>
    %145 = arith.addf %143, %144 : vector<2x64xf32>
    %cst_37 = arith.constant dense<0.000000e+00> : vector<2x64xf32>
    %146 = tpu.matmul %123, %35, %cst_37 {dimension_numbers = #tpu.dot_dimension_numbers<[1], [0], [0], [1], [0, 0, 1, 1], [], []>} : vector<2x16xf32>, vector<16x64xf32>, vector<2x64xf32> -> vector<2x64xf32>
    %147 = arith.addf %145, %146 : vector<2x64xf32>
    %148 = vector.extract_strided_slice %147 {offsets = [0, 0], sizes = [2, 48], strides = [1, 1]} : vector<2x64xf32> to vector<2x48xf32>
    %149 = arith.negf %148 : vector<2x48xf32>
    %150 = math.exp %149 : vector<2x48xf32>
    %cst_38 = arith.constant 1.000000e+00 : f32
    %151 = vector.broadcast %cst_38 : f32 to vector<2x48xf32>
    %152 = arith.addf %151, %150 : vector<2x48xf32>
    %153 = arith.divf %151, %152 : vector<2x48xf32>
    %154 = vector.extract_strided_slice %153 {offsets = [0, 0], sizes = [2, 16], strides = [1, 1]} : vector<2x48xf32> to vector<2x16xf32>
    %155 = vector.extract_strided_slice %153 {offsets = [0, 16], sizes = [2, 16], strides = [1, 1]} : vector<2x48xf32> to vector<2x16xf32>
    %156 = vector.extract_strided_slice %153 {offsets = [0, 32], sizes = [2, 16], strides = [1, 1]} : vector<2x48xf32> to vector<2x16xf32>
    %157 = vector.extract_strided_slice %147 {offsets = [0, 48], sizes = [2, 16], strides = [1, 1]} : vector<2x64xf32> to vector<2x16xf32>
    %158 = math.tanh %157 : vector<2x16xf32>
    %159 = arith.mulf %155, %121 : vector<2x16xf32>
    %160 = arith.mulf %154, %158 : vector<2x16xf32>
    %161 = arith.addf %159, %160 : vector<2x16xf32>
    %162 = math.tanh %161 : vector<2x16xf32>
    %163 = arith.mulf %156, %162 : vector<2x16xf32>
    %164 = vector.extract_strided_slice %39 {offsets = [6, 0], sizes = [2, 64], strides = [1, 1]} : vector<24x64xf32> to vector<2x64xf32>
    %cst_39 = arith.constant dense<0.000000e+00> : vector<2x64xf32>
    %165 = tpu.matmul %142, %32, %cst_39 {dimension_numbers = #tpu.dot_dimension_numbers<[1], [0], [0], [1], [0, 0, 1, 1], [], []>} : vector<2x16xf32>, vector<16x64xf32>, vector<2x64xf32> -> vector<2x64xf32>
    %166 = arith.addf %164, %165 : vector<2x64xf32>
    %167 = vector.extract_strided_slice %166 {offsets = [0, 0], sizes = [2, 48], strides = [1, 1]} : vector<2x64xf32> to vector<2x48xf32>
    %168 = arith.negf %167 : vector<2x48xf32>
    %169 = math.exp %168 : vector<2x48xf32>
    %cst_40 = arith.constant 1.000000e+00 : f32
    %170 = vector.broadcast %cst_40 : f32 to vector<2x48xf32>
    %171 = arith.addf %170, %169 : vector<2x48xf32>
    %172 = arith.divf %170, %171 : vector<2x48xf32>
    %173 = vector.extract_strided_slice %172 {offsets = [0, 0], sizes = [2, 16], strides = [1, 1]} : vector<2x48xf32> to vector<2x16xf32>
    %174 = vector.extract_strided_slice %172 {offsets = [0, 16], sizes = [2, 16], strides = [1, 1]} : vector<2x48xf32> to vector<2x16xf32>
    %175 = vector.extract_strided_slice %172 {offsets = [0, 32], sizes = [2, 16], strides = [1, 1]} : vector<2x48xf32> to vector<2x16xf32>
    %176 = vector.extract_strided_slice %166 {offsets = [0, 48], sizes = [2, 16], strides = [1, 1]} : vector<2x64xf32> to vector<2x16xf32>
    %177 = math.tanh %176 : vector<2x16xf32>
    %178 = arith.mulf %174, %140 : vector<2x16xf32>
    %179 = arith.mulf %173, %177 : vector<2x16xf32>
    %180 = arith.addf %178, %179 : vector<2x16xf32>
    %181 = math.tanh %180 : vector<2x16xf32>
    %182 = arith.mulf %175, %181 : vector<2x16xf32>
    %cst_41 = arith.constant dense<0.000000e+00> : vector<2x64xf32>
    %183 = tpu.matmul %182, %34, %cst_41 {dimension_numbers = #tpu.dot_dimension_numbers<[1], [0], [0], [1], [0, 0, 1, 1], [], []>} : vector<2x16xf32>, vector<16x64xf32>, vector<2x64xf32> -> vector<2x64xf32>
    %184 = vector.broadcast %36 : vector<1x64xf32> to vector<2x64xf32>
    %185 = arith.addf %183, %184 : vector<2x64xf32>
    %cst_42 = arith.constant dense<0.000000e+00> : vector<2x64xf32>
    %186 = tpu.matmul %163, %35, %cst_42 {dimension_numbers = #tpu.dot_dimension_numbers<[1], [0], [0], [1], [0, 0, 1, 1], [], []>} : vector<2x16xf32>, vector<16x64xf32>, vector<2x64xf32> -> vector<2x64xf32>
    %187 = arith.addf %185, %186 : vector<2x64xf32>
    %188 = vector.extract_strided_slice %187 {offsets = [0, 0], sizes = [2, 48], strides = [1, 1]} : vector<2x64xf32> to vector<2x48xf32>
    %189 = arith.negf %188 : vector<2x48xf32>
    %190 = math.exp %189 : vector<2x48xf32>
    %cst_43 = arith.constant 1.000000e+00 : f32
    %191 = vector.broadcast %cst_43 : f32 to vector<2x48xf32>
    %192 = arith.addf %191, %190 : vector<2x48xf32>
    %193 = arith.divf %191, %192 : vector<2x48xf32>
    %194 = vector.extract_strided_slice %193 {offsets = [0, 0], sizes = [2, 16], strides = [1, 1]} : vector<2x48xf32> to vector<2x16xf32>
    %195 = vector.extract_strided_slice %193 {offsets = [0, 16], sizes = [2, 16], strides = [1, 1]} : vector<2x48xf32> to vector<2x16xf32>
    %196 = vector.extract_strided_slice %193 {offsets = [0, 32], sizes = [2, 16], strides = [1, 1]} : vector<2x48xf32> to vector<2x16xf32>
    %197 = vector.extract_strided_slice %187 {offsets = [0, 48], sizes = [2, 16], strides = [1, 1]} : vector<2x64xf32> to vector<2x16xf32>
    %198 = math.tanh %197 : vector<2x16xf32>
    %199 = arith.mulf %195, %161 : vector<2x16xf32>
    %200 = arith.mulf %194, %198 : vector<2x16xf32>
    %201 = arith.addf %199, %200 : vector<2x16xf32>
    %202 = math.tanh %201 : vector<2x16xf32>
    %203 = arith.mulf %196, %202 : vector<2x16xf32>
    %204 = vector.extract_strided_slice %39 {offsets = [8, 0], sizes = [2, 64], strides = [1, 1]} : vector<24x64xf32> to vector<2x64xf32>
    %cst_44 = arith.constant dense<0.000000e+00> : vector<2x64xf32>
    %205 = tpu.matmul %182, %32, %cst_44 {dimension_numbers = #tpu.dot_dimension_numbers<[1], [0], [0], [1], [0, 0, 1, 1], [], []>} : vector<2x16xf32>, vector<16x64xf32>, vector<2x64xf32> -> vector<2x64xf32>
    %206 = arith.addf %204, %205 : vector<2x64xf32>
    %207 = vector.extract_strided_slice %206 {offsets = [0, 0], sizes = [2, 48], strides = [1, 1]} : vector<2x64xf32> to vector<2x48xf32>
    %208 = arith.negf %207 : vector<2x48xf32>
    %209 = math.exp %208 : vector<2x48xf32>
    %cst_45 = arith.constant 1.000000e+00 : f32
    %210 = vector.broadcast %cst_45 : f32 to vector<2x48xf32>
    %211 = arith.addf %210, %209 : vector<2x48xf32>
    %212 = arith.divf %210, %211 : vector<2x48xf32>
    %213 = vector.extract_strided_slice %212 {offsets = [0, 0], sizes = [2, 16], strides = [1, 1]} : vector<2x48xf32> to vector<2x16xf32>
    %214 = vector.extract_strided_slice %212 {offsets = [0, 16], sizes = [2, 16], strides = [1, 1]} : vector<2x48xf32> to vector<2x16xf32>
    %215 = vector.extract_strided_slice %212 {offsets = [0, 32], sizes = [2, 16], strides = [1, 1]} : vector<2x48xf32> to vector<2x16xf32>
    %216 = vector.extract_strided_slice %206 {offsets = [0, 48], sizes = [2, 16], strides = [1, 1]} : vector<2x64xf32> to vector<2x16xf32>
    %217 = math.tanh %216 : vector<2x16xf32>
    %218 = arith.mulf %214, %180 : vector<2x16xf32>
    %219 = arith.mulf %213, %217 : vector<2x16xf32>
    %220 = arith.addf %218, %219 : vector<2x16xf32>
    %221 = math.tanh %220 : vector<2x16xf32>
    %222 = arith.mulf %215, %221 : vector<2x16xf32>
    %cst_46 = arith.constant dense<0.000000e+00> : vector<2x64xf32>
    %223 = tpu.matmul %222, %34, %cst_46 {dimension_numbers = #tpu.dot_dimension_numbers<[1], [0], [0], [1], [0, 0, 1, 1], [], []>} : vector<2x16xf32>, vector<16x64xf32>, vector<2x64xf32> -> vector<2x64xf32>
    %224 = vector.broadcast %36 : vector<1x64xf32> to vector<2x64xf32>
    %225 = arith.addf %223, %224 : vector<2x64xf32>
    %cst_47 = arith.constant dense<0.000000e+00> : vector<2x64xf32>
    %226 = tpu.matmul %203, %35, %cst_47 {dimension_numbers = #tpu.dot_dimension_numbers<[1], [0], [0], [1], [0, 0, 1, 1], [], []>} : vector<2x16xf32>, vector<16x64xf32>, vector<2x64xf32> -> vector<2x64xf32>
    %227 = arith.addf %225, %226 : vector<2x64xf32>
    %228 = vector.extract_strided_slice %227 {offsets = [0, 0], sizes = [2, 48], strides = [1, 1]} : vector<2x64xf32> to vector<2x48xf32>
    %229 = arith.negf %228 : vector<2x48xf32>
    %230 = math.exp %229 : vector<2x48xf32>
    %cst_48 = arith.constant 1.000000e+00 : f32
    %231 = vector.broadcast %cst_48 : f32 to vector<2x48xf32>
    %232 = arith.addf %231, %230 : vector<2x48xf32>
    %233 = arith.divf %231, %232 : vector<2x48xf32>
    %234 = vector.extract_strided_slice %233 {offsets = [0, 0], sizes = [2, 16], strides = [1, 1]} : vector<2x48xf32> to vector<2x16xf32>
    %235 = vector.extract_strided_slice %233 {offsets = [0, 16], sizes = [2, 16], strides = [1, 1]} : vector<2x48xf32> to vector<2x16xf32>
    %236 = vector.extract_strided_slice %233 {offsets = [0, 32], sizes = [2, 16], strides = [1, 1]} : vector<2x48xf32> to vector<2x16xf32>
    %237 = vector.extract_strided_slice %227 {offsets = [0, 48], sizes = [2, 16], strides = [1, 1]} : vector<2x64xf32> to vector<2x16xf32>
    %238 = math.tanh %237 : vector<2x16xf32>
    %239 = arith.mulf %235, %201 : vector<2x16xf32>
    %240 = arith.mulf %234, %238 : vector<2x16xf32>
    %241 = arith.addf %239, %240 : vector<2x16xf32>
    %242 = math.tanh %241 : vector<2x16xf32>
    %243 = arith.mulf %236, %242 : vector<2x16xf32>
    %244 = vector.extract_strided_slice %39 {offsets = [10, 0], sizes = [2, 64], strides = [1, 1]} : vector<24x64xf32> to vector<2x64xf32>
    %cst_49 = arith.constant dense<0.000000e+00> : vector<2x64xf32>
    %245 = tpu.matmul %222, %32, %cst_49 {dimension_numbers = #tpu.dot_dimension_numbers<[1], [0], [0], [1], [0, 0, 1, 1], [], []>} : vector<2x16xf32>, vector<16x64xf32>, vector<2x64xf32> -> vector<2x64xf32>
    %246 = arith.addf %244, %245 : vector<2x64xf32>
    %247 = vector.extract_strided_slice %246 {offsets = [0, 0], sizes = [2, 48], strides = [1, 1]} : vector<2x64xf32> to vector<2x48xf32>
    %248 = arith.negf %247 : vector<2x48xf32>
    %249 = math.exp %248 : vector<2x48xf32>
    %cst_50 = arith.constant 1.000000e+00 : f32
    %250 = vector.broadcast %cst_50 : f32 to vector<2x48xf32>
    %251 = arith.addf %250, %249 : vector<2x48xf32>
    %252 = arith.divf %250, %251 : vector<2x48xf32>
    %253 = vector.extract_strided_slice %252 {offsets = [0, 0], sizes = [2, 16], strides = [1, 1]} : vector<2x48xf32> to vector<2x16xf32>
    %254 = vector.extract_strided_slice %252 {offsets = [0, 16], sizes = [2, 16], strides = [1, 1]} : vector<2x48xf32> to vector<2x16xf32>
    %255 = vector.extract_strided_slice %252 {offsets = [0, 32], sizes = [2, 16], strides = [1, 1]} : vector<2x48xf32> to vector<2x16xf32>
    %256 = vector.extract_strided_slice %246 {offsets = [0, 48], sizes = [2, 16], strides = [1, 1]} : vector<2x64xf32> to vector<2x16xf32>
    %257 = math.tanh %256 : vector<2x16xf32>
    %258 = arith.mulf %254, %220 : vector<2x16xf32>
    %259 = arith.mulf %253, %257 : vector<2x16xf32>
    %260 = arith.addf %258, %259 : vector<2x16xf32>
    %261 = math.tanh %260 : vector<2x16xf32>
    %262 = arith.mulf %255, %261 : vector<2x16xf32>
    %cst_51 = arith.constant dense<0.000000e+00> : vector<2x64xf32>
    %263 = tpu.matmul %262, %34, %cst_51 {dimension_numbers = #tpu.dot_dimension_numbers<[1], [0], [0], [1], [0, 0, 1, 1], [], []>} : vector<2x16xf32>, vector<16x64xf32>, vector<2x64xf32> -> vector<2x64xf32>
    %264 = vector.broadcast %36 : vector<1x64xf32> to vector<2x64xf32>
    %265 = arith.addf %263, %264 : vector<2x64xf32>
    %cst_52 = arith.constant dense<0.000000e+00> : vector<2x64xf32>
    %266 = tpu.matmul %243, %35, %cst_52 {dimension_numbers = #tpu.dot_dimension_numbers<[1], [0], [0], [1], [0, 0, 1, 1], [], []>} : vector<2x16xf32>, vector<16x64xf32>, vector<2x64xf32> -> vector<2x64xf32>
    %267 = arith.addf %265, %266 : vector<2x64xf32>
    %268 = vector.extract_strided_slice %267 {offsets = [0, 0], sizes = [2, 48], strides = [1, 1]} : vector<2x64xf32> to vector<2x48xf32>
    %269 = arith.negf %268 : vector<2x48xf32>
    %270 = math.exp %269 : vector<2x48xf32>
    %cst_53 = arith.constant 1.000000e+00 : f32
    %271 = vector.broadcast %cst_53 : f32 to vector<2x48xf32>
    %272 = arith.addf %271, %270 : vector<2x48xf32>
    %273 = arith.divf %271, %272 : vector<2x48xf32>
    %274 = vector.extract_strided_slice %273 {offsets = [0, 0], sizes = [2, 16], strides = [1, 1]} : vector<2x48xf32> to vector<2x16xf32>
    %275 = vector.extract_strided_slice %273 {offsets = [0, 16], sizes = [2, 16], strides = [1, 1]} : vector<2x48xf32> to vector<2x16xf32>
    %276 = vector.extract_strided_slice %273 {offsets = [0, 32], sizes = [2, 16], strides = [1, 1]} : vector<2x48xf32> to vector<2x16xf32>
    %277 = vector.extract_strided_slice %267 {offsets = [0, 48], sizes = [2, 16], strides = [1, 1]} : vector<2x64xf32> to vector<2x16xf32>
    %278 = math.tanh %277 : vector<2x16xf32>
    %279 = arith.mulf %275, %241 : vector<2x16xf32>
    %280 = arith.mulf %274, %278 : vector<2x16xf32>
    %281 = arith.addf %279, %280 : vector<2x16xf32>
    %282 = math.tanh %281 : vector<2x16xf32>
    %283 = arith.mulf %276, %282 : vector<2x16xf32>
    %284 = vector.extract_strided_slice %39 {offsets = [12, 0], sizes = [2, 64], strides = [1, 1]} : vector<24x64xf32> to vector<2x64xf32>
    %cst_54 = arith.constant dense<0.000000e+00> : vector<2x64xf32>
    %285 = tpu.matmul %262, %32, %cst_54 {dimension_numbers = #tpu.dot_dimension_numbers<[1], [0], [0], [1], [0, 0, 1, 1], [], []>} : vector<2x16xf32>, vector<16x64xf32>, vector<2x64xf32> -> vector<2x64xf32>
    %286 = arith.addf %284, %285 : vector<2x64xf32>
    %287 = vector.extract_strided_slice %286 {offsets = [0, 0], sizes = [2, 48], strides = [1, 1]} : vector<2x64xf32> to vector<2x48xf32>
    %288 = arith.negf %287 : vector<2x48xf32>
    %289 = math.exp %288 : vector<2x48xf32>
    %cst_55 = arith.constant 1.000000e+00 : f32
    %290 = vector.broadcast %cst_55 : f32 to vector<2x48xf32>
    %291 = arith.addf %290, %289 : vector<2x48xf32>
    %292 = arith.divf %290, %291 : vector<2x48xf32>
    %293 = vector.extract_strided_slice %292 {offsets = [0, 0], sizes = [2, 16], strides = [1, 1]} : vector<2x48xf32> to vector<2x16xf32>
    %294 = vector.extract_strided_slice %292 {offsets = [0, 16], sizes = [2, 16], strides = [1, 1]} : vector<2x48xf32> to vector<2x16xf32>
    %295 = vector.extract_strided_slice %292 {offsets = [0, 32], sizes = [2, 16], strides = [1, 1]} : vector<2x48xf32> to vector<2x16xf32>
    %296 = vector.extract_strided_slice %286 {offsets = [0, 48], sizes = [2, 16], strides = [1, 1]} : vector<2x64xf32> to vector<2x16xf32>
    %297 = math.tanh %296 : vector<2x16xf32>
    %298 = arith.mulf %294, %260 : vector<2x16xf32>
    %299 = arith.mulf %293, %297 : vector<2x16xf32>
    %300 = arith.addf %298, %299 : vector<2x16xf32>
    %301 = math.tanh %300 : vector<2x16xf32>
    %302 = arith.mulf %295, %301 : vector<2x16xf32>
    %cst_56 = arith.constant dense<0.000000e+00> : vector<2x64xf32>
    %303 = tpu.matmul %302, %34, %cst_56 {dimension_numbers = #tpu.dot_dimension_numbers<[1], [0], [0], [1], [0, 0, 1, 1], [], []>} : vector<2x16xf32>, vector<16x64xf32>, vector<2x64xf32> -> vector<2x64xf32>
    %304 = vector.broadcast %36 : vector<1x64xf32> to vector<2x64xf32>
    %305 = arith.addf %303, %304 : vector<2x64xf32>
    %cst_57 = arith.constant dense<0.000000e+00> : vector<2x64xf32>
    %306 = tpu.matmul %283, %35, %cst_57 {dimension_numbers = #tpu.dot_dimension_numbers<[1], [0], [0], [1], [0, 0, 1, 1], [], []>} : vector<2x16xf32>, vector<16x64xf32>, vector<2x64xf32> -> vector<2x64xf32>
    %307 = arith.addf %305, %306 : vector<2x64xf32>
    %308 = vector.extract_strided_slice %307 {offsets = [0, 0], sizes = [2, 48], strides = [1, 1]} : vector<2x64xf32> to vector<2x48xf32>
    %309 = arith.negf %308 : vector<2x48xf32>
    %310 = math.exp %309 : vector<2x48xf32>
    %cst_58 = arith.constant 1.000000e+00 : f32
    %311 = vector.broadcast %cst_58 : f32 to vector<2x48xf32>
    %312 = arith.addf %311, %310 : vector<2x48xf32>
    %313 = arith.divf %311, %312 : vector<2x48xf32>
    %314 = vector.extract_strided_slice %313 {offsets = [0, 0], sizes = [2, 16], strides = [1, 1]} : vector<2x48xf32> to vector<2x16xf32>
    %315 = vector.extract_strided_slice %313 {offsets = [0, 16], sizes = [2, 16], strides = [1, 1]} : vector<2x48xf32> to vector<2x16xf32>
    %316 = vector.extract_strided_slice %313 {offsets = [0, 32], sizes = [2, 16], strides = [1, 1]} : vector<2x48xf32> to vector<2x16xf32>
    %317 = vector.extract_strided_slice %307 {offsets = [0, 48], sizes = [2, 16], strides = [1, 1]} : vector<2x64xf32> to vector<2x16xf32>
    %318 = math.tanh %317 : vector<2x16xf32>
    %319 = arith.mulf %315, %281 : vector<2x16xf32>
    %320 = arith.mulf %314, %318 : vector<2x16xf32>
    %321 = arith.addf %319, %320 : vector<2x16xf32>
    %322 = math.tanh %321 : vector<2x16xf32>
    %323 = arith.mulf %316, %322 : vector<2x16xf32>
    %324 = vector.extract_strided_slice %39 {offsets = [14, 0], sizes = [2, 64], strides = [1, 1]} : vector<24x64xf32> to vector<2x64xf32>
    %cst_59 = arith.constant dense<0.000000e+00> : vector<2x64xf32>
    %325 = tpu.matmul %302, %32, %cst_59 {dimension_numbers = #tpu.dot_dimension_numbers<[1], [0], [0], [1], [0, 0, 1, 1], [], []>} : vector<2x16xf32>, vector<16x64xf32>, vector<2x64xf32> -> vector<2x64xf32>
    %326 = arith.addf %324, %325 : vector<2x64xf32>
    %327 = vector.extract_strided_slice %326 {offsets = [0, 0], sizes = [2, 48], strides = [1, 1]} : vector<2x64xf32> to vector<2x48xf32>
    %328 = arith.negf %327 : vector<2x48xf32>
    %329 = math.exp %328 : vector<2x48xf32>
    %cst_60 = arith.constant 1.000000e+00 : f32
    %330 = vector.broadcast %cst_60 : f32 to vector<2x48xf32>
    %331 = arith.addf %330, %329 : vector<2x48xf32>
    %332 = arith.divf %330, %331 : vector<2x48xf32>
    %333 = vector.extract_strided_slice %332 {offsets = [0, 0], sizes = [2, 16], strides = [1, 1]} : vector<2x48xf32> to vector<2x16xf32>
    %334 = vector.extract_strided_slice %332 {offsets = [0, 16], sizes = [2, 16], strides = [1, 1]} : vector<2x48xf32> to vector<2x16xf32>
    %335 = vector.extract_strided_slice %332 {offsets = [0, 32], sizes = [2, 16], strides = [1, 1]} : vector<2x48xf32> to vector<2x16xf32>
    %336 = vector.extract_strided_slice %326 {offsets = [0, 48], sizes = [2, 16], strides = [1, 1]} : vector<2x64xf32> to vector<2x16xf32>
    %337 = math.tanh %336 : vector<2x16xf32>
    %338 = arith.mulf %334, %300 : vector<2x16xf32>
    %339 = arith.mulf %333, %337 : vector<2x16xf32>
    %340 = arith.addf %338, %339 : vector<2x16xf32>
    %341 = math.tanh %340 : vector<2x16xf32>
    %342 = arith.mulf %335, %341 : vector<2x16xf32>
    %cst_61 = arith.constant dense<0.000000e+00> : vector<2x64xf32>
    %343 = tpu.matmul %342, %34, %cst_61 {dimension_numbers = #tpu.dot_dimension_numbers<[1], [0], [0], [1], [0, 0, 1, 1], [], []>} : vector<2x16xf32>, vector<16x64xf32>, vector<2x64xf32> -> vector<2x64xf32>
    %344 = vector.broadcast %36 : vector<1x64xf32> to vector<2x64xf32>
    %345 = arith.addf %343, %344 : vector<2x64xf32>
    %cst_62 = arith.constant dense<0.000000e+00> : vector<2x64xf32>
    %346 = tpu.matmul %323, %35, %cst_62 {dimension_numbers = #tpu.dot_dimension_numbers<[1], [0], [0], [1], [0, 0, 1, 1], [], []>} : vector<2x16xf32>, vector<16x64xf32>, vector<2x64xf32> -> vector<2x64xf32>
    %347 = arith.addf %345, %346 : vector<2x64xf32>
    %348 = vector.extract_strided_slice %347 {offsets = [0, 0], sizes = [2, 48], strides = [1, 1]} : vector<2x64xf32> to vector<2x48xf32>
    %349 = arith.negf %348 : vector<2x48xf32>
    %350 = math.exp %349 : vector<2x48xf32>
    %cst_63 = arith.constant 1.000000e+00 : f32
    %351 = vector.broadcast %cst_63 : f32 to vector<2x48xf32>
    %352 = arith.addf %351, %350 : vector<2x48xf32>
    %353 = arith.divf %351, %352 : vector<2x48xf32>
    %354 = vector.extract_strided_slice %353 {offsets = [0, 0], sizes = [2, 16], strides = [1, 1]} : vector<2x48xf32> to vector<2x16xf32>
    %355 = vector.extract_strided_slice %353 {offsets = [0, 16], sizes = [2, 16], strides = [1, 1]} : vector<2x48xf32> to vector<2x16xf32>
    %356 = vector.extract_strided_slice %353 {offsets = [0, 32], sizes = [2, 16], strides = [1, 1]} : vector<2x48xf32> to vector<2x16xf32>
    %357 = vector.extract_strided_slice %347 {offsets = [0, 48], sizes = [2, 16], strides = [1, 1]} : vector<2x64xf32> to vector<2x16xf32>
    %358 = math.tanh %357 : vector<2x16xf32>
    %359 = arith.mulf %355, %321 : vector<2x16xf32>
    %360 = arith.mulf %354, %358 : vector<2x16xf32>
    %361 = arith.addf %359, %360 : vector<2x16xf32>
    %362 = math.tanh %361 : vector<2x16xf32>
    %363 = arith.mulf %356, %362 : vector<2x16xf32>
    %364 = vector.extract_strided_slice %39 {offsets = [16, 0], sizes = [2, 64], strides = [1, 1]} : vector<24x64xf32> to vector<2x64xf32>
    %cst_64 = arith.constant dense<0.000000e+00> : vector<2x64xf32>
    %365 = tpu.matmul %342, %32, %cst_64 {dimension_numbers = #tpu.dot_dimension_numbers<[1], [0], [0], [1], [0, 0, 1, 1], [], []>} : vector<2x16xf32>, vector<16x64xf32>, vector<2x64xf32> -> vector<2x64xf32>
    %366 = arith.addf %364, %365 : vector<2x64xf32>
    %367 = vector.extract_strided_slice %366 {offsets = [0, 0], sizes = [2, 48], strides = [1, 1]} : vector<2x64xf32> to vector<2x48xf32>
    %368 = arith.negf %367 : vector<2x48xf32>
    %369 = math.exp %368 : vector<2x48xf32>
    %cst_65 = arith.constant 1.000000e+00 : f32
    %370 = vector.broadcast %cst_65 : f32 to vector<2x48xf32>
    %371 = arith.addf %370, %369 : vector<2x48xf32>
    %372 = arith.divf %370, %371 : vector<2x48xf32>
    %373 = vector.extract_strided_slice %372 {offsets = [0, 0], sizes = [2, 16], strides = [1, 1]} : vector<2x48xf32> to vector<2x16xf32>
    %374 = vector.extract_strided_slice %372 {offsets = [0, 16], sizes = [2, 16], strides = [1, 1]} : vector<2x48xf32> to vector<2x16xf32>
    %375 = vector.extract_strided_slice %372 {offsets = [0, 32], sizes = [2, 16], strides = [1, 1]} : vector<2x48xf32> to vector<2x16xf32>
    %376 = vector.extract_strided_slice %366 {offsets = [0, 48], sizes = [2, 16], strides = [1, 1]} : vector<2x64xf32> to vector<2x16xf32>
    %377 = math.tanh %376 : vector<2x16xf32>
    %378 = arith.mulf %374, %340 : vector<2x16xf32>
    %379 = arith.mulf %373, %377 : vector<2x16xf32>
    %380 = arith.addf %378, %379 : vector<2x16xf32>
    %381 = math.tanh %380 : vector<2x16xf32>
    %382 = arith.mulf %375, %381 : vector<2x16xf32>
    %cst_66 = arith.constant dense<0.000000e+00> : vector<2x64xf32>
    %383 = tpu.matmul %382, %34, %cst_66 {dimension_numbers = #tpu.dot_dimension_numbers<[1], [0], [0], [1], [0, 0, 1, 1], [], []>} : vector<2x16xf32>, vector<16x64xf32>, vector<2x64xf32> -> vector<2x64xf32>
    %384 = vector.broadcast %36 : vector<1x64xf32> to vector<2x64xf32>
    %385 = arith.addf %383, %384 : vector<2x64xf32>
    %cst_67 = arith.constant dense<0.000000e+00> : vector<2x64xf32>
    %386 = tpu.matmul %363, %35, %cst_67 {dimension_numbers = #tpu.dot_dimension_numbers<[1], [0], [0], [1], [0, 0, 1, 1], [], []>} : vector<2x16xf32>, vector<16x64xf32>, vector<2x64xf32> -> vector<2x64xf32>
    %387 = arith.addf %385, %386 : vector<2x64xf32>
    %388 = vector.extract_strided_slice %387 {offsets = [0, 0], sizes = [2, 48], strides = [1, 1]} : vector<2x64xf32> to vector<2x48xf32>
    %389 = arith.negf %388 : vector<2x48xf32>
    %390 = math.exp %389 : vector<2x48xf32>
    %cst_68 = arith.constant 1.000000e+00 : f32
    %391 = vector.broadcast %cst_68 : f32 to vector<2x48xf32>
    %392 = arith.addf %391, %390 : vector<2x48xf32>
    %393 = arith.divf %391, %392 : vector<2x48xf32>
    %394 = vector.extract_strided_slice %393 {offsets = [0, 0], sizes = [2, 16], strides = [1, 1]} : vector<2x48xf32> to vector<2x16xf32>
    %395 = vector.extract_strided_slice %393 {offsets = [0, 16], sizes = [2, 16], strides = [1, 1]} : vector<2x48xf32> to vector<2x16xf32>
    %396 = vector.extract_strided_slice %393 {offsets = [0, 32], sizes = [2, 16], strides = [1, 1]} : vector<2x48xf32> to vector<2x16xf32>
    %397 = vector.extract_strided_slice %387 {offsets = [0, 48], sizes = [2, 16], strides = [1, 1]} : vector<2x64xf32> to vector<2x16xf32>
    %398 = math.tanh %397 : vector<2x16xf32>
    %399 = arith.mulf %395, %361 : vector<2x16xf32>
    %400 = arith.mulf %394, %398 : vector<2x16xf32>
    %401 = arith.addf %399, %400 : vector<2x16xf32>
    %402 = math.tanh %401 : vector<2x16xf32>
    %403 = arith.mulf %396, %402 : vector<2x16xf32>
    %404 = vector.extract_strided_slice %39 {offsets = [18, 0], sizes = [2, 64], strides = [1, 1]} : vector<24x64xf32> to vector<2x64xf32>
    %cst_69 = arith.constant dense<0.000000e+00> : vector<2x64xf32>
    %405 = tpu.matmul %382, %32, %cst_69 {dimension_numbers = #tpu.dot_dimension_numbers<[1], [0], [0], [1], [0, 0, 1, 1], [], []>} : vector<2x16xf32>, vector<16x64xf32>, vector<2x64xf32> -> vector<2x64xf32>
    %406 = arith.addf %404, %405 : vector<2x64xf32>
    %407 = vector.extract_strided_slice %406 {offsets = [0, 0], sizes = [2, 48], strides = [1, 1]} : vector<2x64xf32> to vector<2x48xf32>
    %408 = arith.negf %407 : vector<2x48xf32>
    %409 = math.exp %408 : vector<2x48xf32>
    %cst_70 = arith.constant 1.000000e+00 : f32
    %410 = vector.broadcast %cst_70 : f32 to vector<2x48xf32>
    %411 = arith.addf %410, %409 : vector<2x48xf32>
    %412 = arith.divf %410, %411 : vector<2x48xf32>
    %413 = vector.extract_strided_slice %412 {offsets = [0, 0], sizes = [2, 16], strides = [1, 1]} : vector<2x48xf32> to vector<2x16xf32>
    %414 = vector.extract_strided_slice %412 {offsets = [0, 16], sizes = [2, 16], strides = [1, 1]} : vector<2x48xf32> to vector<2x16xf32>
    %415 = vector.extract_strided_slice %412 {offsets = [0, 32], sizes = [2, 16], strides = [1, 1]} : vector<2x48xf32> to vector<2x16xf32>
    %416 = vector.extract_strided_slice %406 {offsets = [0, 48], sizes = [2, 16], strides = [1, 1]} : vector<2x64xf32> to vector<2x16xf32>
    %417 = math.tanh %416 : vector<2x16xf32>
    %418 = arith.mulf %414, %380 : vector<2x16xf32>
    %419 = arith.mulf %413, %417 : vector<2x16xf32>
    %420 = arith.addf %418, %419 : vector<2x16xf32>
    %421 = math.tanh %420 : vector<2x16xf32>
    %422 = arith.mulf %415, %421 : vector<2x16xf32>
    %cst_71 = arith.constant dense<0.000000e+00> : vector<2x64xf32>
    %423 = tpu.matmul %422, %34, %cst_71 {dimension_numbers = #tpu.dot_dimension_numbers<[1], [0], [0], [1], [0, 0, 1, 1], [], []>} : vector<2x16xf32>, vector<16x64xf32>, vector<2x64xf32> -> vector<2x64xf32>
    %424 = vector.broadcast %36 : vector<1x64xf32> to vector<2x64xf32>
    %425 = arith.addf %423, %424 : vector<2x64xf32>
    %cst_72 = arith.constant dense<0.000000e+00> : vector<2x64xf32>
    %426 = tpu.matmul %403, %35, %cst_72 {dimension_numbers = #tpu.dot_dimension_numbers<[1], [0], [0], [1], [0, 0, 1, 1], [], []>} : vector<2x16xf32>, vector<16x64xf32>, vector<2x64xf32> -> vector<2x64xf32>
    %427 = arith.addf %425, %426 : vector<2x64xf32>
    %428 = vector.extract_strided_slice %427 {offsets = [0, 0], sizes = [2, 48], strides = [1, 1]} : vector<2x64xf32> to vector<2x48xf32>
    %429 = arith.negf %428 : vector<2x48xf32>
    %430 = math.exp %429 : vector<2x48xf32>
    %cst_73 = arith.constant 1.000000e+00 : f32
    %431 = vector.broadcast %cst_73 : f32 to vector<2x48xf32>
    %432 = arith.addf %431, %430 : vector<2x48xf32>
    %433 = arith.divf %431, %432 : vector<2x48xf32>
    %434 = vector.extract_strided_slice %433 {offsets = [0, 0], sizes = [2, 16], strides = [1, 1]} : vector<2x48xf32> to vector<2x16xf32>
    %435 = vector.extract_strided_slice %433 {offsets = [0, 16], sizes = [2, 16], strides = [1, 1]} : vector<2x48xf32> to vector<2x16xf32>
    %436 = vector.extract_strided_slice %433 {offsets = [0, 32], sizes = [2, 16], strides = [1, 1]} : vector<2x48xf32> to vector<2x16xf32>
    %437 = vector.extract_strided_slice %427 {offsets = [0, 48], sizes = [2, 16], strides = [1, 1]} : vector<2x64xf32> to vector<2x16xf32>
    %438 = math.tanh %437 : vector<2x16xf32>
    %439 = arith.mulf %435, %401 : vector<2x16xf32>
    %440 = arith.mulf %434, %438 : vector<2x16xf32>
    %441 = arith.addf %439, %440 : vector<2x16xf32>
    %442 = math.tanh %441 : vector<2x16xf32>
    %443 = arith.mulf %436, %442 : vector<2x16xf32>
    %444 = vector.extract_strided_slice %39 {offsets = [20, 0], sizes = [2, 64], strides = [1, 1]} : vector<24x64xf32> to vector<2x64xf32>
    %cst_74 = arith.constant dense<0.000000e+00> : vector<2x64xf32>
    %445 = tpu.matmul %422, %32, %cst_74 {dimension_numbers = #tpu.dot_dimension_numbers<[1], [0], [0], [1], [0, 0, 1, 1], [], []>} : vector<2x16xf32>, vector<16x64xf32>, vector<2x64xf32> -> vector<2x64xf32>
    %446 = arith.addf %444, %445 : vector<2x64xf32>
    %447 = vector.extract_strided_slice %446 {offsets = [0, 0], sizes = [2, 48], strides = [1, 1]} : vector<2x64xf32> to vector<2x48xf32>
    %448 = arith.negf %447 : vector<2x48xf32>
    %449 = math.exp %448 : vector<2x48xf32>
    %cst_75 = arith.constant 1.000000e+00 : f32
    %450 = vector.broadcast %cst_75 : f32 to vector<2x48xf32>
    %451 = arith.addf %450, %449 : vector<2x48xf32>
    %452 = arith.divf %450, %451 : vector<2x48xf32>
    %453 = vector.extract_strided_slice %452 {offsets = [0, 0], sizes = [2, 16], strides = [1, 1]} : vector<2x48xf32> to vector<2x16xf32>
    %454 = vector.extract_strided_slice %452 {offsets = [0, 16], sizes = [2, 16], strides = [1, 1]} : vector<2x48xf32> to vector<2x16xf32>
    %455 = vector.extract_strided_slice %452 {offsets = [0, 32], sizes = [2, 16], strides = [1, 1]} : vector<2x48xf32> to vector<2x16xf32>
    %456 = vector.extract_strided_slice %446 {offsets = [0, 48], sizes = [2, 16], strides = [1, 1]} : vector<2x64xf32> to vector<2x16xf32>
    %457 = math.tanh %456 : vector<2x16xf32>
    %458 = arith.mulf %454, %420 : vector<2x16xf32>
    %459 = arith.mulf %453, %457 : vector<2x16xf32>
    %460 = arith.addf %458, %459 : vector<2x16xf32>
    %461 = math.tanh %460 : vector<2x16xf32>
    %462 = arith.mulf %455, %461 : vector<2x16xf32>
    %cst_76 = arith.constant dense<0.000000e+00> : vector<2x64xf32>
    %463 = tpu.matmul %462, %34, %cst_76 {dimension_numbers = #tpu.dot_dimension_numbers<[1], [0], [0], [1], [0, 0, 1, 1], [], []>} : vector<2x16xf32>, vector<16x64xf32>, vector<2x64xf32> -> vector<2x64xf32>
    %464 = vector.broadcast %36 : vector<1x64xf32> to vector<2x64xf32>
    %465 = arith.addf %463, %464 : vector<2x64xf32>
    %cst_77 = arith.constant dense<0.000000e+00> : vector<2x64xf32>
    %466 = tpu.matmul %443, %35, %cst_77 {dimension_numbers = #tpu.dot_dimension_numbers<[1], [0], [0], [1], [0, 0, 1, 1], [], []>} : vector<2x16xf32>, vector<16x64xf32>, vector<2x64xf32> -> vector<2x64xf32>
    %467 = arith.addf %465, %466 : vector<2x64xf32>
    %468 = vector.extract_strided_slice %467 {offsets = [0, 0], sizes = [2, 48], strides = [1, 1]} : vector<2x64xf32> to vector<2x48xf32>
    %469 = arith.negf %468 : vector<2x48xf32>
    %470 = math.exp %469 : vector<2x48xf32>
    %cst_78 = arith.constant 1.000000e+00 : f32
    %471 = vector.broadcast %cst_78 : f32 to vector<2x48xf32>
    %472 = arith.addf %471, %470 : vector<2x48xf32>
    %473 = arith.divf %471, %472 : vector<2x48xf32>
    %474 = vector.extract_strided_slice %473 {offsets = [0, 0], sizes = [2, 16], strides = [1, 1]} : vector<2x48xf32> to vector<2x16xf32>
    %475 = vector.extract_strided_slice %473 {offsets = [0, 16], sizes = [2, 16], strides = [1, 1]} : vector<2x48xf32> to vector<2x16xf32>
    %476 = vector.extract_strided_slice %473 {offsets = [0, 32], sizes = [2, 16], strides = [1, 1]} : vector<2x48xf32> to vector<2x16xf32>
    %477 = vector.extract_strided_slice %467 {offsets = [0, 48], sizes = [2, 16], strides = [1, 1]} : vector<2x64xf32> to vector<2x16xf32>
    %478 = math.tanh %477 : vector<2x16xf32>
    %479 = arith.mulf %475, %441 : vector<2x16xf32>
    %480 = arith.mulf %474, %478 : vector<2x16xf32>
    %481 = arith.addf %479, %480 : vector<2x16xf32>
    %482 = math.tanh %481 : vector<2x16xf32>
    %483 = arith.mulf %476, %482 : vector<2x16xf32>
    %484 = vector.extract_strided_slice %39 {offsets = [22, 0], sizes = [2, 64], strides = [1, 1]} : vector<24x64xf32> to vector<2x64xf32>
    %cst_79 = arith.constant dense<0.000000e+00> : vector<2x64xf32>
    %485 = tpu.matmul %462, %32, %cst_79 {dimension_numbers = #tpu.dot_dimension_numbers<[1], [0], [0], [1], [0, 0, 1, 1], [], []>} : vector<2x16xf32>, vector<16x64xf32>, vector<2x64xf32> -> vector<2x64xf32>
    %486 = arith.addf %484, %485 : vector<2x64xf32>
    %487 = vector.extract_strided_slice %486 {offsets = [0, 0], sizes = [2, 48], strides = [1, 1]} : vector<2x64xf32> to vector<2x48xf32>
    %488 = arith.negf %487 : vector<2x48xf32>
    %489 = math.exp %488 : vector<2x48xf32>
    %cst_80 = arith.constant 1.000000e+00 : f32
    %490 = vector.broadcast %cst_80 : f32 to vector<2x48xf32>
    %491 = arith.addf %490, %489 : vector<2x48xf32>
    %492 = arith.divf %490, %491 : vector<2x48xf32>
    %493 = vector.extract_strided_slice %492 {offsets = [0, 0], sizes = [2, 16], strides = [1, 1]} : vector<2x48xf32> to vector<2x16xf32>
    %494 = vector.extract_strided_slice %492 {offsets = [0, 16], sizes = [2, 16], strides = [1, 1]} : vector<2x48xf32> to vector<2x16xf32>
    %495 = vector.extract_strided_slice %492 {offsets = [0, 32], sizes = [2, 16], strides = [1, 1]} : vector<2x48xf32> to vector<2x16xf32>
    %496 = vector.extract_strided_slice %486 {offsets = [0, 48], sizes = [2, 16], strides = [1, 1]} : vector<2x64xf32> to vector<2x16xf32>
    %497 = math.tanh %496 : vector<2x16xf32>
    %498 = arith.mulf %494, %460 : vector<2x16xf32>
    %499 = arith.mulf %493, %497 : vector<2x16xf32>
    %500 = arith.addf %498, %499 : vector<2x16xf32>
    %501 = math.tanh %500 : vector<2x16xf32>
    %502 = arith.mulf %495, %501 : vector<2x16xf32>
    %cst_81 = arith.constant dense<0.000000e+00> : vector<2x64xf32>
    %503 = tpu.matmul %502, %34, %cst_81 {dimension_numbers = #tpu.dot_dimension_numbers<[1], [0], [0], [1], [0, 0, 1, 1], [], []>} : vector<2x16xf32>, vector<16x64xf32>, vector<2x64xf32> -> vector<2x64xf32>
    %504 = vector.broadcast %36 : vector<1x64xf32> to vector<2x64xf32>
    %505 = arith.addf %503, %504 : vector<2x64xf32>
    %cst_82 = arith.constant dense<0.000000e+00> : vector<2x64xf32>
    %506 = tpu.matmul %483, %35, %cst_82 {dimension_numbers = #tpu.dot_dimension_numbers<[1], [0], [0], [1], [0, 0, 1, 1], [], []>} : vector<2x16xf32>, vector<16x64xf32>, vector<2x64xf32> -> vector<2x64xf32>
    %507 = arith.addf %505, %506 : vector<2x64xf32>
    %508 = vector.extract_strided_slice %507 {offsets = [0, 0], sizes = [2, 48], strides = [1, 1]} : vector<2x64xf32> to vector<2x48xf32>
    %509 = arith.negf %508 : vector<2x48xf32>
    %510 = math.exp %509 : vector<2x48xf32>
    %cst_83 = arith.constant 1.000000e+00 : f32
    %511 = vector.broadcast %cst_83 : f32 to vector<2x48xf32>
    %512 = arith.addf %511, %510 : vector<2x48xf32>
    %513 = arith.divf %511, %512 : vector<2x48xf32>
    %514 = vector.extract_strided_slice %513 {offsets = [0, 0], sizes = [2, 16], strides = [1, 1]} : vector<2x48xf32> to vector<2x16xf32>
    %515 = vector.extract_strided_slice %513 {offsets = [0, 16], sizes = [2, 16], strides = [1, 1]} : vector<2x48xf32> to vector<2x16xf32>
    %516 = vector.extract_strided_slice %513 {offsets = [0, 32], sizes = [2, 16], strides = [1, 1]} : vector<2x48xf32> to vector<2x16xf32>
    %517 = vector.extract_strided_slice %507 {offsets = [0, 48], sizes = [2, 16], strides = [1, 1]} : vector<2x64xf32> to vector<2x16xf32>
    %518 = math.tanh %517 : vector<2x16xf32>
    %519 = arith.mulf %515, %481 : vector<2x16xf32>
    %520 = arith.mulf %514, %518 : vector<2x16xf32>
    %521 = arith.addf %519, %520 : vector<2x16xf32>
    %522 = math.tanh %521 : vector<2x16xf32>
    %523 = arith.mulf %516, %522 : vector<2x16xf32>
    %c112 = arith.constant 112 : index
    %c0_84 = arith.constant 0 : index
    %524 = vector.load %arg2[%c112, %c0_84] : memref<120x128xf32, #tpu.memory_space<vmem>>, vector<1x17xf32>
    %525 = vector.extract_strided_slice %524 {offsets = [0, 0], sizes = [1, 16], strides = [1, 1]} : vector<1x17xf32> to vector<1x16xf32>
    %526 = vector.broadcast %525 : vector<1x16xf32> to vector<2x16xf32>
    %527 = arith.mulf %523, %526 : vector<2x16xf32>
    %cst_85 = arith.constant dense<0.000000e+00> : vector<2xf32>
    %528 = vector.multi_reduction <add>, %527, %cst_85 [1] : vector<2x16xf32> to vector<2xf32>
    %529 = vector.shape_cast %528 : vector<2xf32> to vector<2x1xf32>
    %530 = vector.extract_strided_slice %524 {offsets = [0, 16], sizes = [1, 1], strides = [1, 1]} : vector<1x17xf32> to vector<1x1xf32>
    %531 = vector.broadcast %530 : vector<1x1xf32> to vector<2x1xf32>
    %532 = arith.addf %529, %531 : vector<2x1xf32>
    %c0_86 = arith.constant 0 : index
    %c0_87 = arith.constant 0 : index
    %533 = vector.load %arg3[%c0_86, %c0_87] : memref<2x1xf32, #tpu.memory_space<vmem>>, vector<2x1xf32>
    tpu.vector_store %arg3[%c0_86, %c0_87], %532 {strides = array<i32>} : memref<2x1xf32, #tpu.memory_space<vmem>>, vector<2x1xf32>,
    return
  }
  func.func @transform_0(%arg0: i32) -> (i32, i32) {
    %c0_i32 = arith.constant 0 : i32
    %c0_i32_0 = arith.constant 0 : i32
    %c0_i32_1 = arith.constant 0 : i32
    return %c0_i32, %c0_i32_0 : i32, i32
  }
  func.func @transform_1(%arg0: i32) -> (i32, i32) {
    %c0_i32 = arith.constant 0 : i32
    %c0_i32_0 = arith.constant 0 : i32
    %c0_i32_1 = arith.constant 0 : i32
    return %c0_i32, %c0_i32_0 : i32, i32
  }
  func.func @transform_2(%arg0: i32) -> (i32, i32) {
    %c0_i32 = arith.constant 0 : i32
    %c0_i32_0 = arith.constant 0 : i32
    %c0_i32_1 = arith.constant 0 : i32
    return %c0_i32, %c0_i32_0 : i32, i32
  }
}

</mosaic_0001>

<llo_original>
// kernel: model_forward.1
$region0: #{model_forward.1}
  #allocation0 [shape = 'u32[]', space=smem, size = 0x4, offset = 0x4, fixed_abs, tag = 'smem constant byte address 0x4 - core index']
  #allocation1 [shape = 'u32[144,128]{1,0:T(1,128)}', space=vmem, size = 0x12000, scoped, tag = 'internal scratch']
  %s0 = inlined_call_operand.vmem [shape: f32[16,4], index: 0, kind: input, shape index: {}]
  %s1 = inlined_call_operand.vmem [shape: f32[120,128], index: 1, kind: input, shape index: {}]
  %s2 = inlined_call_operand.vmem [shape: f32[2,1], index: 2, kind: output, shape index: {}]
  %s3 = sld [smem:[#allocation0]]
  $region18: #{model_forward.1} parent=0
    _
  %s5 = ssub.s32 1, %s3
  %s6 = scalar_select 0, %s5, %s3
  // Predicated region
  $region2: #{model_forward.1} parent=0 // pred_check
    _
  $region3: #{model_forward.1} parent=0 // pred_check_branch
    %8 = sbr.rel (0) target = $region5
  $region4: #{model_forward.1} parent=0 // pred_region
    _
  $region5: #{model_forward.1} parent=0 // pred_fallthru
    _
  // Predicated region
  $region6: #{model_forward.1} parent=0 // pred_check
    _
  $region7: #{model_forward.1} parent=0 // pred_check_branch
    %10 = sbr.rel (0) target = $region9
  $region8: #{model_forward.1} parent=0 // pred_region
    _
  $region9: #{model_forward.1} parent=0 // pred_fallthru
    _
  %v11 = vld [vmem:[%s0] sm:$0xff]
  %v12 = vld [vmem:[%s0 + $0x8] sm:$0xff]
  %v13 = vld [vmem:[%s1] sm:$0xff]
  %v14 = vld [vmem:[%s1 + $0x8] sm:$0x1]
  %vm17 = vcmask 1041408
  %v18 = vrot.slane %v11, 6
  %v19 = vrot.slane %v12, 6
  %v20 = vsel %vm17, %v18, %v19
  %v24 = vsel %vm17, 0.0, %v18
  %26 = vrot.lane.b32.xlu0 %v11, 4
  %v27 = vpop.permute.xlu0 %26
  %28 = vrot.lane.b32.xlu0 %v12, 4
  %v29 = vpop.permute.xlu0 %28
  %30 = vrot.lane.b32.xlu0 0.0, 4
  %v31 = vpop.permute.xlu0 %30
  %vm35 = vcmask 31744
  %v36 = vsel %vm35, %v24, %v27
  %v37 = vsel %vm35, %v20, %v29
  %v38 = vsel %vm35, %v19, %v31
  %v39 = vlaneseq
  %v40 = vshrl.u32 %v39, 7
  %v41 = vsub.s32 0, %v40
  %v42 = vrot.slane %v14, %v41
  %vm43 = vcmask 64512
  %v45 = vsel %vm43, %v36, 0
  %v48 = vsel %vm43, %v37, 0
  %v51 = vsel %vm43, %v38, 0
  %53 = vmatprep.subr.mxu0 0.0
  %54 = vmatpush1.msra.mxu0 0.0
  %55 = vmatprep.subr.mxu0 0.0
  %56 = vmatpush1.msra.mxu0 0.0
  %57 = vmatprep.subr.mxu0 0.0
  %58 = vmatpush1.msra.mxu0 0.0
  %59 = vmatprep.subr.mxu0 0.0
  %60 = vmatpush1.msra.mxu0 0.0
  %61 = vmatprep.subr.mxu0 0.0
  %62 = vmatpush1.msra.mxu0 0.0
  %63 = vmatprep.subr.mxu0 0.0
  %64 = vmatpush1.msra.mxu0 0.0
  %65 = vmatprep.subr.mxu0 0.0
  %66 = vmatpush1.msra.mxu0 0.0
  %67 = vmatprep.subr.mxu0 0.0
  %68 = vmatpush1.msra.mxu0 0.0
  %69 = vmatprep.subr.mxu0 0.0
  %70 = vmatpush1.msra.mxu0 0.0
  %71 = vmatprep.subr.mxu0 0.0
  %72 = vmatpush1.msra.mxu0 0.0
  %73 = vmatprep.subr.mxu0 0.0
  %74 = vmatpush1.msra.mxu0 0.0
  %75 = vmatprep.subr.mxu0 0.0
  %76 = vmatpush1.msra.mxu0 0.0
  %77 = vmatprep.subr.mxu0 0.0
  %78 = vmatpush1.msra.mxu0 0.0
  %79 = vmatprep.subr.mxu0 0.0
  %80 = vmatpush1.msra.mxu0 0.0
  %81 = vmatprep.subr.mxu0 0.0
  %82 = vmatpush1.msra.mxu0 0.0
  %83 = vmatprep.subr.mxu0 0.0
  %84 = vmatpush1.msra.mxu0 %v13
  %85 = vmatprep.subr.mxu0 0.0
  %86 = vmatpush2.msra.mxu0 0.0
  %87 = vmatprep.subr.mxu0 0.0
  %88 = vmatpush2.msra.mxu0 0.0
  %89 = vmatprep.subr.mxu0 0.0
  %90 = vmatpush2.msra.mxu0 0.0
  %91 = vmatprep.subr.mxu0 0.0
  %92 = vmatpush2.msra.mxu0 0.0
  %93 = vmatprep.subr.mxu0 0.0
  %94 = vmatpush2.msra.mxu0 0.0
  %95 = vmatprep.subr.mxu0 0.0
  %96 = vmatpush2.msra.mxu0 0.0
  %97 = vmatprep.subr.mxu0 0.0
  %98 = vmatpush2.msra.mxu0 0.0
  %99 = vmatprep.subr.mxu0 0.0
  %100 = vmatpush2.msra.mxu0 0.0
  %101 = vmatprep.subr.mxu0 0.0
  %102 = vmatpush2.msra.mxu0 0.0
  %103 = vmatprep.subr.mxu0 0.0
  %104 = vmatpush2.msra.mxu0 0.0
  %105 = vmatprep.subr.mxu0 0.0
  %106 = vmatpush2.msra.mxu0 0.0
  %107 = vmatprep.subr.mxu0 0.0
  %108 = vmatpush2.msra.mxu0 0.0
  %109 = vmatprep.subr.mxu0 0.0
  %110 = vmatpush2.msra.mxu0 0.0
  %111 = vmatprep.subr.mxu0 0.0
  %112 = vmatpush2.msra.mxu0 0.0
  %113 = vmatprep.subr.mxu0 0.0
  %114 = vmatpush2.msra.mxu0 0.0
  %115 = vmatprep.subr.mxu0 0.0
  %116 = vmatpush2.msra.mxu0 0.0
  %117 = vmatprep.mubr.f32.mxu0 0.0
  %118 = vmatmul.mubr.f32.gmra.mxu0 %v45
  %v119 = vpop.f32.mrf.mxu0
  %v120 = vadd.f32 %v42, %v119
  %v121 = vpop.f32.mrf.mxu0
  %122 = vmatprep.mubr.f32.mxu0 0.0
  %123 = vmatmul.mubr.f32.gmra.mxu0 %v48
  %v124 = vpop.f32.mrf.mxu0
  %v125 = vadd.f32 %v42, %v124
  %v126 = vpop.f32.mrf.mxu0
  %127 = vmatprep.mubr.f32.mxu0 0.0
  %128 = vmatmul.mubr.f32.gmra.mxu0 %v51
  %v129 = vpop.f32.mrf.mxu0
  %v130 = vadd.f32 %v42, %v129
  %v131 = vpop.f32.mrf.mxu0
  %132 = vdwg.mxu0
  %v133 = vmax.f32 %v120, 0.0
  %v134 = vmax.f32 %v125, 0.0
  %v135 = vmax.f32 %v130, 0.0
  %v139 = vrot.slane %v133, 6
  %v140 = vrot.slane %v134, 6
  %v141 = vsel %vm17, %v139, %v140
  %v142 = vrot.slane %v135, 6
  %v143 = vsel %vm17, %v140, %v142
  %v147 = vsel %vm17, 0.0, %v139
  %v148 = vsel %vm17, %v135, 0.0
  %v149 = vmax.f32 %v147, %v133
  %v150 = vmax.f32 %v141, %v134
  %v151 = vmax.f32 %v143, %v148
  %v152 = vld [vmem:[%s1 + $0x10] sm:$0xff]
  %v153 = vld [vmem:[%s1 + $0x18] sm:$0xff]
  %v154 = vld [vmem:[%s1 + $0x20] sm:$0x1]
  %v158 = vrot.slane %v149, 6
  %v159 = vrot.slane %v150, 6
  %v160 = vsel %vm17, %v158, %v159
  %v161 = vrot.slane %v151, 6
  %v162 = vsel %vm17, %v159, %v161
  %v166 = vsel %vm17, 0.0, %v158
  %vm167 = vcmask 1043456
  %v168 = vsel %vm167, %v151, 0.0
  %170 = vrot.lane.b32.xlu0 %v149, 8
  %v171 = vpop.permute.xlu0 %170
  %172 = vrot.lane.b32.xlu0 %v150, 8
  %v173 = vpop.permute.xlu0 %172
  %174 = vrot.lane.b32.xlu0 %v168, 8
  %v175 = vpop.permute.xlu0 %174
  %v179 = vsel %vm43, %v166, %v171
  %v180 = vsel %vm43, %v160, %v173
  %v181 = vsel %vm43, %v162, %v175
  %v182 = vlaneseq
  %v183 = vshrl.u32 %v182, 7
  %v184 = vsub.s32 0, %v183
  %v185 = vrot.slane %v154, %v184
  %vm186 = vcmask 130048
  %v188 = vsel %vm186, %v179, 0
  %v191 = vsel %vm186, %v180, 0
  %v194 = vsel %vm186, %v181, 0
  %196 = vmatprep.subr.mxu0 0.0
  %197 = vmatpush1.msra.mxu0 0.0
  %198 = vmatprep.subr.mxu0 0.0
  %199 = vmatpush1.msra.mxu0 0.0
  %200 = vmatprep.subr.mxu0 0.0
  %201 = vmatpush1.msra.mxu0 0.0
  %202 = vmatprep.subr.mxu0 0.0
  %203 = vmatpush1.msra.mxu0 0.0
  %204 = vmatprep.subr.mxu0 0.0
  %205 = vmatpush1.msra.mxu0 0.0
  %206 = vmatprep.subr.mxu0 0.0
  %207 = vmatpush1.msra.mxu0 0.0
  %208 = vmatprep.subr.mxu0 0.0
  %209 = vmatpush1.msra.mxu0 0.0
  %210 = vmatprep.subr.mxu0 0.0
  %211 = vmatpush1.msra.mxu0 0.0
  %212 = vmatprep.subr.mxu0 0.0
  %213 = vmatpush1.msra.mxu0 0.0
  %214 = vmatprep.subr.mxu0 0.0
  %215 = vmatpush1.msra.mxu0 0.0
  %216 = vmatprep.subr.mxu0 0.0
  %217 = vmatpush1.msra.mxu0 0.0
  %218 = vmatprep.subr.mxu0 0.0
  %219 = vmatpush1.msra.mxu0 0.0
  %220 = vmatprep.subr.mxu0 0.0
  %221 = vmatpush1.msra.mxu0 0.0
  %222 = vmatprep.subr.mxu0 0.0
  %223 = vmatpush1.msra.mxu0 0.0
  %224 = vmatprep.subr.mxu0 0.0
  %225 = vmatpush1.msra.mxu0 %v153
  %226 = vmatprep.subr.mxu0 0.0
  %227 = vmatpush1.msra.mxu0 %v152
  %228 = vmatprep.subr.mxu0 0.0
  %229 = vmatpush2.msra.mxu0 0.0
  %230 = vmatprep.subr.mxu0 0.0
  %231 = vmatpush2.msra.mxu0 0.0
  %232 = vmatprep.subr.mxu0 0.0
  %233 = vmatpush2.msra.mxu0 0.0
  %234 = vmatprep.subr.mxu0 0.0
  %235 = vmatpush2.msra.mxu0 0.0
  %236 = vmatprep.subr.mxu0 0.0
  %237 = vmatpush2.msra.mxu0 0.0
  %238 = vmatprep.subr.mxu0 0.0
  %239 = vmatpush2.msra.mxu0 0.0
  %240 = vmatprep.subr.mxu0 0.0
  %241 = vmatpush2.msra.mxu0 0.0
  %242 = vmatprep.subr.mxu0 0.0
  %243 = vmatpush2.msra.mxu0 0.0
  %244 = vmatprep.subr.mxu0 0.0
  %245 = vmatpush2.msra.mxu0 0.0
  %246 = vmatprep.subr.mxu0 0.0
  %247 = vmatpush2.msra.mxu0 0.0
  %248 = vmatprep.subr.mxu0 0.0
  %249 = vmatpush2.msra.mxu0 0.0
  %250 = vmatprep.subr.mxu0 0.0
  %251 = vmatpush2.msra.mxu0 0.0
  %252 = vmatprep.subr.mxu0 0.0
  %253 = vmatpush2.msra.mxu0 0.0
  %254 = vmatprep.subr.mxu0 0.0
  %255 = vmatpush2.msra.mxu0 0.0
  %256 = vmatprep.subr.mxu0 0.0
  %257 = vmatpush2.msra.mxu0 0.0
  %258 = vmatprep.subr.mxu0 0.0
  %259 = vmatpush2.msra.mxu0 0.0
  %260 = vmatprep.mubr.f32.mxu0 0.0
  %261 = vmatmul.mubr.f32.gmra.mxu0 %v188
  %v262 = vpop.f32.mrf.mxu0
  %v263 = vadd.f32 %v185, %v262
  %v264 = vpop.f32.mrf.mxu0
  %265 = vmatprep.mubr.f32.mxu0 0.0
  %266 = vmatmul.mubr.f32.gmra.mxu0 %v191
  %v267 = vpop.f32.mrf.mxu0
  %v268 = vadd.f32 %v185, %v267
  %v269 = vpop.f32.mrf.mxu0
  %270 = vmatprep.mubr.f32.mxu0 0.0
  %271 = vmatmul.mubr.f32.gmra.mxu0 %v194
  %v272 = vpop.f32.mrf.mxu0
  %v273 = vadd.f32 %v185, %v272
  %v274 = vpop.f32.mrf.mxu0
  %275 = vdwg.mxu0
  %v276 = vmax.f32 %v263, 0.0
  %v277 = vmax.f32 %v268, 0.0
  %v278 = vmax.f32 %v273, 0.0
  %v282 = vrot.slane %v276, 6
  %v283 = vrot.slane %v277, 6
  %v284 = vsel %vm17, %v282, %v283
  %v285 = vrot.slane %v278, 6
  %v286 = vsel %vm17, %v283, %v285
  %v290 = vsel %vm17, 0.0, %v282
  %vm291 = vcmask 1045504
  %v292 = vsel %vm291, %v278, 0.0
  %v293 = vmax.f32 %v290, %v276
  %v294 = vmax.f32 %v284, %v277
  %v295 = vmax.f32 %v286, %v292
  %v296 = vld [vmem:[%s1 + $0x28] sm:$0xff]
  %v297 = vld [vmem:[%s1 + $0x30] sm:$0xff]
  %v298 = vld [vmem:[%s1 + $0x38] sm:$0xff]
  %v299 = vld [vmem:[%s1 + $0x40] sm:$0x1]
  %v300 = vld [vmem:[%s1 + $0x48] sm:$0xff]
  %v301 = vld [vmem:[%s1 + $0x50] sm:$0xff]
  %v302 = vld [vmem:[%s1 + $0x58] sm:$0xff]
  %v303 = vld [vmem:[%s1 + $0x60] sm:$0xff]
  %v304 = vld [vmem:[%s1 + $0x68] sm:$0x1]
  %v305 = vlaneseq
  %v306 = vshrl.u32 %v305, 7
  %v307 = vsub.s32 0, %v306
  %v308 = vrot.slane %v299, %v307
  %v310 = vsel %vm43, %v293, 0
  %v313 = vsel %vm43, %v294, 0
  %v316 = vsel %vm43, %v295, 0
  %318 = vmatprep.subr.mxu0 0.0
  %319 = vmatpush1.msra.mxu0 0.0
  %320 = vmatprep.subr.mxu0 0.0
  %321 = vmatpush1.msra.mxu0 0.0
  %322 = vmatprep.subr.mxu0 0.0
  %323 = vmatpush1.msra.mxu0 0.0
  %324 = vmatprep.subr.mxu0 0.0
  %325 = vmatpush1.msra.mxu0 0.0
  %326 = vmatprep.subr.mxu0 0.0
  %327 = vmatpush1.msra.mxu0 0.0
  %328 = vmatprep.subr.mxu0 0.0
  %329 = vmatpush1.msra.mxu0 0.0
  %330 = vmatprep.subr.mxu0 0.0
  %331 = vmatpush1.msra.mxu0 0.0
  %332 = vmatprep.subr.mxu0 0.0
  %333 = vmatpush1.msra.mxu0 0.0
  %334 = vmatprep.subr.mxu0 0.0
  %335 = vmatpush1.msra.mxu0 0.0
  %336 = vmatprep.subr.mxu0 0.0
  %337 = vmatpush1.msra.mxu0 0.0
  %338 = vmatprep.subr.mxu0 0.0
  %339 = vmatpush1.msra.mxu0 0.0
  %340 = vmatprep.subr.mxu0 0.0
  %341 = vmatpush1.msra.mxu0 0.0
  %342 = vmatprep.subr.mxu0 0.0
  %343 = vmatpush1.msra.mxu0 0.0
  %344 = vmatprep.subr.mxu0 0.0
  %345 = vmatpush1.msra.mxu0 0.0
  %346 = vmatprep.subr.mxu0 0.0
  %347 = vmatpush1.msra.mxu0 0.0
  %348 = vmatprep.subr.mxu0 0.0
  %349 = vmatpush1.msra.mxu0 %v296
  %350 = vmatprep.subr.mxu0 0.0
  %351 = vmatpush2.msra.mxu0 0.0
  %352 = vmatprep.subr.mxu0 0.0
  %353 = vmatpush2.msra.mxu0 0.0
  %354 = vmatprep.subr.mxu0 0.0
  %355 = vmatpush2.msra.mxu0 0.0
  %356 = vmatprep.subr.mxu0 0.0
  %357 = vmatpush2.msra.mxu0 0.0
  %358 = vmatprep.subr.mxu0 0.0
  %359 = vmatpush2.msra.mxu0 0.0
  %360 = vmatprep.subr.mxu0 0.0
  %361 = vmatpush2.msra.mxu0 0.0
  %362 = vmatprep.subr.mxu0 0.0
  %363 = vmatpush2.msra.mxu0 0.0
  %364 = vmatprep.subr.mxu0 0.0
  %365 = vmatpush2.msra.mxu0 0.0
  %366 = vmatprep.subr.mxu0 0.0
  %367 = vmatpush2.msra.mxu0 0.0
  %368 = vmatprep.subr.mxu0 0.0
  %369 = vmatpush2.msra.mxu0 0.0
  %370 = vmatprep.subr.mxu0 0.0
  %371 = vmatpush2.msra.mxu0 0.0
  %372 = vmatprep.subr.mxu0 0.0
  %373 = vmatpush2.msra.mxu0 0.0
  %374 = vmatprep.subr.mxu0 0.0
  %375 = vmatpush2.msra.mxu0 0.0
  %376 = vmatprep.subr.mxu0 0.0
  %377 = vmatpush2.msra.mxu0 0.0
  %378 = vmatprep.subr.mxu0 0.0
  %379 = vmatpush2.msra.mxu0 0.0
  %380 = vmatprep.subr.mxu0 0.0
  %381 = vmatpush2.msra.mxu0 0.0
  %382 = vmatprep.mubr.f32.mxu0 0.0
  %383 = vmatmul.mubr.f32.gmra.mxu0 %v310
  %v384 = vpop.f32.mrf.mxu0
  %v385 = vadd.f32 %v308, %v384
  %v386 = vpop.f32.mrf.mxu0
  %387 = vmatprep.mubr.f32.mxu0 0.0
  %388 = vmatmul.mubr.f32.gmra.mxu0 %v313
  %v389 = vpop.f32.mrf.mxu0
  %v390 = vadd.f32 %v308, %v389
  %v391 = vpop.f32.mrf.mxu0
  %392 = vmatprep.mubr.f32.mxu0 0.0
  %393 = vmatmul.mubr.f32.gmra.mxu0 %v316
  %v394 = vpop.f32.mrf.mxu0
  %v395 = vadd.f32 %v308, %v394
  %v396 = vpop.f32.mrf.mxu0
  %397 = vdwg.mxu0
  %v398 = vsel %vm186, 0.0, 0
  %400 = vmatprep.subr.mxu0 0.0
  %401 = vmatpush1.msra.mxu0 0.0
  %402 = vmatprep.subr.mxu0 0.0
  %403 = vmatpush1.msra.mxu0 0.0
  %404 = vmatprep.subr.mxu0 0.0
  %405 = vmatpush1.msra.mxu0 0.0
  %406 = vmatprep.subr.mxu0 0.0
  %407 = vmatpush1.msra.mxu0 0.0
  %408 = vmatprep.subr.mxu0 0.0
  %409 = vmatpush1.msra.mxu0 0.0
  %410 = vmatprep.subr.mxu0 0.0
  %411 = vmatpush1.msra.mxu0 0.0
  %412 = vmatprep.subr.mxu0 0.0
  %413 = vmatpush1.msra.mxu0 0.0
  %414 = vmatprep.subr.mxu0 0.0
  %415 = vmatpush1.msra.mxu0 0.0
  %416 = vmatprep.subr.mxu0 0.0
  %417 = vmatpush1.msra.mxu0 0.0
  %418 = vmatprep.subr.mxu0 0.0
  %419 = vmatpush1.msra.mxu0 0.0
  %420 = vmatprep.subr.mxu0 0.0
  %421 = vmatpush1.msra.mxu0 0.0
  %422 = vmatprep.subr.mxu0 0.0
  %423 = vmatpush1.msra.mxu0 0.0
  %424 = vmatprep.subr.mxu0 0.0
  %425 = vmatpush1.msra.mxu0 0.0
  %426 = vmatprep.subr.mxu0 0.0
  %427 = vmatpush1.msra.mxu0 0.0
  %428 = vmatprep.subr.mxu0 0.0
  %429 = vmatpush1.msra.mxu0 %v298
  %430 = vmatprep.subr.mxu0 0.0
  %431 = vmatpush1.msra.mxu0 %v297
  %432 = vmatprep.subr.mxu0 0.0
  %433 = vmatpush2.msra.mxu0 0.0
  %434 = vmatprep.subr.mxu0 0.0
  %435 = vmatpush2.msra.mxu0 0.0
  %436 = vmatprep.subr.mxu0 0.0
  %437 = vmatpush2.msra.mxu0 0.0
  %438 = vmatprep.subr.mxu0 0.0
  %439 = vmatpush2.msra.mxu0 0.0
  %440 = vmatprep.subr.mxu0 0.0
  %441 = vmatpush2.msra.mxu0 0.0
  %442 = vmatprep.subr.mxu0 0.0
  %443 = vmatpush2.msra.mxu0 0.0
  %444 = vmatprep.subr.mxu0 0.0
  %445 = vmatpush2.msra.mxu0 0.0
  %446 = vmatprep.subr.mxu0 0.0
  %447 = vmatpush2.msra.mxu0 0.0
  %448 = vmatprep.subr.mxu0 0.0
  %449 = vmatpush2.msra.mxu0 0.0
  %450 = vmatprep.subr.mxu0 0.0
  %451 = vmatpush2.msra.mxu0 0.0
  %452 = vmatprep.subr.mxu0 0.0
  %453 = vmatpush2.msra.mxu0 0.0
  %454 = vmatprep.subr.mxu0 0.0
  %455 = vmatpush2.msra.mxu0 0.0
  %456 = vmatprep.subr.mxu0 0.0
  %457 = vmatpush2.msra.mxu0 0.0
  %458 = vmatprep.subr.mxu0 0.0
  %459 = vmatpush2.msra.mxu0 0.0
  %460 = vmatprep.subr.mxu0 0.0
  %461 = vmatpush2.msra.mxu0 0.0
  %462 = vmatprep.subr.mxu0 0.0
  %463 = vmatpush2.msra.mxu0 0.0
  %464 = vmatprep.mubr.f32.mxu0 0.0
  %465 = vmatmul.mubr.f32.gmra.mxu0 %v398
  %v466 = vpop.f32.mrf.mxu0
  %v467 = vadd.f32 0.0, %v466
  %v468 = vpop.f32.mrf.mxu0
  %469 = vdwg.mxu0
  %v470 = vadd.f32 %v385, %v467
  %v471 = vxor.u32 %v470, 2147483648
  %v472 = vmul.f32 %v471, 1.442695
  %v473 = vpow.pop %v472
  %v474 = vadd.f32 %v473, 1.0
  %v475 = vrcp.pop %v474
  %v476 = vmul.f32 1.0, %v475
  %v477 = vtanh.pop %v470
  %v478 = vmul.f32 %v476, 0.0
  %480 = vrot.lane.b32.xlu0 %v477, 80
  %v481 = vpop.permute.xlu0 %480
  %v483 = vmul.f32 %v476, %v481
  %485 = vrot.lane.b32.xlu0 %v483, 16
  %v486 = vpop.permute.xlu0 %485
  %v488 = vadd.f32 %v478, %v486
  %v489 = vtanh.pop %v488
  %491 = vrot.lane.b32.xlu0 %v489, 16
  %v492 = vpop.permute.xlu0 %491
  %v494 = vmul.f32 %v476, %v492
  %v495 = vlaneseq
  %v496 = vshrl.u32 %v495, 7
  %v497 = vsub.s32 0, %v496
  %v498 = vrot.slane %v304, %v497
  %500 = vrot.lane.b32.xlu0 %v494, 96
  %v501 = vpop.permute.xlu0 %500
  %v502 = vsel %vm186, %v501, 0
  %504 = vmatprep.subr.mxu0 0.0
  %505 = vmatpush1.msra.mxu0 0.0
  %506 = vmatprep.subr.mxu0 0.0
  %507 = vmatpush1.msra.mxu0 0.0
  %508 = vmatprep.subr.mxu0 0.0
  %509 = vmatpush1.msra.mxu0 0.0
  %510 = vmatprep.subr.mxu0 0.0
  %511 = vmatpush1.msra.mxu0 0.0
  %512 = vmatprep.subr.mxu0 0.0
  %513 = vmatpush1.msra.mxu0 0.0
  %514 = vmatprep.subr.mxu0 0.0
  %515 = vmatpush1.msra.mxu0 0.0
  %516 = vmatprep.subr.mxu0 0.0
  %517 = vmatpush1.msra.mxu0 0.0
  %518 = vmatprep.subr.mxu0 0.0
  %519 = vmatpush1.msra.mxu0 0.0
  %520 = vmatprep.subr.mxu0 0.0
  %521 = vmatpush1.msra.mxu0 0.0
  %522 = vmatprep.subr.mxu0 0.0
  %523 = vmatpush1.msra.mxu0 0.0
  %524 = vmatprep.subr.mxu0 0.0
  %525 = vmatpush1.msra.mxu0 0.0
  %526 = vmatprep.subr.mxu0 0.0
  %527 = vmatpush1.msra.mxu0 0.0
  %528 = vmatprep.subr.mxu0 0.0
  %529 = vmatpush1.msra.mxu0 0.0
  %530 = vmatprep.subr.mxu0 0.0
  %531 = vmatpush1.msra.mxu0 0.0
  %532 = vmatprep.subr.mxu0 0.0
  %533 = vmatpush1.msra.mxu0 %v301
  %534 = vmatprep.subr.mxu0 0.0
  %535 = vmatpush1.msra.mxu0 %v300
  %536 = vmatprep.subr.mxu0 0.0
  %537 = vmatpush2.msra.mxu0 0.0
  %538 = vmatprep.subr.mxu0 0.0
  %539 = vmatpush2.msra.mxu0 0.0
  %540 = vmatprep.subr.mxu0 0.0
  %541 = vmatpush2.msra.mxu0 0.0
  %542 = vmatprep.subr.mxu0 0.0
  %543 = vmatpush2.msra.mxu0 0.0
  %544 = vmatprep.subr.mxu0 0.0
  %545 = vmatpush2.msra.mxu0 0.0
  %546 = vmatprep.subr.mxu0 0.0
  %547 = vmatpush2.msra.mxu0 0.0
  %548 = vmatprep.subr.mxu0 0.0
  %549 = vmatpush2.msra.mxu0 0.0
  %550 = vmatprep.subr.mxu0 0.0
  %551 = vmatpush2.msra.mxu0 0.0
  %552 = vmatprep.subr.mxu0 0.0
  %553 = vmatpush2.msra.mxu0 0.0
  %554 = vmatprep.subr.mxu0 0.0
  %555 = vmatpush2.msra.mxu0 0.0
  %556 = vmatprep.subr.mxu0 0.0
  %557 = vmatpush2.msra.mxu0 0.0
  %558 = vmatprep.subr.mxu0 0.0
  %559 = vmatpush2.msra.mxu0 0.0
  %560 = vmatprep.subr.mxu0 0.0
  %561 = vmatpush2.msra.mxu0 0.0
  %562 = vmatprep.subr.mxu0 0.0
  %563 = vmatpush2.msra.mxu0 0.0
  %564 = vmatprep.subr.mxu0 0.0
  %565 = vmatpush2.msra.mxu0 0.0
  %566 = vmatprep.subr.mxu0 0.0
  %567 = vmatpush2.msra.mxu0 0.0
  %568 = vmatprep.mubr.f32.mxu0 0.0
  %569 = vmatmul.mubr.f32.gmra.mxu0 %v502
  %v570 = vpop.f32.mrf.mxu0
  %v571 = vadd.f32 %v498, %v570
  %v572 = vpop.f32.mrf.mxu0
  %573 = vdwg.mxu0
  %574 = vmatprep.subr.mxu0 0.0
  %575 = vmatpush1.msra.mxu0 0.0
  %576 = vmatprep.subr.mxu0 0.0
  %577 = vmatpush1.msra.mxu0 0.0
  %578 = vmatprep.subr.mxu0 0.0
  %579 = vmatpush1.msra.mxu0 0.0
  %580 = vmatprep.subr.mxu0 0.0
  %581 = vmatpush1.msra.mxu0 0.0
  %582 = vmatprep.subr.mxu0 0.0
  %583 = vmatpush1.msra.mxu0 0.0
  %584 = vmatprep.subr.mxu0 0.0
  %585 = vmatpush1.msra.mxu0 0.0
  %586 = vmatprep.subr.mxu0 0.0
  %587 = vmatpush1.msra.mxu0 0.0
  %588 = vmatprep.subr.mxu0 0.0
  %589 = vmatpush1.msra.mxu0 0.0
  %590 = vmatprep.subr.mxu0 0.0
  %591 = vmatpush1.msra.mxu0 0.0
  %592 = vmatprep.subr.mxu0 0.0
  %593 = vmatpush1.msra.mxu0 0.0
  %594 = vmatprep.subr.mxu0 0.0
  %595 = vmatpush1.msra.mxu0 0.0
  %596 = vmatprep.subr.mxu0 0.0
  %597 = vmatpush1.msra.mxu0 0.0
  %598 = vmatprep.subr.mxu0 0.0
  %599 = vmatpush1.msra.mxu0 0.0
  %600 = vmatprep.subr.mxu0 0.0
  %601 = vmatpush1.msra.mxu0 0.0
  %602 = vmatprep.subr.mxu0 0.0
  %603 = vmatpush1.msra.mxu0 %v303
  %604 = vmatprep.subr.mxu0 0.0
  %605 = vmatpush1.msra.mxu0 %v302
  %606 = vmatprep.subr.mxu0 0.0
  %607 = vmatpush2.msra.mxu0 0.0
  %608 = vmatprep.subr.mxu0 0.0
  %609 = vmatpush2.msra.mxu0 0.0
  %610 = vmatprep.subr.mxu0 0.0
  %611 = vmatpush2.msra.mxu0 0.0
  %612 = vmatprep.subr.mxu0 0.0
  %613 = vmatpush2.msra.mxu0 0.0
  %614 = vmatprep.subr.mxu0 0.0
  %615 = vmatpush2.msra.mxu0 0.0
  %616 = vmatprep.subr.mxu0 0.0
  %617 = vmatpush2.msra.mxu0 0.0
  %618 = vmatprep.subr.mxu0 0.0
  %619 = vmatpush2.msra.mxu0 0.0
  %620 = vmatprep.subr.mxu0 0.0
  %621 = vmatpush2.msra.mxu0 0.0
  %622 = vmatprep.subr.mxu0 0.0
  %623 = vmatpush2.msra.mxu0 0.0
  %624 = vmatprep.subr.mxu0 0.0
  %625 = vmatpush2.msra.mxu0 0.0
  %626 = vmatprep.subr.mxu0 0.0
  %627 = vmatpush2.msra.mxu0 0.0
  %628 = vmatprep.subr.mxu0 0.0
  %629 = vmatpush2.msra.mxu0 0.0
  %630 = vmatprep.subr.mxu0 0.0
  %631 = vmatpush2.msra.mxu0 0.0
  %632 = vmatprep.subr.mxu0 0.0
  %633 = vmatpush2.msra.mxu0 0.0
  %634 = vmatprep.subr.mxu0 0.0
  %635 = vmatpush2.msra.mxu0 0.0
  %636 = vmatprep.subr.mxu0 0.0
  %637 = vmatpush2.msra.mxu0 0.0
  %638 = vmatprep.mubr.f32.mxu0 0.0
  %639 = vmatmul.mubr.f32.gmra.mxu0 %v398
  %v640 = vpop.f32.mrf.mxu0
  %v641 = vadd.f32 0.0, %v640
  %v642 = vpop.f32.mrf.mxu0
  %643 = vdwg.mxu0
  %v644 = vadd.f32 %v571, %v641
  %v645 = vxor.u32 %v644, 2147483648
  %v646 = vmul.f32 %v645, 1.442695
  %v647 = vpow.pop %v646
  %v648 = vadd.f32 %v647, 1.0
  %v649 = vrcp.pop %v648
  %v650 = vmul.f32 1.0, %v649
  %v651 = vtanh.pop %v644
  %v652 = vmul.f32 %v650, 0.0
  %654 = vrot.lane.b32.xlu0 %v651, 80
  %v655 = vpop.permute.xlu0 %654
  %v657 = vmul.f32 %v650, %v655
  %659 = vrot.lane.b32.xlu0 %v657, 16
  %v660 = vpop.permute.xlu0 %659
  %v662 = vadd.f32 %v652, %v660
  %v663 = vtanh.pop %v662
  %665 = vrot.lane.b32.xlu0 %v663, 16
  %v666 = vpop.permute.xlu0 %665
  %v668 = vmul.f32 %v650, %v666
  %669 = vmatprep.subr.mxu0 0.0
  %670 = vmatpush1.msra.mxu0 0.0
  %671 = vmatprep.subr.mxu0 0.0
  %672 = vmatpush1.msra.mxu0 0.0
  %673 = vmatprep.subr.mxu0 0.0
  %674 = vmatpush1.msra.mxu0 0.0
  %675 = vmatprep.subr.mxu0 0.0
  %676 = vmatpush1.msra.mxu0 0.0
  %677 = vmatprep.subr.mxu0 0.0
  %678 = vmatpush1.msra.mxu0 0.0
  %679 = vmatprep.subr.mxu0 0.0
  %680 = vmatpush1.msra.mxu0 0.0
  %681 = vmatprep.subr.mxu0 0.0
  %682 = vmatpush1.msra.mxu0 0.0
  %683 = vmatprep.subr.mxu0 0.0
  %684 = vmatpush1.msra.mxu0 0.0
  %685 = vmatprep.subr.mxu0 0.0
  %686 = vmatpush1.msra.mxu0 0.0
  %687 = vmatprep.subr.mxu0 0.0
  %688 = vmatpush1.msra.mxu0 0.0
  %689 = vmatprep.subr.mxu0 0.0
  %690 = vmatpush1.msra.mxu0 0.0
  %691 = vmatprep.subr.mxu0 0.0
  %692 = vmatpush1.msra.mxu0 0.0
  %693 = vmatprep.subr.mxu0 0.0
  %694 = vmatpush1.msra.mxu0 0.0
  %695 = vmatprep.subr.mxu0 0.0
  %696 = vmatpush1.msra.mxu0 0.0
  %697 = vmatprep.subr.mxu0 0.0
  %698 = vmatpush1.msra.mxu0 %v298
  %699 = vmatprep.subr.mxu0 0.0
  %700 = vmatpush1.msra.mxu0 %v297
  %701 = vmatprep.subr.mxu0 0.0
  %702 = vmatpush2.msra.mxu0 0.0
  %703 = vmatprep.subr.mxu0 0.0
  %704 = vmatpush2.msra.mxu0 0.0
  %705 = vmatprep.subr.mxu0 0.0
  %706 = vmatpush2.msra.mxu0 0.0
  %707 = vmatprep.subr.mxu0 0.0
  %708 = vmatpush2.msra.mxu0 0.0
  %709 = vmatprep.subr.mxu0 0.0
  %710 = vmatpush2.msra.mxu0 0.0
  %711 = vmatprep.subr.mxu0 0.0
  %712 = vmatpush2.msra.mxu0 0.0
  %713 = vmatprep.subr.mxu0 0.0
  %714 = vmatpush2.msra.mxu0 0.0
  %715 = vmatprep.subr.mxu0 0.0
  %716 = vmatpush2.msra.mxu0 0.0
  %717 = vmatprep.subr.mxu0 0.0
  %718 = vmatpush2.msra.mxu0 0.0
  %719 = vmatprep.subr.mxu0 0.0
  %720 = vmatpush2.msra.mxu0 0.0
  %721 = vmatprep.subr.mxu0 0.0
  %722 = vmatpush2.msra.mxu0 0.0
  %723 = vmatprep.subr.mxu0 0.0
  %724 = vmatpush2.msra.mxu0 0.0
  %725 = vmatprep.subr.mxu0 0.0
  %726 = vmatpush2.msra.mxu0 0.0
  %727 = vmatprep.subr.mxu0 0.0
  %728 = vmatpush2.msra.mxu0 0.0
  %729 = vmatprep.subr.mxu0 0.0
  %730 = vmatpush2.msra.mxu0 0.0
  %731 = vmatprep.subr.mxu0 0.0
  %732 = vmatpush2.msra.mxu0 0.0
  %733 = vmatprep.mubr.f32.mxu0 0.0
  %734 = vmatmul.mubr.f32.gmra.mxu0 %v502
  %v735 = vpop.f32.mrf.mxu0
  %v736 = vadd.f32 0.0, %v735
  %v737 = vpop.f32.mrf.mxu0
  %738 = vdwg.mxu0
  %v740 = vrot.slane %v736, 6
  %v742 = vadd.f32 %v385, %v740
  %v743 = vxor.u32 %v742, 2147483648
  %v744 = vmul.f32 %v743, 1.442695
  %v745 = vpow.pop %v744
  %v746 = vadd.f32 %v745, 1.0
  %v747 = vrcp.pop %v746
  %v748 = vmul.f32 1.0, %v747
  %v749 = vtanh.pop %v742
  %v751 = vrot.slane %v488, 6
  %v753 = vmul.f32 %v748, %v751
  %755 = vrot.lane.b32.xlu0 %v749, 80
  %v756 = vpop.permute.xlu0 %755
  %v758 = vmul.f32 %v748, %v756
  %760 = vrot.lane.b32.xlu0 %v758, 16
  %v761 = vpop.permute.xlu0 %760
  %v763 = vadd.f32 %v753, %v761
  %v764 = vtanh.pop %v763
  %766 = vrot.lane.b32.xlu0 %v764, 16
  %v767 = vpop.permute.xlu0 %766
  %v769 = vmul.f32 %v748, %v767
  %v771 = vrot.slane %v769, 2
  %772 = vrot.lane.b32.xlu0 %v771, 96
  %v773 = vpop.permute.xlu0 %772
  %v774 = vsel %vm186, %v773, 0
  %776 = vmatprep.subr.mxu0 0.0
  %777 = vmatpush1.msra.mxu0 0.0
  %778 = vmatprep.subr.mxu0 0.0
  %779 = vmatpush1.msra.mxu0 0.0
  %780 = vmatprep.subr.mxu0 0.0
  %781 = vmatpush1.msra.mxu0 0.0
  %782 = vmatprep.subr.mxu0 0.0
  %783 = vmatpush1.msra.mxu0 0.0
  %784 = vmatprep.subr.mxu0 0.0
  %785 = vmatpush1.msra.mxu0 0.0
  %786 = vmatprep.subr.mxu0 0.0
  %787 = vmatpush1.msra.mxu0 0.0
  %788 = vmatprep.subr.mxu0 0.0
  %789 = vmatpush1.msra.mxu0 0.0
  %790 = vmatprep.subr.mxu0 0.0
  %791 = vmatpush1.msra.mxu0 0.0
  %792 = vmatprep.subr.mxu0 0.0
  %793 = vmatpush1.msra.mxu0 0.0
  %794 = vmatprep.subr.mxu0 0.0
  %795 = vmatpush1.msra.mxu0 0.0
  %796 = vmatprep.subr.mxu0 0.0
  %797 = vmatpush1.msra.mxu0 0.0
  %798 = vmatprep.subr.mxu0 0.0
  %799 = vmatpush1.msra.mxu0 0.0
  %800 = vmatprep.subr.mxu0 0.0
  %801 = vmatpush1.msra.mxu0 0.0
  %802 = vmatprep.subr.mxu0 0.0
  %803 = vmatpush1.msra.mxu0 0.0
  %804 = vmatprep.subr.mxu0 0.0
  %805 = vmatpush1.msra.mxu0 %v301
  %806 = vmatprep.subr.mxu0 0.0
  %807 = vmatpush1.msra.mxu0 %v300
  %808 = vmatprep.subr.mxu0 0.0
  %809 = vmatpush2.msra.mxu0 0.0
  %810 = vmatprep.subr.mxu0 0.0
  %811 = vmatpush2.msra.mxu0 0.0
  %812 = vmatprep.subr.mxu0 0.0
  %813 = vmatpush2.msra.mxu0 0.0
  %814 = vmatprep.subr.mxu0 0.0
  %815 = vmatpush2.msra.mxu0 0.0
  %816 = vmatprep.subr.mxu0 0.0
  %817 = vmatpush2.msra.mxu0 0.0
  %818 = vmatprep.subr.mxu0 0.0
  %819 = vmatpush2.msra.mxu0 0.0
  %820 = vmatprep.subr.mxu0 0.0
  %821 = vmatpush2.msra.mxu0 0.0
  %822 = vmatprep.subr.mxu0 0.0
  %823 = vmatpush2.msra.mxu0 0.0
  %824 = vmatprep.subr.mxu0 0.0
  %825 = vmatpush2.msra.mxu0 0.0
  %826 = vmatprep.subr.mxu0 0.0
  %827 = vmatpush2.msra.mxu0 0.0
  %828 = vmatprep.subr.mxu0 0.0
  %829 = vmatpush2.msra.mxu0 0.0
  %830 = vmatprep.subr.mxu0 0.0
  %831 = vmatpush2.msra.mxu0 0.0
  %832 = vmatprep.subr.mxu0 0.0
  %833 = vmatpush2.msra.mxu0 0.0
  %834 = vmatprep.subr.mxu0 0.0
  %835 = vmatpush2.msra.mxu0 0.0
  %836 = vmatprep.subr.mxu0 0.0
  %837 = vmatpush2.msra.mxu0 0.0
  %838 = vmatprep.subr.mxu0 0.0
  %839 = vmatpush2.msra.mxu0 0.0
  %840 = vmatprep.mubr.f32.mxu0 0.0
  %841 = vmatmul.mubr.f32.gmra.mxu0 %v774
  %v842 = vpop.f32.mrf.mxu0
  %v843 = vadd.f32 %v498, %v842
  %v844 = vpop.f32.mrf.mxu0
  %845 = vdwg.mxu0
  %847 = vrot.lane.b32.xlu0 %v668, 96
  %v848 = vpop.permute.xlu0 %847
  %v849 = vsel %vm186, %v848, 0
  %851 = vmatprep.subr.mxu0 0.0
  %852 = vmatpush1.msra.mxu0 0.0
  %853 = vmatprep.subr.mxu0 0.0
  %854 = vmatpush1.msra.mxu0 0.0
  %855 = vmatprep.subr.mxu0 0.0
  %856 = vmatpush1.msra.mxu0 0.0
  %857 = vmatprep.subr.mxu0 0.0
  %858 = vmatpush1.msra.mxu0 0.0
  %859 = vmatprep.subr.mxu0 0.0
  %860 = vmatpush1.msra.mxu0 0.0
  %861 = vmatprep.subr.mxu0 0.0
  %862 = vmatpush1.msra.mxu0 0.0
  %863 = vmatprep.subr.mxu0 0.0
  %864 = vmatpush1.msra.mxu0 0.0
  %865 = vmatprep.subr.mxu0 0.0
  %866 = vmatpush1.msra.mxu0 0.0
  %867 = vmatprep.subr.mxu0 0.0
  %868 = vmatpush1.msra.mxu0 0.0
  %869 = vmatprep.subr.mxu0 0.0
  %870 = vmatpush1.msra.mxu0 0.0
  %871 = vmatprep.subr.mxu0 0.0
  %872 = vmatpush1.msra.mxu0 0.0
  %873 = vmatprep.subr.mxu0 0.0
  %874 = vmatpush1.msra.mxu0 0.0
  %875 = vmatprep.subr.mxu0 0.0
  %876 = vmatpush1.msra.mxu0 0.0
  %877 = vmatprep.subr.mxu0 0.0
  %878 = vmatpush1.msra.mxu0 0.0
  %879 = vmatprep.subr.mxu0 0.0
  %880 = vmatpush1.msra.mxu0 %v303
  %881 = vmatprep.subr.mxu0 0.0
  %882 = vmatpush1.msra.mxu0 %v302
  %883 = vmatprep.subr.mxu0 0.0
  %884 = vmatpush2.msra.mxu0 0.0
  %885 = vmatprep.subr.mxu0 0.0
  %886 = vmatpush2.msra.mxu0 0.0
  %887 = vmatprep.subr.mxu0 0.0
  %888 = vmatpush2.msra.mxu0 0.0
  %889 = vmatprep.subr.mxu0 0.0
  %890 = vmatpush2.msra.mxu0 0.0
  %891 = vmatprep.subr.mxu0 0.0
  %892 = vmatpush2.msra.mxu0 0.0
  %893 = vmatprep.subr.mxu0 0.0
  %894 = vmatpush2.msra.mxu0 0.0
  %895 = vmatprep.subr.mxu0 0.0
  %896 = vmatpush2.msra.mxu0 0.0
  %897 = vmatprep.subr.mxu0 0.0
  %898 = vmatpush2.msra.mxu0 0.0
  %899 = vmatprep.subr.mxu0 0.0
  %900 = vmatpush2.msra.mxu0 0.0
  %901 = vmatprep.subr.mxu0 0.0
  %902 = vmatpush2.msra.mxu0 0.0
  %903 = vmatprep.subr.mxu0 0.0
  %904 = vmatpush2.msra.mxu0 0.0
  %905 = vmatprep.subr.mxu0 0.0
  %906 = vmatpush2.msra.mxu0 0.0
  %907 = vmatprep.subr.mxu0 0.0
  %908 = vmatpush2.msra.mxu0 0.0
  %909 = vmatprep.subr.mxu0 0.0
  %910 = vmatpush2.msra.mxu0 0.0
  %911 = vmatprep.subr.mxu0 0.0
  %912 = vmatpush2.msra.mxu0 0.0
  %913 = vmatprep.subr.mxu0 0.0
  %914 = vmatpush2.msra.mxu0 0.0
  %915 = vmatprep.mubr.f32.mxu0 0.0
  %916 = vmatmul.mubr.f32.gmra.mxu0 %v849
  %v917 = vpop.f32.mrf.mxu0
  %v918 = vadd.f32 0.0, %v917
  %v919 = vpop.f32.mrf.mxu0
  %920 = vdwg.mxu0
  %v921 = vadd.f32 %v843, %v918
  %v922 = vxor.u32 %v921, 2147483648
  %v923 = vmul.f32 %v922, 1.442695
  %v924 = vpow.pop %v923
  %v925 = vadd.f32 %v924, 1.0
  %v926 = vrcp.pop %v925
  %v927 = vmul.f32 1.0, %v926
  %v928 = vtanh.pop %v921
  %v929 = vmul.f32 %v927, %v662
  %931 = vrot.lane.b32.xlu0 %v928, 80
  %v932 = vpop.permute.xlu0 %931
  %v934 = vmul.f32 %v927, %v932
  %936 = vrot.lane.b32.xlu0 %v934, 16
  %v937 = vpop.permute.xlu0 %936
  %v939 = vadd.f32 %v929, %v937
  %v940 = vtanh.pop %v939
  %942 = vrot.lane.b32.xlu0 %v940, 16
  %v943 = vpop.permute.xlu0 %942
  %v945 = vmul.f32 %v927, %v943
  %946 = vmatprep.subr.mxu0 0.0
  %947 = vmatpush1.msra.mxu0 0.0
  %948 = vmatprep.subr.mxu0 0.0
  %949 = vmatpush1.msra.mxu0 0.0
  %950 = vmatprep.subr.mxu0 0.0
  %951 = vmatpush1.msra.mxu0 0.0
  %952 = vmatprep.subr.mxu0 0.0
  %953 = vmatpush1.msra.mxu0 0.0
  %954 = vmatprep.subr.mxu0 0.0
  %955 = vmatpush1.msra.mxu0 0.0
  %956 = vmatprep.subr.mxu0 0.0
  %957 = vmatpush1.msra.mxu0 0.0
  %958 = vmatprep.subr.mxu0 0.0
  %959 = vmatpush1.msra.mxu0 0.0
  %960 = vmatprep.subr.mxu0 0.0
  %961 = vmatpush1.msra.mxu0 0.0
  %962 = vmatprep.subr.mxu0 0.0
  %963 = vmatpush1.msra.mxu0 0.0
  %964 = vmatprep.subr.mxu0 0.0
  %965 = vmatpush1.msra.mxu0 0.0
  %966 = vmatprep.subr.mxu0 0.0
  %967 = vmatpush1.msra.mxu0 0.0
  %968 = vmatprep.subr.mxu0 0.0
  %969 = vmatpush1.msra.mxu0 0.0
  %970 = vmatprep.subr.mxu0 0.0
  %971 = vmatpush1.msra.mxu0 0.0
  %972 = vmatprep.subr.mxu0 0.0
  %973 = vmatpush1.msra.mxu0 0.0
  %974 = vmatprep.subr.mxu0 0.0
  %975 = vmatpush1.msra.mxu0 %v298
  %976 = vmatprep.subr.mxu0 0.0
  %977 = vmatpush1.msra.mxu0 %v297
  %978 = vmatprep.subr.mxu0 0.0
  %979 = vmatpush2.msra.mxu0 0.0
  %980 = vmatprep.subr.mxu0 0.0
  %981 = vmatpush2.msra.mxu0 0.0
  %982 = vmatprep.subr.mxu0 0.0
  %983 = vmatpush2.msra.mxu0 0.0
  %984 = vmatprep.subr.mxu0 0.0
  %985 = vmatpush2.msra.mxu0 0.0
  %986 = vmatprep.subr.mxu0 0.0
  %987 = vmatpush2.msra.mxu0 0.0
  %988 = vmatprep.subr.mxu0 0.0
  %989 = vmatpush2.msra.mxu0 0.0
  %990 = vmatprep.subr.mxu0 0.0
  %991 = vmatpush2.msra.mxu0 0.0
  %992 = vmatprep.subr.mxu0 0.0
  %993 = vmatpush2.msra.mxu0 0.0
  %994 = vmatprep.subr.mxu0 0.0
  %995 = vmatpush2.msra.mxu0 0.0
  %996 = vmatprep.subr.mxu0 0.0
  %997 = vmatpush2.msra.mxu0 0.0
  %998 = vmatprep.subr.mxu0 0.0
  %999 = vmatpush2.msra.mxu0 0.0
  %1000 = vmatprep.subr.mxu0 0.0
  %1001 = vmatpush2.msra.mxu0 0.0
  %1002 = vmatprep.subr.mxu0 0.0
  %1003 = vmatpush2.msra.mxu0 0.0
  %1004 = vmatprep.subr.mxu0 0.0
  %1005 = vmatpush2.msra.mxu0 0.0
  %1006 = vmatprep.subr.mxu0 0.0
  %1007 = vmatpush2.msra.mxu0 0.0
  %1008 = vmatprep.subr.mxu0 0.0
  %1009 = vmatpush2.msra.mxu0 0.0
  %1010 = vmatprep.mubr.f32.mxu0 0.0
  %1011 = vmatmul.mubr.f32.gmra.mxu0 %v774
  %v1012 = vpop.f32.mrf.mxu0
  %v1013 = vadd.f32 0.0, %v1012
  %v1014 = vpop.f32.mrf.mxu0
  %1015 = vdwg.mxu0
  %v1017 = vrot.slane %v1013, 4
  %v1019 = vadd.f32 %v385, %v1017
  %v1020 = vxor.u32 %v1019, 2147483648
  %v1021 = vmul.f32 %v1020, 1.442695
  %v1022 = vpow.pop %v1021
  %v1023 = vadd.f32 %v1022, 1.0
  %v1024 = vrcp.pop %v1023
  %v1025 = vmul.f32 1.0, %v1024
  %v1026 = vtanh.pop %v1019
  %v1028 = vrot.slane %v763, 6
  %v1030 = vmul.f32 %v1025, %v1028
  %1032 = vrot.lane.b32.xlu0 %v1026, 80
  %v1033 = vpop.permute.xlu0 %1032
  %v1035 = vmul.f32 %v1025, %v1033
  %1037 = vrot.lane.b32.xlu0 %v1035, 16
  %v1038 = vpop.permute.xlu0 %1037
  %v1040 = vadd.f32 %v1030, %v1038
  %v1041 = vtanh.pop %v1040
  %1043 = vrot.lane.b32.xlu0 %v1041, 16
  %v1044 = vpop.permute.xlu0 %1043
  %v1046 = vmul.f32 %v1025, %v1044
  %v1048 = vrot.slane %v1046, 4
  %1049 = vrot.lane.b32.xlu0 %v1048, 96
  %v1050 = vpop.permute.xlu0 %1049
  %v1051 = vsel %vm186, %v1050, 0
  %1053 = vmatprep.subr.mxu0 0.0
  %1054 = vmatpush1.msra.mxu0 0.0
  %1055 = vmatprep.subr.mxu0 0.0
  %1056 = vmatpush1.msra.mxu0 0.0
  %1057 = vmatprep.subr.mxu0 0.0
  %1058 = vmatpush1.msra.mxu0 0.0
  %1059 = vmatprep.subr.mxu0 0.0
  %1060 = vmatpush1.msra.mxu0 0.0
  %1061 = vmatprep.subr.mxu0 0.0
  %1062 = vmatpush1.msra.mxu0 0.0
  %1063 = vmatprep.subr.mxu0 0.0
  %1064 = vmatpush1.msra.mxu0 0.0
  %1065 = vmatprep.subr.mxu0 0.0
  %1066 = vmatpush1.msra.mxu0 0.0
  %1067 = vmatprep.subr.mxu0 0.0
  %1068 = vmatpush1.msra.mxu0 0.0
  %1069 = vmatprep.subr.mxu0 0.0
  %1070 = vmatpush1.msra.mxu0 0.0
  %1071 = vmatprep.subr.mxu0 0.0
  %1072 = vmatpush1.msra.mxu0 0.0
  %1073 = vmatprep.subr.mxu0 0.0
  %1074 = vmatpush1.msra.mxu0 0.0
  %1075 = vmatprep.subr.mxu0 0.0
  %1076 = vmatpush1.msra.mxu0 0.0
  %1077 = vmatprep.subr.mxu0 0.0
  %1078 = vmatpush1.msra.mxu0 0.0
  %1079 = vmatprep.subr.mxu0 0.0
  %1080 = vmatpush1.msra.mxu0 0.0
  %1081 = vmatprep.subr.mxu0 0.0
  %1082 = vmatpush1.msra.mxu0 %v301
  %1083 = vmatprep.subr.mxu0 0.0
  %1084 = vmatpush1.msra.mxu0 %v300
  %1085 = vmatprep.subr.mxu0 0.0
  %1086 = vmatpush2.msra.mxu0 0.0
  %1087 = vmatprep.subr.mxu0 0.0
  %1088 = vmatpush2.msra.mxu0 0.0
  %1089 = vmatprep.subr.mxu0 0.0
  %1090 = vmatpush2.msra.mxu0 0.0
  %1091 = vmatprep.subr.mxu0 0.0
  %1092 = vmatpush2.msra.mxu0 0.0
  %1093 = vmatprep.subr.mxu0 0.0
  %1094 = vmatpush2.msra.mxu0 0.0
  %1095 = vmatprep.subr.mxu0 0.0
  %1096 = vmatpush2.msra.mxu0 0.0
  %1097 = vmatprep.subr.mxu0 0.0
  %1098 = vmatpush2.msra.mxu0 0.0
  %1099 = vmatprep.subr.mxu0 0.0
  %1100 = vmatpush2.msra.mxu0 0.0
  %1101 = vmatprep.subr.mxu0 0.0
  %1102 = vmatpush2.msra.mxu0 0.0
  %1103 = vmatprep.subr.mxu0 0.0
  %1104 = vmatpush2.msra.mxu0 0.0
  %1105 = vmatprep.subr.mxu0 0.0
  %1106 = vmatpush2.msra.mxu0 0.0
  %1107 = vmatprep.subr.mxu0 0.0
  %1108 = vmatpush2.msra.mxu0 0.0
  %1109 = vmatprep.subr.mxu0 0.0
  %1110 = vmatpush2.msra.mxu0 0.0
  %1111 = vmatprep.subr.mxu0 0.0
  %1112 = vmatpush2.msra.mxu0 0.0
  %1113 = vmatprep.subr.mxu0 0.0
  %1114 = vmatpush2.msra.mxu0 0.0
  %1115 = vmatprep.subr.mxu0 0.0
  %1116 = vmatpush2.msra.mxu0 0.0
  %1117 = vmatprep.mubr.f32.mxu0 0.0
  %1118 = vmatmul.mubr.f32.gmra.mxu0 %v1051
  %v1119 = vpop.f32.mrf.mxu0
  %v1120 = vadd.f32 %v498, %v1119
  %v1121 = vpop.f32.mrf.mxu0
  %1122 = vdwg.mxu0
  %1124 = vrot.lane.b32.xlu0 %v945, 96
  %v1125 = vpop.permute.xlu0 %1124
  %v1126 = vsel %vm186, %v1125, 0
  %1128 = vmatprep.subr.mxu0 0.0
  %1129 = vmatpush1.msra.mxu0 0.0
  %1130 = vmatprep.subr.mxu0 0.0
  %1131 = vmatpush1.msra.mxu0 0.0
  %1132 = vmatprep.subr.mxu0 0.0
  %1133 = vmatpush1.msra.mxu0 0.0
  %1134 = vmatprep.subr.mxu0 0.0
  %1135 = vmatpush1.msra.mxu0 0.0
  %1136 = vmatprep.subr.mxu0 0.0
  %1137 = vmatpush1.msra.mxu0 0.0
  %1138 = vmatprep.subr.mxu0 0.0
  %1139 = vmatpush1.msra.mxu0 0.0
  %1140 = vmatprep.subr.mxu0 0.0
  %1141 = vmatpush1.msra.mxu0 0.0
  %1142 = vmatprep.subr.mxu0 0.0
  %1143 = vmatpush1.msra.mxu0 0.0
  %1144 = vmatprep.subr.mxu0 0.0
  %1145 = vmatpush1.msra.mxu0 0.0
  %1146 = vmatprep.subr.mxu0 0.0
  %1147 = vmatpush1.msra.mxu0 0.0
  %1148 = vmatprep.subr.mxu0 0.0
  %1149 = vmatpush1.msra.mxu0 0.0
  %1150 = vmatprep.subr.mxu0 0.0
  %1151 = vmatpush1.msra.mxu0 0.0
  %1152 = vmatprep.subr.mxu0 0.0
  %1153 = vmatpush1.msra.mxu0 0.0
  %1154 = vmatprep.subr.mxu0 0.0
  %1155 = vmatpush1.msra.mxu0 0.0
  %1156 = vmatprep.subr.mxu0 0.0
  %1157 = vmatpush1.msra.mxu0 %v303
  %1158 = vmatprep.subr.mxu0 0.0
  %1159 = vmatpush1.msra.mxu0 %v302
  %1160 = vmatprep.subr.mxu0 0.0
  %1161 = vmatpush2.msra.mxu0 0.0
  %1162 = vmatprep.subr.mxu0 0.0
  %1163 = vmatpush2.msra.mxu0 0.0
  %1164 = vmatprep.subr.mxu0 0.0
  %1165 = vmatpush2.msra.mxu0 0.0
  %1166 = vmatprep.subr.mxu0 0.0
  %1167 = vmatpush2.msra.mxu0 0.0
  %1168 = vmatprep.subr.mxu0 0.0
  %1169 = vmatpush2.msra.mxu0 0.0
  %1170 = vmatprep.subr.mxu0 0.0
  %1171 = vmatpush2.msra.mxu0 0.0
  %1172 = vmatprep.subr.mxu0 0.0
  %1173 = vmatpush2.msra.mxu0 0.0
  %1174 = vmatprep.subr.mxu0 0.0
  %1175 = vmatpush2.msra.mxu0 0.0
  %1176 = vmatprep.subr.mxu0 0.0
  %1177 = vmatpush2.msra.mxu0 0.0
  %1178 = vmatprep.subr.mxu0 0.0
  %1179 = vmatpush2.msra.mxu0 0.0
  %1180 = vmatprep.subr.mxu0 0.0
  %1181 = vmatpush2.msra.mxu0 0.0
  %1182 = vmatprep.subr.mxu0 0.0
  %1183 = vmatpush2.msra.mxu0 0.0
  %1184 = vmatprep.subr.mxu0 0.0
  %1185 = vmatpush2.msra.mxu0 0.0
  %1186 = vmatprep.subr.mxu0 0.0
  %1187 = vmatpush2.msra.mxu0 0.0
  %1188 = vmatprep.subr.mxu0 0.0
  %1189 = vmatpush2.msra.mxu0 0.0
  %1190 = vmatprep.subr.mxu0 0.0
  %1191 = vmatpush2.msra.mxu0 0.0
  %1192 = vmatprep.mubr.f32.mxu0 0.0
  %1193 = vmatmul.mubr.f32.gmra.mxu0 %v1126
  %v1194 = vpop.f32.mrf.mxu0
  %v1195 = vadd.f32 0.0, %v1194
  %v1196 = vpop.f32.mrf.mxu0
  %1197 = vdwg.mxu0
  %v1198 = vadd.f32 %v1120, %v1195
  %v1199 = vxor.u32 %v1198, 2147483648
  %v1200 = vmul.f32 %v1199, 1.442695
  %v1201 = vpow.pop %v1200
  %v1202 = vadd.f32 %v1201, 1.0
  %v1203 = vrcp.pop %v1202
  %v1204 = vmul.f32 1.0, %v1203
  %v1205 = vtanh.pop %v1198
  %v1206 = vmul.f32 %v1204, %v939
  %1208 = vrot.lane.b32.xlu0 %v1205, 80
  %v1209 = vpop.permute.xlu0 %1208
  %v1211 = vmul.f32 %v1204, %v1209
  %1213 = vrot.lane.b32.xlu0 %v1211, 16
  %v1214 = vpop.permute.xlu0 %1213
  %v1216 = vadd.f32 %v1206, %v1214
  %v1217 = vtanh.pop %v1216
  %1219 = vrot.lane.b32.xlu0 %v1217, 16
  %v1220 = vpop.permute.xlu0 %1219
  %v1222 = vmul.f32 %v1204, %v1220
  %1223 = vmatprep.subr.mxu0 0.0
  %1224 = vmatpush1.msra.mxu0 0.0
  %1225 = vmatprep.subr.mxu0 0.0
  %1226 = vmatpush1.msra.mxu0 0.0
  %1227 = vmatprep.subr.mxu0 0.0
  %1228 = vmatpush1.msra.mxu0 0.0
  %1229 = vmatprep.subr.mxu0 0.0
  %1230 = vmatpush1.msra.mxu0 0.0
  %1231 = vmatprep.subr.mxu0 0.0
  %1232 = vmatpush1.msra.mxu0 0.0
  %1233 = vmatprep.subr.mxu0 0.0
  %1234 = vmatpush1.msra.mxu0 0.0
  %1235 = vmatprep.subr.mxu0 0.0
  %1236 = vmatpush1.msra.mxu0 0.0
  %1237 = vmatprep.subr.mxu0 0.0
  %1238 = vmatpush1.msra.mxu0 0.0
  %1239 = vmatprep.subr.mxu0 0.0
  %1240 = vmatpush1.msra.mxu0 0.0
  %1241 = vmatprep.subr.mxu0 0.0
  %1242 = vmatpush1.msra.mxu0 0.0
  %1243 = vmatprep.subr.mxu0 0.0
  %1244 = vmatpush1.msra.mxu0 0.0
  %1245 = vmatprep.subr.mxu0 0.0
  %1246 = vmatpush1.msra.mxu0 0.0
  %1247 = vmatprep.subr.mxu0 0.0
  %1248 = vmatpush1.msra.mxu0 0.0
  %1249 = vmatprep.subr.mxu0 0.0
  %1250 = vmatpush1.msra.mxu0 0.0
  %1251 = vmatprep.subr.mxu0 0.0
  %1252 = vmatpush1.msra.mxu0 %v298
  %1253 = vmatprep.subr.mxu0 0.0
  %1254 = vmatpush1.msra.mxu0 %v297
  %1255 = vmatprep.subr.mxu0 0.0
  %1256 = vmatpush2.msra.mxu0 0.0
  %1257 = vmatprep.subr.mxu0 0.0
  %1258 = vmatpush2.msra.mxu0 0.0
  %1259 = vmatprep.subr.mxu0 0.0
  %1260 = vmatpush2.msra.mxu0 0.0
  %1261 = vmatprep.subr.mxu0 0.0
  %1262 = vmatpush2.msra.mxu0 0.0
  %1263 = vmatprep.subr.mxu0 0.0
  %1264 = vmatpush2.msra.mxu0 0.0
  %1265 = vmatprep.subr.mxu0 0.0
  %1266 = vmatpush2.msra.mxu0 0.0
  %1267 = vmatprep.subr.mxu0 0.0
  %1268 = vmatpush2.msra.mxu0 0.0
  %1269 = vmatprep.subr.mxu0 0.0
  %1270 = vmatpush2.msra.mxu0 0.0
  %1271 = vmatprep.subr.mxu0 0.0
  %1272 = vmatpush2.msra.mxu0 0.0
  %1273 = vmatprep.subr.mxu0 0.0
  %1274 = vmatpush2.msra.mxu0 0.0
  %1275 = vmatprep.subr.mxu0 0.0
  %1276 = vmatpush2.msra.mxu0 0.0
  %1277 = vmatprep.subr.mxu0 0.0
  %1278 = vmatpush2.msra.mxu0 0.0
  %1279 = vmatprep.subr.mxu0 0.0
  %1280 = vmatpush2.msra.mxu0 0.0
  %1281 = vmatprep.subr.mxu0 0.0
  %1282 = vmatpush2.msra.mxu0 0.0
  %1283 = vmatprep.subr.mxu0 0.0
  %1284 = vmatpush2.msra.mxu0 0.0
  %1285 = vmatprep.subr.mxu0 0.0
  %1286 = vmatpush2.msra.mxu0 0.0
  %1287 = vmatprep.mubr.f32.mxu0 0.0
  %1288 = vmatmul.mubr.f32.gmra.mxu0 %v1051
  %v1289 = vpop.f32.mrf.mxu0
  %v1290 = vadd.f32 0.0, %v1289
  %v1291 = vpop.f32.mrf.mxu0
  %1292 = vdwg.mxu0
  %v1294 = vrot.slane %v1290, 2
  %v1296 = vadd.f32 %v385, %v1294
  %v1297 = vxor.u32 %v1296, 2147483648
  %v1298 = vmul.f32 %v1297, 1.442695
  %v1299 = vpow.pop %v1298
  %v1300 = vadd.f32 %v1299, 1.0
  %v1301 = vrcp.pop %v1300
  %v1302 = vmul.f32 1.0, %v1301
  %v1303 = vtanh.pop %v1296
  %v1305 = vrot.slane %v1040, 6
  %v1307 = vmul.f32 %v1302, %v1305
  %1309 = vrot.lane.b32.xlu0 %v1303, 80
  %v1310 = vpop.permute.xlu0 %1309
  %v1312 = vmul.f32 %v1302, %v1310
  %1314 = vrot.lane.b32.xlu0 %v1312, 16
  %v1315 = vpop.permute.xlu0 %1314
  %v1317 = vadd.f32 %v1307, %v1315
  %v1318 = vtanh.pop %v1317
  %1320 = vrot.lane.b32.xlu0 %v1318, 16
  %v1321 = vpop.permute.xlu0 %1320
  %v1323 = vmul.f32 %v1302, %v1321
  %v1325 = vrot.slane %v1323, 6
  %1326 = vrot.lane.b32.xlu0 %v1325, 96
  %v1327 = vpop.permute.xlu0 %1326
  %v1328 = vsel %vm186, %v1327, 0
  %1330 = vmatprep.subr.mxu0 0.0
  %1331 = vmatpush1.msra.mxu0 0.0
  %1332 = vmatprep.subr.mxu0 0.0
  %1333 = vmatpush1.msra.mxu0 0.0
  %1334 = vmatprep.subr.mxu0 0.0
  %1335 = vmatpush1.msra.mxu0 0.0
  %1336 = vmatprep.subr.mxu0 0.0
  %1337 = vmatpush1.msra.mxu0 0.0
  %1338 = vmatprep.subr.mxu0 0.0
  %1339 = vmatpush1.msra.mxu0 0.0
  %1340 = vmatprep.subr.mxu0 0.0
  %1341 = vmatpush1.msra.mxu0 0.0
  %1342 = vmatprep.subr.mxu0 0.0
  %1343 = vmatpush1.msra.mxu0 0.0
  %1344 = vmatprep.subr.mxu0 0.0
  %1345 = vmatpush1.msra.mxu0 0.0
  %1346 = vmatprep.subr.mxu0 0.0
  %1347 = vmatpush1.msra.mxu0 0.0
  %1348 = vmatprep.subr.mxu0 0.0
  %1349 = vmatpush1.msra.mxu0 0.0
  %1350 = vmatprep.subr.mxu0 0.0
  %1351 = vmatpush1.msra.mxu0 0.0
  %1352 = vmatprep.subr.mxu0 0.0
  %1353 = vmatpush1.msra.mxu0 0.0
  %1354 = vmatprep.subr.mxu0 0.0
  %1355 = vmatpush1.msra.mxu0 0.0
  %1356 = vmatprep.subr.mxu0 0.0
  %1357 = vmatpush1.msra.mxu0 0.0
  %1358 = vmatprep.subr.mxu0 0.0
  %1359 = vmatpush1.msra.mxu0 %v301
  %1360 = vmatprep.subr.mxu0 0.0
  %1361 = vmatpush1.msra.mxu0 %v300
  %1362 = vmatprep.subr.mxu0 0.0
  %1363 = vmatpush2.msra.mxu0 0.0
  %1364 = vmatprep.subr.mxu0 0.0
  %1365 = vmatpush2.msra.mxu0 0.0
  %1366 = vmatprep.subr.mxu0 0.0
  %1367 = vmatpush2.msra.mxu0 0.0
  %1368 = vmatprep.subr.mxu0 0.0
  %1369 = vmatpush2.msra.mxu0 0.0
  %1370 = vmatprep.subr.mxu0 0.0
  %1371 = vmatpush2.msra.mxu0 0.0
  %1372 = vmatprep.subr.mxu0 0.0
  %1373 = vmatpush2.msra.mxu0 0.0
  %1374 = vmatprep.subr.mxu0 0.0
  %1375 = vmatpush2.msra.mxu0 0.0
  %1376 = vmatprep.subr.mxu0 0.0
  %1377 = vmatpush2.msra.mxu0 0.0
  %1378 = vmatprep.subr.mxu0 0.0
  %1379 = vmatpush2.msra.mxu0 0.0
  %1380 = vmatprep.subr.mxu0 0.0
  %1381 = vmatpush2.msra.mxu0 0.0
  %1382 = vmatprep.subr.mxu0 0.0
  %1383 = vmatpush2.msra.mxu0 0.0
  %1384 = vmatprep.subr.mxu0 0.0
  %1385 = vmatpush2.msra.mxu0 0.0
  %1386 = vmatprep.subr.mxu0 0.0
  %1387 = vmatpush2.msra.mxu0 0.0
  %1388 = vmatprep.subr.mxu0 0.0
  %1389 = vmatpush2.msra.mxu0 0.0
  %1390 = vmatprep.subr.mxu0 0.0
  %1391 = vmatpush2.msra.mxu0 0.0
  %1392 = vmatprep.subr.mxu0 0.0
  %1393 = vmatpush2.msra.mxu0 0.0
  %1394 = vmatprep.mubr.f32.mxu0 0.0
  %1395 = vmatmul.mubr.f32.gmra.mxu0 %v1328
  %v1396 = vpop.f32.mrf.mxu0
  %v1397 = vadd.f32 %v498, %v1396
  %v1398 = vpop.f32.mrf.mxu0
  %1399 = vdwg.mxu0
  %1401 = vrot.lane.b32.xlu0 %v1222, 96
  %v1402 = vpop.permute.xlu0 %1401
  %v1403 = vsel %vm186, %v1402, 0
  %1405 = vmatprep.subr.mxu0 0.0
  %1406 = vmatpush1.msra.mxu0 0.0
  %1407 = vmatprep.subr.mxu0 0.0
  %1408 = vmatpush1.msra.mxu0 0.0
  %1409 = vmatprep.subr.mxu0 0.0
  %1410 = vmatpush1.msra.mxu0 0.0
  %1411 = vmatprep.subr.mxu0 0.0
  %1412 = vmatpush1.msra.mxu0 0.0
  %1413 = vmatprep.subr.mxu0 0.0
  %1414 = vmatpush1.msra.mxu0 0.0
  %1415 = vmatprep.subr.mxu0 0.0
  %1416 = vmatpush1.msra.mxu0 0.0
  %1417 = vmatprep.subr.mxu0 0.0
  %1418 = vmatpush1.msra.mxu0 0.0
  %1419 = vmatprep.subr.mxu0 0.0
  %1420 = vmatpush1.msra.mxu0 0.0
  %1421 = vmatprep.subr.mxu0 0.0
  %1422 = vmatpush1.msra.mxu0 0.0
  %1423 = vmatprep.subr.mxu0 0.0
  %1424 = vmatpush1.msra.mxu0 0.0
  %1425 = vmatprep.subr.mxu0 0.0
  %1426 = vmatpush1.msra.mxu0 0.0
  %1427 = vmatprep.subr.mxu0 0.0
  %1428 = vmatpush1.msra.mxu0 0.0
  %1429 = vmatprep.subr.mxu0 0.0
  %1430 = vmatpush1.msra.mxu0 0.0
  %1431 = vmatprep.subr.mxu0 0.0
  %1432 = vmatpush1.msra.mxu0 0.0
  %1433 = vmatprep.subr.mxu0 0.0
  %1434 = vmatpush1.msra.mxu0 %v303
  %1435 = vmatprep.subr.mxu0 0.0
  %1436 = vmatpush1.msra.mxu0 %v302
  %1437 = vmatprep.subr.mxu0 0.0
  %1438 = vmatpush2.msra.mxu0 0.0
  %1439 = vmatprep.subr.mxu0 0.0
  %1440 = vmatpush2.msra.mxu0 0.0
  %1441 = vmatprep.subr.mxu0 0.0
  %1442 = vmatpush2.msra.mxu0 0.0
  %1443 = vmatprep.subr.mxu0 0.0
  %1444 = vmatpush2.msra.mxu0 0.0
  %1445 = vmatprep.subr.mxu0 0.0
  %1446 = vmatpush2.msra.mxu0 0.0
  %1447 = vmatprep.subr.mxu0 0.0
  %1448 = vmatpush2.msra.mxu0 0.0
  %1449 = vmatprep.subr.mxu0 0.0
  %1450 = vmatpush2.msra.mxu0 0.0
  %1451 = vmatprep.subr.mxu0 0.0
  %1452 = vmatpush2.msra.mxu0 0.0
  %1453 = vmatprep.subr.mxu0 0.0
  %1454 = vmatpush2.msra.mxu0 0.0
  %1455 = vmatprep.subr.mxu0 0.0
  %1456 = vmatpush2.msra.mxu0 0.0
  %1457 = vmatprep.subr.mxu0 0.0
  %1458 = vmatpush2.msra.mxu0 0.0
  %1459 = vmatprep.subr.mxu0 0.0
  %1460 = vmatpush2.msra.mxu0 0.0
  %1461 = vmatprep.subr.mxu0 0.0
  %1462 = vmatpush2.msra.mxu0 0.0
  %1463 = vmatprep.subr.mxu0 0.0
  %1464 = vmatpush2.msra.mxu0 0.0
  %1465 = vmatprep.subr.mxu0 0.0
  %1466 = vmatpush2.msra.mxu0 0.0
  %1467 = vmatprep.subr.mxu0 0.0
  %1468 = vmatpush2.msra.mxu0 0.0
  %1469 = vmatprep.mubr.f32.mxu0 0.0
  %1470 = vmatmul.mubr.f32.gmra.mxu0 %v1403
  %v1471 = vpop.f32.mrf.mxu0
  %v1472 = vadd.f32 0.0, %v1471
  %v1473 = vpop.f32.mrf.mxu0
  %1474 = vdwg.mxu0
  %v1475 = vadd.f32 %v1397, %v1472
  %v1476 = vxor.u32 %v1475, 2147483648
  %v1477 = vmul.f32 %v1476, 1.442695
  %v1478 = vpow.pop %v1477
  %v1479 = vadd.f32 %v1478, 1.0
  %v1480 = vrcp.pop %v1479
  %v1481 = vmul.f32 1.0, %v1480
  %v1482 = vtanh.pop %v1475
  %v1483 = vmul.f32 %v1481, %v1216
  %1485 = vrot.lane.b32.xlu0 %v1482, 80
  %v1486 = vpop.permute.xlu0 %1485
  %v1488 = vmul.f32 %v1481, %v1486
  %1490 = vrot.lane.b32.xlu0 %v1488, 16
  %v1491 = vpop.permute.xlu0 %1490
  %v1493 = vadd.f32 %v1483, %v1491
  %v1494 = vtanh.pop %v1493
  %1496 = vrot.lane.b32.xlu0 %v1494, 16
  %v1497 = vpop.permute.xlu0 %1496
  %v1499 = vmul.f32 %v1481, %v1497
  %1500 = vmatprep.subr.mxu0 0.0
  %1501 = vmatpush1.msra.mxu0 0.0
  %1502 = vmatprep.subr.mxu0 0.0
  %1503 = vmatpush1.msra.mxu0 0.0
  %1504 = vmatprep.subr.mxu0 0.0
  %1505 = vmatpush1.msra.mxu0 0.0
  %1506 = vmatprep.subr.mxu0 0.0
  %1507 = vmatpush1.msra.mxu0 0.0
  %1508 = vmatprep.subr.mxu0 0.0
  %1509 = vmatpush1.msra.mxu0 0.0
  %1510 = vmatprep.subr.mxu0 0.0
  %1511 = vmatpush1.msra.mxu0 0.0
  %1512 = vmatprep.subr.mxu0 0.0
  %1513 = vmatpush1.msra.mxu0 0.0
  %1514 = vmatprep.subr.mxu0 0.0
  %1515 = vmatpush1.msra.mxu0 0.0
  %1516 = vmatprep.subr.mxu0 0.0
  %1517 = vmatpush1.msra.mxu0 0.0
  %1518 = vmatprep.subr.mxu0 0.0
  %1519 = vmatpush1.msra.mxu0 0.0
  %1520 = vmatprep.subr.mxu0 0.0
  %1521 = vmatpush1.msra.mxu0 0.0
  %1522 = vmatprep.subr.mxu0 0.0
  %1523 = vmatpush1.msra.mxu0 0.0
  %1524 = vmatprep.subr.mxu0 0.0
  %1525 = vmatpush1.msra.mxu0 0.0
  %1526 = vmatprep.subr.mxu0 0.0
  %1527 = vmatpush1.msra.mxu0 0.0
  %1528 = vmatprep.subr.mxu0 0.0
  %1529 = vmatpush1.msra.mxu0 %v298
  %1530 = vmatprep.subr.mxu0 0.0
  %1531 = vmatpush1.msra.mxu0 %v297
  %1532 = vmatprep.subr.mxu0 0.0
  %1533 = vmatpush2.msra.mxu0 0.0
  %1534 = vmatprep.subr.mxu0 0.0
  %1535 = vmatpush2.msra.mxu0 0.0
  %1536 = vmatprep.subr.mxu0 0.0
  %1537 = vmatpush2.msra.mxu0 0.0
  %1538 = vmatprep.subr.mxu0 0.0
  %1539 = vmatpush2.msra.mxu0 0.0
  %1540 = vmatprep.subr.mxu0 0.0
  %1541 = vmatpush2.msra.mxu0 0.0
  %1542 = vmatprep.subr.mxu0 0.0
  %1543 = vmatpush2.msra.mxu0 0.0
  %1544 = vmatprep.subr.mxu0 0.0
  %1545 = vmatpush2.msra.mxu0 0.0
  %1546 = vmatprep.subr.mxu0 0.0
  %1547 = vmatpush2.msra.mxu0 0.0
  %1548 = vmatprep.subr.mxu0 0.0
  %1549 = vmatpush2.msra.mxu0 0.0
  %1550 = vmatprep.subr.mxu0 0.0
  %1551 = vmatpush2.msra.mxu0 0.0
  %1552 = vmatprep.subr.mxu0 0.0
  %1553 = vmatpush2.msra.mxu0 0.0
  %1554 = vmatprep.subr.mxu0 0.0
  %1555 = vmatpush2.msra.mxu0 0.0
  %1556 = vmatprep.subr.mxu0 0.0
  %1557 = vmatpush2.msra.mxu0 0.0
  %1558 = vmatprep.subr.mxu0 0.0
  %1559 = vmatpush2.msra.mxu0 0.0
  %1560 = vmatprep.subr.mxu0 0.0
  %1561 = vmatpush2.msra.mxu0 0.0
  %1562 = vmatprep.subr.mxu0 0.0
  %1563 = vmatpush2.msra.mxu0 0.0
  %1564 = vmatprep.mubr.f32.mxu0 0.0
  %1565 = vmatmul.mubr.f32.gmra.mxu0 %v1328
  %v1566 = vpop.f32.mrf.mxu0
  %v1567 = vadd.f32 0.0, %v1566
  %v1568 = vpop.f32.mrf.mxu0
  %1569 = vdwg.mxu0
  %v1570 = vadd.f32 %v390, %v1567
  %v1571 = vxor.u32 %v1570, 2147483648
  %v1572 = vmul.f32 %v1571, 1.442695
  %v1573 = vpow.pop %v1572
  %v1574 = vadd.f32 %v1573, 1.0
  %v1575 = vrcp.pop %v1574
  %v1576 = vmul.f32 1.0, %v1575
  %v1577 = vtanh.pop %v1570
  %v1579 = vrot.slane %v1317, 6
  %v1581 = vmul.f32 %v1576, %v1579
  %1583 = vrot.lane.b32.xlu0 %v1577, 80
  %v1584 = vpop.permute.xlu0 %1583
  %v1586 = vmul.f32 %v1576, %v1584
  %1588 = vrot.lane.b32.xlu0 %v1586, 16
  %v1589 = vpop.permute.xlu0 %1588
  %v1591 = vadd.f32 %v1581, %v1589
  %v1592 = vtanh.pop %v1591
  %1594 = vrot.lane.b32.xlu0 %v1592, 16
  %v1595 = vpop.permute.xlu0 %1594
  %v1597 = vmul.f32 %v1576, %v1595
  %1599 = vrot.lane.b32.xlu0 %v1597, 96
  %v1600 = vpop.permute.xlu0 %1599
  %v1601 = vsel %vm186, %v1600, 0
  %1603 = vmatprep.subr.mxu0 0.0
  %1604 = vmatpush1.msra.mxu0 0.0
  %1605 = vmatprep.subr.mxu0 0.0
  %1606 = vmatpush1.msra.mxu0 0.0
  %1607 = vmatprep.subr.mxu0 0.0
  %1608 = vmatpush1.msra.mxu0 0.0
  %1609 = vmatprep.subr.mxu0 0.0
  %1610 = vmatpush1.msra.mxu0 0.0
  %1611 = vmatprep.subr.mxu0 0.0
  %1612 = vmatpush1.msra.mxu0 0.0
  %1613 = vmatprep.subr.mxu0 0.0
  %1614 = vmatpush1.msra.mxu0 0.0
  %1615 = vmatprep.subr.mxu0 0.0
  %1616 = vmatpush1.msra.mxu0 0.0
  %1617 = vmatprep.subr.mxu0 0.0
  %1618 = vmatpush1.msra.mxu0 0.0
  %1619 = vmatprep.subr.mxu0 0.0
  %1620 = vmatpush1.msra.mxu0 0.0
  %1621 = vmatprep.subr.mxu0 0.0
  %1622 = vmatpush1.msra.mxu0 0.0
  %1623 = vmatprep.subr.mxu0 0.0
  %1624 = vmatpush1.msra.mxu0 0.0
  %1625 = vmatprep.subr.mxu0 0.0
  %1626 = vmatpush1.msra.mxu0 0.0
  %1627 = vmatprep.subr.mxu0 0.0
  %1628 = vmatpush1.msra.mxu0 0.0
  %1629 = vmatprep.subr.mxu0 0.0
  %1630 = vmatpush1.msra.mxu0 0.0
  %1631 = vmatprep.subr.mxu0 0.0
  %1632 = vmatpush1.msra.mxu0 %v301
  %1633 = vmatprep.subr.mxu0 0.0
  %1634 = vmatpush1.msra.mxu0 %v300
  %1635 = vmatprep.subr.mxu0 0.0
  %1636 = vmatpush2.msra.mxu0 0.0
  %1637 = vmatprep.subr.mxu0 0.0
  %1638 = vmatpush2.msra.mxu0 0.0
  %1639 = vmatprep.subr.mxu0 0.0
  %1640 = vmatpush2.msra.mxu0 0.0
  %1641 = vmatprep.subr.mxu0 0.0
  %1642 = vmatpush2.msra.mxu0 0.0
  %1643 = vmatprep.subr.mxu0 0.0
  %1644 = vmatpush2.msra.mxu0 0.0
  %1645 = vmatprep.subr.mxu0 0.0
  %1646 = vmatpush2.msra.mxu0 0.0
  %1647 = vmatprep.subr.mxu0 0.0
  %1648 = vmatpush2.msra.mxu0 0.0
  %1649 = vmatprep.subr.mxu0 0.0
  %1650 = vmatpush2.msra.mxu0 0.0
  %1651 = vmatprep.subr.mxu0 0.0
  %1652 = vmatpush2.msra.mxu0 0.0
  %1653 = vmatprep.subr.mxu0 0.0
  %1654 = vmatpush2.msra.mxu0 0.0
  %1655 = vmatprep.subr.mxu0 0.0
  %1656 = vmatpush2.msra.mxu0 0.0
  %1657 = vmatprep.subr.mxu0 0.0
  %1658 = vmatpush2.msra.mxu0 0.0
  %1659 = vmatprep.subr.mxu0 0.0
  %1660 = vmatpush2.msra.mxu0 0.0
  %1661 = vmatprep.subr.mxu0 0.0
  %1662 = vmatpush2.msra.mxu0 0.0
  %1663 = vmatprep.subr.mxu0 0.0
  %1664 = vmatpush2.msra.mxu0 0.0
  %1665 = vmatprep.subr.mxu0 0.0
  %1666 = vmatpush2.msra.mxu0 0.0
  %1667 = vmatprep.mubr.f32.mxu0 0.0
  %1668 = vmatmul.mubr.f32.gmra.mxu0 %v1601
  %v1669 = vpop.f32.mrf.mxu0
  %v1670 = vadd.f32 %v498, %v1669
  %v1671 = vpop.f32.mrf.mxu0
  %1672 = vdwg.mxu0
  %1674 = vrot.lane.b32.xlu0 %v1499, 96
  %v1675 = vpop.permute.xlu0 %1674
  %v1676 = vsel %vm186, %v1675, 0
  %1678 = vmatprep.subr.mxu0 0.0
  %1679 = vmatpush1.msra.mxu0 0.0
  %1680 = vmatprep.subr.mxu0 0.0
  %1681 = vmatpush1.msra.mxu0 0.0
  %1682 = vmatprep.subr.mxu0 0.0
  %1683 = vmatpush1.msra.mxu0 0.0
  %1684 = vmatprep.subr.mxu0 0.0
  %1685 = vmatpush1.msra.mxu0 0.0
  %1686 = vmatprep.subr.mxu0 0.0
  %1687 = vmatpush1.msra.mxu0 0.0
  %1688 = vmatprep.subr.mxu0 0.0
  %1689 = vmatpush1.msra.mxu0 0.0
  %1690 = vmatprep.subr.mxu0 0.0
  %1691 = vmatpush1.msra.mxu0 0.0
  %1692 = vmatprep.subr.mxu0 0.0
  %1693 = vmatpush1.msra.mxu0 0.0
  %1694 = vmatprep.subr.mxu0 0.0
  %1695 = vmatpush1.msra.mxu0 0.0
  %1696 = vmatprep.subr.mxu0 0.0
  %1697 = vmatpush1.msra.mxu0 0.0
  %1698 = vmatprep.subr.mxu0 0.0
  %1699 = vmatpush1.msra.mxu0 0.0
  %1700 = vmatprep.subr.mxu0 0.0
  %1701 = vmatpush1.msra.mxu0 0.0
  %1702 = vmatprep.subr.mxu0 0.0
  %1703 = vmatpush1.msra.mxu0 0.0
  %1704 = vmatprep.subr.mxu0 0.0
  %1705 = vmatpush1.msra.mxu0 0.0
  %1706 = vmatprep.subr.mxu0 0.0
  %1707 = vmatpush1.msra.mxu0 %v303
  %1708 = vmatprep.subr.mxu0 0.0
  %1709 = vmatpush1.msra.mxu0 %v302
  %1710 = vmatprep.subr.mxu0 0.0
  %1711 = vmatpush2.msra.mxu0 0.0
  %1712 = vmatprep.subr.mxu0 0.0
  %1713 = vmatpush2.msra.mxu0 0.0
  %1714 = vmatprep.subr.mxu0 0.0
  %1715 = vmatpush2.msra.mxu0 0.0
  %1716 = vmatprep.subr.mxu0 0.0
  %1717 = vmatpush2.msra.mxu0 0.0
  %1718 = vmatprep.subr.mxu0 0.0
  %1719 = vmatpush2.msra.mxu0 0.0
  %1720 = vmatprep.subr.mxu0 0.0
  %1721 = vmatpush2.msra.mxu0 0.0
  %1722 = vmatprep.subr.mxu0 0.0
  %1723 = vmatpush2.msra.mxu0 0.0
  %1724 = vmatprep.subr.mxu0 0.0
  %1725 = vmatpush2.msra.mxu0 0.0
  %1726 = vmatprep.subr.mxu0 0.0
  %1727 = vmatpush2.msra.mxu0 0.0
  %1728 = vmatprep.subr.mxu0 0.0
  %1729 = vmatpush2.msra.mxu0 0.0
  %1730 = vmatprep.subr.mxu0 0.0
  %1731 = vmatpush2.msra.mxu0 0.0
  %1732 = vmatprep.subr.mxu0 0.0
  %1733 = vmatpush2.msra.mxu0 0.0
  %1734 = vmatprep.subr.mxu0 0.0
  %1735 = vmatpush2.msra.mxu0 0.0
  %1736 = vmatprep.subr.mxu0 0.0
  %1737 = vmatpush2.msra.mxu0 0.0
  %1738 = vmatprep.subr.mxu0 0.0
  %1739 = vmatpush2.msra.mxu0 0.0
  %1740 = vmatprep.subr.mxu0 0.0
  %1741 = vmatpush2.msra.mxu0 0.0
  %1742 = vmatprep.mubr.f32.mxu0 0.0
  %1743 = vmatmul.mubr.f32.gmra.mxu0 %v1676
  %v1744 = vpop.f32.mrf.mxu0
  %v1745 = vadd.f32 0.0, %v1744
  %v1746 = vpop.f32.mrf.mxu0
  %1747 = vdwg.mxu0
  %v1748 = vadd.f32 %v1670, %v1745
  %v1749 = vxor.u32 %v1748, 2147483648
  %v1750 = vmul.f32 %v1749, 1.442695
  %v1751 = vpow.pop %v1750
  %v1752 = vadd.f32 %v1751, 1.0
  %v1753 = vrcp.pop %v1752
  %v1754 = vmul.f32 1.0, %v1753
  %v1755 = vtanh.pop %v1748
  %v1756 = vmul.f32 %v1754, %v1493
  %1758 = vrot.lane.b32.xlu0 %v1755, 80
  %v1759 = vpop.permute.xlu0 %1758
  %v1761 = vmul.f32 %v1754, %v1759
  %1763 = vrot.lane.b32.xlu0 %v1761, 16
  %v1764 = vpop.permute.xlu0 %1763
  %v1766 = vadd.f32 %v1756, %v1764
  %v1767 = vtanh.pop %v1766
  %1769 = vrot.lane.b32.xlu0 %v1767, 16
  %v1770 = vpop.permute.xlu0 %1769
  %v1772 = vmul.f32 %v1754, %v1770
  %1773 = vmatprep.subr.mxu0 0.0
  %1774 = vmatpush1.msra.mxu0 0.0
  %1775 = vmatprep.subr.mxu0 0.0
  %1776 = vmatpush1.msra.mxu0 0.0
  %1777 = vmatprep.subr.mxu0 0.0
  %1778 = vmatpush1.msra.mxu0 0.0
  %1779 = vmatprep.subr.mxu0 0.0
  %1780 = vmatpush1.msra.mxu0 0.0
  %1781 = vmatprep.subr.mxu0 0.0
  %1782 = vmatpush1.msra.mxu0 0.0
  %1783 = vmatprep.subr.mxu0 0.0
  %1784 = vmatpush1.msra.mxu0 0.0
  %1785 = vmatprep.subr.mxu0 0.0
  %1786 = vmatpush1.msra.mxu0 0.0
  %1787 = vmatprep.subr.mxu0 0.0
  %1788 = vmatpush1.msra.mxu0 0.0
  %1789 = vmatprep.subr.mxu0 0.0
  %1790 = vmatpush1.msra.mxu0 0.0
  %1791 = vmatprep.subr.mxu0 0.0
  %1792 = vmatpush1.msra.mxu0 0.0
  %1793 = vmatprep.subr.mxu0 0.0
  %1794 = vmatpush1.msra.mxu0 0.0
  %1795 = vmatprep.subr.mxu0 0.0
  %1796 = vmatpush1.msra.mxu0 0.0
  %1797 = vmatprep.subr.mxu0 0.0
  %1798 = vmatpush1.msra.mxu0 0.0
  %1799 = vmatprep.subr.mxu0 0.0
  %1800 = vmatpush1.msra.mxu0 0.0
  %1801 = vmatprep.subr.mxu0 0.0
  %1802 = vmatpush1.msra.mxu0 %v298
  %1803 = vmatprep.subr.mxu0 0.0
  %1804 = vmatpush1.msra.mxu0 %v297
  %1805 = vmatprep.subr.mxu0 0.0
  %1806 = vmatpush2.msra.mxu0 0.0
  %1807 = vmatprep.subr.mxu0 0.0
  %1808 = vmatpush2.msra.mxu0 0.0
  %1809 = vmatprep.subr.mxu0 0.0
  %1810 = vmatpush2.msra.mxu0 0.0
  %1811 = vmatprep.subr.mxu0 0.0
  %1812 = vmatpush2.msra.mxu0 0.0
  %1813 = vmatprep.subr.mxu0 0.0
  %1814 = vmatpush2.msra.mxu0 0.0
  %1815 = vmatprep.subr.mxu0 0.0
  %1816 = vmatpush2.msra.mxu0 0.0
  %1817 = vmatprep.subr.mxu0 0.0
  %1818 = vmatpush2.msra.mxu0 0.0
  %1819 = vmatprep.subr.mxu0 0.0
  %1820 = vmatpush2.msra.mxu0 0.0
  %1821 = vmatprep.subr.mxu0 0.0
  %1822 = vmatpush2.msra.mxu0 0.0
  %1823 = vmatprep.subr.mxu0 0.0
  %1824 = vmatpush2.msra.mxu0 0.0
  %1825 = vmatprep.subr.mxu0 0.0
  %1826 = vmatpush2.msra.mxu0 0.0
  %1827 = vmatprep.subr.mxu0 0.0
  %1828 = vmatpush2.msra.mxu0 0.0
  %1829 = vmatprep.subr.mxu0 0.0
  %1830 = vmatpush2.msra.mxu0 0.0
  %1831 = vmatprep.subr.mxu0 0.0
  %1832 = vmatpush2.msra.mxu0 0.0
  %1833 = vmatprep.subr.mxu0 0.0
  %1834 = vmatpush2.msra.mxu0 0.0
  %1835 = vmatprep.subr.mxu0 0.0
  %1836 = vmatpush2.msra.mxu0 0.0
  %1837 = vmatprep.mubr.f32.mxu0 0.0
  %1838 = vmatmul.mubr.f32.gmra.mxu0 %v1601
  %v1839 = vpop.f32.mrf.mxu0
  %v1840 = vadd.f32 0.0, %v1839
  %v1841 = vpop.f32.mrf.mxu0
  %1842 = vdwg.mxu0
  %v1844 = vrot.slane %v1840, 6
  %v1846 = vadd.f32 %v390, %v1844
  %v1847 = vxor.u32 %v1846, 2147483648
  %v1848 = vmul.f32 %v1847, 1.442695
  %v1849 = vpow.pop %v1848
  %v1850 = vadd.f32 %v1849, 1.0
  %v1851 = vrcp.pop %v1850
  %v1852 = vmul.f32 1.0, %v1851
  %v1853 = vtanh.pop %v1846
  %v1855 = vrot.slane %v1591, 6
  %v1857 = vmul.f32 %v1852, %v1855
  %1859 = vrot.lane.b32.xlu0 %v1853, 80
  %v1860 = vpop.permute.xlu0 %1859
  %v1862 = vmul.f32 %v1852, %v1860
  %1864 = vrot.lane.b32.xlu0 %v1862, 16
  %v1865 = vpop.permute.xlu0 %1864
  %v1867 = vadd.f32 %v1857, %v1865
  %v1868 = vtanh.pop %v1867
  %1870 = vrot.lane.b32.xlu0 %v1868, 16
  %v1871 = vpop.permute.xlu0 %1870
  %v1873 = vmul.f32 %v1852, %v1871
  %v1875 = vrot.slane %v1873, 2
  %1876 = vrot.lane.b32.xlu0 %v1875, 96
  %v1877 = vpop.permute.xlu0 %1876
  %v1878 = vsel %vm186, %v1877, 0
  %1880 = vmatprep.subr.mxu0 0.0
  %1881 = vmatpush1.msra.mxu0 0.0
  %1882 = vmatprep.subr.mxu0 0.0
  %1883 = vmatpush1.msra.mxu0 0.0
  %1884 = vmatprep.subr.mxu0 0.0
  %1885 = vmatpush1.msra.mxu0 0.0
  %1886 = vmatprep.subr.mxu0 0.0
  %1887 = vmatpush1.msra.mxu0 0.0
  %1888 = vmatprep.subr.mxu0 0.0
  %1889 = vmatpush1.msra.mxu0 0.0
  %1890 = vmatprep.subr.mxu0 0.0
  %1891 = vmatpush1.msra.mxu0 0.0
  %1892 = vmatprep.subr.mxu0 0.0
  %1893 = vmatpush1.msra.mxu0 0.0
  %1894 = vmatprep.subr.mxu0 0.0
  %1895 = vmatpush1.msra.mxu0 0.0
  %1896 = vmatprep.subr.mxu0 0.0
  %1897 = vmatpush1.msra.mxu0 0.0
  %1898 = vmatprep.subr.mxu0 0.0
  %1899 = vmatpush1.msra.mxu0 0.0
  %1900 = vmatprep.subr.mxu0 0.0
  %1901 = vmatpush1.msra.mxu0 0.0
  %1902 = vmatprep.subr.mxu0 0.0
  %1903 = vmatpush1.msra.mxu0 0.0
  %1904 = vmatprep.subr.mxu0 0.0
  %1905 = vmatpush1.msra.mxu0 0.0
  %1906 = vmatprep.subr.mxu0 0.0
  %1907 = vmatpush1.msra.mxu0 0.0
  %1908 = vmatprep.subr.mxu0 0.0
  %1909 = vmatpush1.msra.mxu0 %v301
  %1910 = vmatprep.subr.mxu0 0.0
  %1911 = vmatpush1.msra.mxu0 %v300
  %1912 = vmatprep.subr.mxu0 0.0
  %1913 = vmatpush2.msra.mxu0 0.0
  %1914 = vmatprep.subr.mxu0 0.0
  %1915 = vmatpush2.msra.mxu0 0.0
  %1916 = vmatprep.subr.mxu0 0.0
  %1917 = vmatpush2.msra.mxu0 0.0
  %1918 = vmatprep.subr.mxu0 0.0
  %1919 = vmatpush2.msra.mxu0 0.0
  %1920 = vmatprep.subr.mxu0 0.0
  %1921 = vmatpush2.msra.mxu0 0.0
  %1922 = vmatprep.subr.mxu0 0.0
  %1923 = vmatpush2.msra.mxu0 0.0
  %1924 = vmatprep.subr.mxu0 0.0
  %1925 = vmatpush2.msra.mxu0 0.0
  %1926 = vmatprep.subr.mxu0 0.0
  %1927 = vmatpush2.msra.mxu0 0.0
  %1928 = vmatprep.subr.mxu0 0.0
  %1929 = vmatpush2.msra.mxu0 0.0
  %1930 = vmatprep.subr.mxu0 0.0
  %1931 = vmatpush2.msra.mxu0 0.0
  %1932 = vmatprep.subr.mxu0 0.0
  %1933 = vmatpush2.msra.mxu0 0.0
  %1934 = vmatprep.subr.mxu0 0.0
  %1935 = vmatpush2.msra.mxu0 0.0
  %1936 = vmatprep.subr.mxu0 0.0
  %1937 = vmatpush2.msra.mxu0 0.0
  %1938 = vmatprep.subr.mxu0 0.0
  %1939 = vmatpush2.msra.mxu0 0.0
  %1940 = vmatprep.subr.mxu0 0.0
  %1941 = vmatpush2.msra.mxu0 0.0
  %1942 = vmatprep.subr.mxu0 0.0
  %1943 = vmatpush2.msra.mxu0 0.0
  %1944 = vmatprep.mubr.f32.mxu0 0.0
  %1945 = vmatmul.mubr.f32.gmra.mxu0 %v1878
  %v1946 = vpop.f32.mrf.mxu0
  %v1947 = vadd.f32 %v498, %v1946
  %v1948 = vpop.f32.mrf.mxu0
  %1949 = vdwg.mxu0
  %1951 = vrot.lane.b32.xlu0 %v1772, 96
  %v1952 = vpop.permute.xlu0 %1951
  %v1953 = vsel %vm186, %v1952, 0
  %1955 = vmatprep.subr.mxu0 0.0
  %1956 = vmatpush1.msra.mxu0 0.0
  %1957 = vmatprep.subr.mxu0 0.0
  %1958 = vmatpush1.msra.mxu0 0.0
  %1959 = vmatprep.subr.mxu0 0.0
  %1960 = vmatpush1.msra.mxu0 0.0
  %1961 = vmatprep.subr.mxu0 0.0
  %1962 = vmatpush1.msra.mxu0 0.0
  %1963 = vmatprep.subr.mxu0 0.0
  %1964 = vmatpush1.msra.mxu0 0.0
  %1965 = vmatprep.subr.mxu0 0.0
  %1966 = vmatpush1.msra.mxu0 0.0
  %1967 = vmatprep.subr.mxu0 0.0
  %1968 = vmatpush1.msra.mxu0 0.0
  %1969 = vmatprep.subr.mxu0 0.0
  %1970 = vmatpush1.msra.mxu0 0.0
  %1971 = vmatprep.subr.mxu0 0.0
  %1972 = vmatpush1.msra.mxu0 0.0
  %1973 = vmatprep.subr.mxu0 0.0
  %1974 = vmatpush1.msra.mxu0 0.0
  %1975 = vmatprep.subr.mxu0 0.0
  %1976 = vmatpush1.msra.mxu0 0.0
  %1977 = vmatprep.subr.mxu0 0.0
  %1978 = vmatpush1.msra.mxu0 0.0
  %1979 = vmatprep.subr.mxu0 0.0
  %1980 = vmatpush1.msra.mxu0 0.0
  %1981 = vmatprep.subr.mxu0 0.0
  %1982 = vmatpush1.msra.mxu0 0.0
  %1983 = vmatprep.subr.mxu0 0.0
  %1984 = vmatpush1.msra.mxu0 %v303
  %1985 = vmatprep.subr.mxu0 0.0
  %1986 = vmatpush1.msra.mxu0 %v302
  %1987 = vmatprep.subr.mxu0 0.0
  %1988 = vmatpush2.msra.mxu0 0.0
  %1989 = vmatprep.subr.mxu0 0.0
  %1990 = vmatpush2.msra.mxu0 0.0
  %1991 = vmatprep.subr.mxu0 0.0
  %1992 = vmatpush2.msra.mxu0 0.0
  %1993 = vmatprep.subr.mxu0 0.0
  %1994 = vmatpush2.msra.mxu0 0.0
  %1995 = vmatprep.subr.mxu0 0.0
  %1996 = vmatpush2.msra.mxu0 0.0
  %1997 = vmatprep.subr.mxu0 0.0
  %1998 = vmatpush2.msra.mxu0 0.0
  %1999 = vmatprep.subr.mxu0 0.0
  %2000 = vmatpush2.msra.mxu0 0.0
  %2001 = vmatprep.subr.mxu0 0.0
  %2002 = vmatpush2.msra.mxu0 0.0
  %2003 = vmatprep.subr.mxu0 0.0
  %2004 = vmatpush2.msra.mxu0 0.0
  %2005 = vmatprep.subr.mxu0 0.0
  %2006 = vmatpush2.msra.mxu0 0.0
  %2007 = vmatprep.subr.mxu0 0.0
  %2008 = vmatpush2.msra.mxu0 0.0
  %2009 = vmatprep.subr.mxu0 0.0
  %2010 = vmatpush2.msra.mxu0 0.0
  %2011 = vmatprep.subr.mxu0 0.0
  %2012 = vmatpush2.msra.mxu0 0.0
  %2013 = vmatprep.subr.mxu0 0.0
  %2014 = vmatpush2.msra.mxu0 0.0
  %2015 = vmatprep.subr.mxu0 0.0
  %2016 = vmatpush2.msra.mxu0 0.0
  %2017 = vmatprep.subr.mxu0 0.0
  %2018 = vmatpush2.msra.mxu0 0.0
  %2019 = vmatprep.mubr.f32.mxu0 0.0
  %2020 = vmatmul.mubr.f32.gmra.mxu0 %v1953
  %v2021 = vpop.f32.mrf.mxu0
  %v2022 = vadd.f32 0.0, %v2021
  %v2023 = vpop.f32.mrf.mxu0
  %2024 = vdwg.mxu0
  %v2025 = vadd.f32 %v1947, %v2022
  %v2026 = vxor.u32 %v2025, 2147483648
  %v2027 = vmul.f32 %v2026, 1.442695
  %v2028 = vpow.pop %v2027
  %v2029 = vadd.f32 %v2028, 1.0
  %v2030 = vrcp.pop %v2029
  %v2031 = vmul.f32 1.0, %v2030
  %v2032 = vtanh.pop %v2025
  %v2033 = vmul.f32 %v2031, %v1766
  %2035 = vrot.lane.b32.xlu0 %v2032, 80
  %v2036 = vpop.permute.xlu0 %2035
  %v2038 = vmul.f32 %v2031, %v2036
  %2040 = vrot.lane.b32.xlu0 %v2038, 16
  %v2041 = vpop.permute.xlu0 %2040
  %v2043 = vadd.f32 %v2033, %v2041
  %v2044 = vtanh.pop %v2043
  %2046 = vrot.lane.b32.xlu0 %v2044, 16
  %v2047 = vpop.permute.xlu0 %2046
  %v2049 = vmul.f32 %v2031, %v2047
  %2050 = vmatprep.subr.mxu0 0.0
  %2051 = vmatpush1.msra.mxu0 0.0
  %2052 = vmatprep.subr.mxu0 0.0
  %2053 = vmatpush1.msra.mxu0 0.0
  %2054 = vmatprep.subr.mxu0 0.0
  %2055 = vmatpush1.msra.mxu0 0.0
  %2056 = vmatprep.subr.mxu0 0.0
  %2057 = vmatpush1.msra.mxu0 0.0
  %2058 = vmatprep.subr.mxu0 0.0
  %2059 = vmatpush1.msra.mxu0 0.0
  %2060 = vmatprep.subr.mxu0 0.0
  %2061 = vmatpush1.msra.mxu0 0.0
  %2062 = vmatprep.subr.mxu0 0.0
  %2063 = vmatpush1.msra.mxu0 0.0
  %2064 = vmatprep.subr.mxu0 0.0
  %2065 = vmatpush1.msra.mxu0 0.0
  %2066 = vmatprep.subr.mxu0 0.0
  %2067 = vmatpush1.msra.mxu0 0.0
  %2068 = vmatprep.subr.mxu0 0.0
  %2069 = vmatpush1.msra.mxu0 0.0
  %2070 = vmatprep.subr.mxu0 0.0
  %2071 = vmatpush1.msra.mxu0 0.0
  %2072 = vmatprep.subr.mxu0 0.0
  %2073 = vmatpush1.msra.mxu0 0.0
  %2074 = vmatprep.subr.mxu0 0.0
  %2075 = vmatpush1.msra.mxu0 0.0
  %2076 = vmatprep.subr.mxu0 0.0
  %2077 = vmatpush1.msra.mxu0 0.0
  %2078 = vmatprep.subr.mxu0 0.0
  %2079 = vmatpush1.msra.mxu0 %v298
  %2080 = vmatprep.subr.mxu0 0.0
  %2081 = vmatpush1.msra.mxu0 %v297
  %2082 = vmatprep.subr.mxu0 0.0
  %2083 = vmatpush2.msra.mxu0 0.0
  %2084 = vmatprep.subr.mxu0 0.0
  %2085 = vmatpush2.msra.mxu0 0.0
  %2086 = vmatprep.subr.mxu0 0.0
  %2087 = vmatpush2.msra.mxu0 0.0
  %2088 = vmatprep.subr.mxu0 0.0
  %2089 = vmatpush2.msra.mxu0 0.0
  %2090 = vmatprep.subr.mxu0 0.0
  %2091 = vmatpush2.msra.mxu0 0.0
  %2092 = vmatprep.subr.mxu0 0.0
  %2093 = vmatpush2.msra.mxu0 0.0
  %2094 = vmatprep.subr.mxu0 0.0
  %2095 = vmatpush2.msra.mxu0 0.0
  %2096 = vmatprep.subr.mxu0 0.0
  %2097 = vmatpush2.msra.mxu0 0.0
  %2098 = vmatprep.subr.mxu0 0.0
  %2099 = vmatpush2.msra.mxu0 0.0
  %2100 = vmatprep.subr.mxu0 0.0
  %2101 = vmatpush2.msra.mxu0 0.0
  %2102 = vmatprep.subr.mxu0 0.0
  %2103 = vmatpush2.msra.mxu0 0.0
  %2104 = vmatprep.subr.mxu0 0.0
  %2105 = vmatpush2.msra.mxu0 0.0
  %2106 = vmatprep.subr.mxu0 0.0
  %2107 = vmatpush2.msra.mxu0 0.0
  %2108 = vmatprep.subr.mxu0 0.0
  %2109 = vmatpush2.msra.mxu0 0.0
  %2110 = vmatprep.subr.mxu0 0.0
  %2111 = vmatpush2.msra.mxu0 0.0
  %2112 = vmatprep.subr.mxu0 0.0
  %2113 = vmatpush2.msra.mxu0 0.0
  %2114 = vmatprep.mubr.f32.mxu0 0.0
  %2115 = vmatmul.mubr.f32.gmra.mxu0 %v1878
  %v2116 = vpop.f32.mrf.mxu0
  %v2117 = vadd.f32 0.0, %v2116
  %v2118 = vpop.f32.mrf.mxu0
  %2119 = vdwg.mxu0
  %v2121 = vrot.slane %v2117, 4
  %v2123 = vadd.f32 %v390, %v2121
  %v2124 = vxor.u32 %v2123, 2147483648
  %v2125 = vmul.f32 %v2124, 1.442695
  %v2126 = vpow.pop %v2125
  %v2127 = vadd.f32 %v2126, 1.0
  %v2128 = vrcp.pop %v2127
  %v2129 = vmul.f32 1.0, %v2128
  %v2130 = vtanh.pop %v2123
  %v2132 = vrot.slane %v1867, 6
  %v2134 = vmul.f32 %v2129, %v2132
  %2136 = vrot.lane.b32.xlu0 %v2130, 80
  %v2137 = vpop.permute.xlu0 %2136
  %v2139 = vmul.f32 %v2129, %v2137
  %2141 = vrot.lane.b32.xlu0 %v2139, 16
  %v2142 = vpop.permute.xlu0 %2141
  %v2144 = vadd.f32 %v2134, %v2142
  %v2145 = vtanh.pop %v2144
  %2147 = vrot.lane.b32.xlu0 %v2145, 16
  %v2148 = vpop.permute.xlu0 %2147
  %v2150 = vmul.f32 %v2129, %v2148
  %v2152 = vrot.slane %v2150, 4
  %2153 = vrot.lane.b32.xlu0 %v2152, 96
  %v2154 = vpop.permute.xlu0 %2153
  %v2155 = vsel %vm186, %v2154, 0
  %2157 = vmatprep.subr.mxu0 0.0
  %2158 = vmatpush1.msra.mxu0 0.0
  %2159 = vmatprep.subr.mxu0 0.0
  %2160 = vmatpush1.msra.mxu0 0.0
  %2161 = vmatprep.subr.mxu0 0.0
  %2162 = vmatpush1.msra.mxu0 0.0
  %2163 = vmatprep.subr.mxu0 0.0
  %2164 = vmatpush1.msra.mxu0 0.0
  %2165 = vmatprep.subr.mxu0 0.0
  %2166 = vmatpush1.msra.mxu0 0.0
  %2167 = vmatprep.subr.mxu0 0.0
  %2168 = vmatpush1.msra.mxu0 0.0
  %2169 = vmatprep.subr.mxu0 0.0
  %2170 = vmatpush1.msra.mxu0 0.0
  %2171 = vmatprep.subr.mxu0 0.0
  %2172 = vmatpush1.msra.mxu0 0.0
  %2173 = vmatprep.subr.mxu0 0.0
  %2174 = vmatpush1.msra.mxu0 0.0
  %2175 = vmatprep.subr.mxu0 0.0
  %2176 = vmatpush1.msra.mxu0 0.0
  %2177 = vmatprep.subr.mxu0 0.0
  %2178 = vmatpush1.msra.mxu0 0.0
  %2179 = vmatprep.subr.mxu0 0.0
  %2180 = vmatpush1.msra.mxu0 0.0
  %2181 = vmatprep.subr.mxu0 0.0
  %2182 = vmatpush1.msra.mxu0 0.0
  %2183 = vmatprep.subr.mxu0 0.0
  %2184 = vmatpush1.msra.mxu0 0.0
  %2185 = vmatprep.subr.mxu0 0.0
  %2186 = vmatpush1.msra.mxu0 %v301
  %2187 = vmatprep.subr.mxu0 0.0
  %2188 = vmatpush1.msra.mxu0 %v300
  %2189 = vmatprep.subr.mxu0 0.0
  %2190 = vmatpush2.msra.mxu0 0.0
  %2191 = vmatprep.subr.mxu0 0.0
  %2192 = vmatpush2.msra.mxu0 0.0
  %2193 = vmatprep.subr.mxu0 0.0
  %2194 = vmatpush2.msra.mxu0 0.0
  %2195 = vmatprep.subr.mxu0 0.0
  %2196 = vmatpush2.msra.mxu0 0.0
  %2197 = vmatprep.subr.mxu0 0.0
  %2198 = vmatpush2.msra.mxu0 0.0
  %2199 = vmatprep.subr.mxu0 0.0
  %2200 = vmatpush2.msra.mxu0 0.0
  %2201 = vmatprep.subr.mxu0 0.0
  %2202 = vmatpush2.msra.mxu0 0.0
  %2203 = vmatprep.subr.mxu0 0.0
  %2204 = vmatpush2.msra.mxu0 0.0
  %2205 = vmatprep.subr.mxu0 0.0
  %2206 = vmatpush2.msra.mxu0 0.0
  %2207 = vmatprep.subr.mxu0 0.0
  %2208 = vmatpush2.msra.mxu0 0.0
  %2209 = vmatprep.subr.mxu0 0.0
  %2210 = vmatpush2.msra.mxu0 0.0
  %2211 = vmatprep.subr.mxu0 0.0
  %2212 = vmatpush2.msra.mxu0 0.0
  %2213 = vmatprep.subr.mxu0 0.0
  %2214 = vmatpush2.msra.mxu0 0.0
  %2215 = vmatprep.subr.mxu0 0.0
  %2216 = vmatpush2.msra.mxu0 0.0
  %2217 = vmatprep.subr.mxu0 0.0
  %2218 = vmatpush2.msra.mxu0 0.0
  %2219 = vmatprep.subr.mxu0 0.0
  %2220 = vmatpush2.msra.mxu0 0.0
  %2221 = vmatprep.mubr.f32.mxu0 0.0
  %2222 = vmatmul.mubr.f32.gmra.mxu0 %v2155
  %v2223 = vpop.f32.mrf.mxu0
  %v2224 = vadd.f32 %v498, %v2223
  %v2225 = vpop.f32.mrf.mxu0
  %2226 = vdwg.mxu0
  %2228 = vrot.lane.b32.xlu0 %v2049, 96
  %v2229 = vpop.permute.xlu0 %2228
  %v2230 = vsel %vm186, %v2229, 0
  %2232 = vmatprep.subr.mxu0 0.0
  %2233 = vmatpush1.msra.mxu0 0.0
  %2234 = vmatprep.subr.mxu0 0.0
  %2235 = vmatpush1.msra.mxu0 0.0
  %2236 = vmatprep.subr.mxu0 0.0
  %2237 = vmatpush1.msra.mxu0 0.0
  %2238 = vmatprep.subr.mxu0 0.0
  %2239 = vmatpush1.msra.mxu0 0.0
  %2240 = vmatprep.subr.mxu0 0.0
  %2241 = vmatpush1.msra.mxu0 0.0
  %2242 = vmatprep.subr.mxu0 0.0
  %2243 = vmatpush1.msra.mxu0 0.0
  %2244 = vmatprep.subr.mxu0 0.0
  %2245 = vmatpush1.msra.mxu0 0.0
  %2246 = vmatprep.subr.mxu0 0.0
  %2247 = vmatpush1.msra.mxu0 0.0
  %2248 = vmatprep.subr.mxu0 0.0
  %2249 = vmatpush1.msra.mxu0 0.0
  %2250 = vmatprep.subr.mxu0 0.0
  %2251 = vmatpush1.msra.mxu0 0.0
  %2252 = vmatprep.subr.mxu0 0.0
  %2253 = vmatpush1.msra.mxu0 0.0
  %2254 = vmatprep.subr.mxu0 0.0
  %2255 = vmatpush1.msra.mxu0 0.0
  %2256 = vmatprep.subr.mxu0 0.0
  %2257 = vmatpush1.msra.mxu0 0.0
  %2258 = vmatprep.subr.mxu0 0.0
  %2259 = vmatpush1.msra.mxu0 0.0
  %2260 = vmatprep.subr.mxu0 0.0
  %2261 = vmatpush1.msra.mxu0 %v303
  %2262 = vmatprep.subr.mxu0 0.0
  %2263 = vmatpush1.msra.mxu0 %v302
  %2264 = vmatprep.subr.mxu0 0.0
  %2265 = vmatpush2.msra.mxu0 0.0
  %2266 = vmatprep.subr.mxu0 0.0
  %2267 = vmatpush2.msra.mxu0 0.0
  %2268 = vmatprep.subr.mxu0 0.0
  %2269 = vmatpush2.msra.mxu0 0.0
  %2270 = vmatprep.subr.mxu0 0.0
  %2271 = vmatpush2.msra.mxu0 0.0
  %2272 = vmatprep.subr.mxu0 0.0
  %2273 = vmatpush2.msra.mxu0 0.0
  %2274 = vmatprep.subr.mxu0 0.0
  %2275 = vmatpush2.msra.mxu0 0.0
  %2276 = vmatprep.subr.mxu0 0.0
  %2277 = vmatpush2.msra.mxu0 0.0
  %2278 = vmatprep.subr.mxu0 0.0
  %2279 = vmatpush2.msra.mxu0 0.0
  %2280 = vmatprep.subr.mxu0 0.0
  %2281 = vmatpush2.msra.mxu0 0.0
  %2282 = vmatprep.subr.mxu0 0.0
  %2283 = vmatpush2.msra.mxu0 0.0
  %2284 = vmatprep.subr.mxu0 0.0
  %2285 = vmatpush2.msra.mxu0 0.0
  %2286 = vmatprep.subr.mxu0 0.0
  %2287 = vmatpush2.msra.mxu0 0.0
  %2288 = vmatprep.subr.mxu0 0.0
  %2289 = vmatpush2.msra.mxu0 0.0
  %2290 = vmatprep.subr.mxu0 0.0
  %2291 = vmatpush2.msra.mxu0 0.0
  %2292 = vmatprep.subr.mxu0 0.0
  %2293 = vmatpush2.msra.mxu0 0.0
  %2294 = vmatprep.subr.mxu0 0.0
  %2295 = vmatpush2.msra.mxu0 0.0
  %2296 = vmatprep.mubr.f32.mxu0 0.0
  %2297 = vmatmul.mubr.f32.gmra.mxu0 %v2230
  %v2298 = vpop.f32.mrf.mxu0
  %v2299 = vadd.f32 0.0, %v2298
  %v2300 = vpop.f32.mrf.mxu0
  %2301 = vdwg.mxu0
  %v2302 = vadd.f32 %v2224, %v2299
  %v2303 = vxor.u32 %v2302, 2147483648
  %v2304 = vmul.f32 %v2303, 1.442695
  %v2305 = vpow.pop %v2304
  %v2306 = vadd.f32 %v2305, 1.0
  %v2307 = vrcp.pop %v2306
  %v2308 = vmul.f32 1.0, %v2307
  %v2309 = vtanh.pop %v2302
  %v2310 = vmul.f32 %v2308, %v2043
  %2312 = vrot.lane.b32.xlu0 %v2309, 80
  %v2313 = vpop.permute.xlu0 %2312
  %v2315 = vmul.f32 %v2308, %v2313
  %2317 = vrot.lane.b32.xlu0 %v2315, 16
  %v2318 = vpop.permute.xlu0 %2317
  %v2320 = vadd.f32 %v2310, %v2318
  %v2321 = vtanh.pop %v2320
  %2323 = vrot.lane.b32.xlu0 %v2321, 16
  %v2324 = vpop.permute.xlu0 %2323
  %v2326 = vmul.f32 %v2308, %v2324
  %2327 = vmatprep.subr.mxu0 0.0
  %2328 = vmatpush1.msra.mxu0 0.0
  %2329 = vmatprep.subr.mxu0 0.0
  %2330 = vmatpush1.msra.mxu0 0.0
  %2331 = vmatprep.subr.mxu0 0.0
  %2332 = vmatpush1.msra.mxu0 0.0
  %2333 = vmatprep.subr.mxu0 0.0
  %2334 = vmatpush1.msra.mxu0 0.0
  %2335 = vmatprep.subr.mxu0 0.0
  %2336 = vmatpush1.msra.mxu0 0.0
  %2337 = vmatprep.subr.mxu0 0.0
  %2338 = vmatpush1.msra.mxu0 0.0
  %2339 = vmatprep.subr.mxu0 0.0
  %2340 = vmatpush1.msra.mxu0 0.0
  %2341 = vmatprep.subr.mxu0 0.0
  %2342 = vmatpush1.msra.mxu0 0.0
  %2343 = vmatprep.subr.mxu0 0.0
  %2344 = vmatpush1.msra.mxu0 0.0
  %2345 = vmatprep.subr.mxu0 0.0
  %2346 = vmatpush1.msra.mxu0 0.0
  %2347 = vmatprep.subr.mxu0 0.0
  %2348 = vmatpush1.msra.mxu0 0.0
  %2349 = vmatprep.subr.mxu0 0.0
  %2350 = vmatpush1.msra.mxu0 0.0
  %2351 = vmatprep.subr.mxu0 0.0
  %2352 = vmatpush1.msra.mxu0 0.0
  %2353 = vmatprep.subr.mxu0 0.0
  %2354 = vmatpush1.msra.mxu0 0.0
  %2355 = vmatprep.subr.mxu0 0.0
  %2356 = vmatpush1.msra.mxu0 %v298
  %2357 = vmatprep.subr.mxu0 0.0
  %2358 = vmatpush1.msra.mxu0 %v297
  %2359 = vmatprep.subr.mxu0 0.0
  %2360 = vmatpush2.msra.mxu0 0.0
  %2361 = vmatprep.subr.mxu0 0.0
  %2362 = vmatpush2.msra.mxu0 0.0
  %2363 = vmatprep.subr.mxu0 0.0
  %2364 = vmatpush2.msra.mxu0 0.0
  %2365 = vmatprep.subr.mxu0 0.0
  %2366 = vmatpush2.msra.mxu0 0.0
  %2367 = vmatprep.subr.mxu0 0.0
  %2368 = vmatpush2.msra.mxu0 0.0
  %2369 = vmatprep.subr.mxu0 0.0
  %2370 = vmatpush2.msra.mxu0 0.0
  %2371 = vmatprep.subr.mxu0 0.0
  %2372 = vmatpush2.msra.mxu0 0.0
  %2373 = vmatprep.subr.mxu0 0.0
  %2374 = vmatpush2.msra.mxu0 0.0
  %2375 = vmatprep.subr.mxu0 0.0
  %2376 = vmatpush2.msra.mxu0 0.0
  %2377 = vmatprep.subr.mxu0 0.0
  %2378 = vmatpush2.msra.mxu0 0.0
  %2379 = vmatprep.subr.mxu0 0.0
  %2380 = vmatpush2.msra.mxu0 0.0
  %2381 = vmatprep.subr.mxu0 0.0
  %2382 = vmatpush2.msra.mxu0 0.0
  %2383 = vmatprep.subr.mxu0 0.0
  %2384 = vmatpush2.msra.mxu0 0.0
  %2385 = vmatprep.subr.mxu0 0.0
  %2386 = vmatpush2.msra.mxu0 0.0
  %2387 = vmatprep.subr.mxu0 0.0
  %2388 = vmatpush2.msra.mxu0 0.0
  %2389 = vmatprep.subr.mxu0 0.0
  %2390 = vmatpush2.msra.mxu0 0.0
  %2391 = vmatprep.mubr.f32.mxu0 0.0
  %2392 = vmatmul.mubr.f32.gmra.mxu0 %v2155
  %v2393 = vpop.f32.mrf.mxu0
  %v2394 = vadd.f32 0.0, %v2393
  %v2395 = vpop.f32.mrf.mxu0
  %2396 = vdwg.mxu0
  %v2398 = vrot.slane %v2394, 2
  %v2400 = vadd.f32 %v390, %v2398
  %v2401 = vxor.u32 %v2400, 2147483648
  %v2402 = vmul.f32 %v2401, 1.442695
  %v2403 = vpow.pop %v2402
  %v2404 = vadd.f32 %v2403, 1.0
  %v2405 = vrcp.pop %v2404
  %v2406 = vmul.f32 1.0, %v2405
  %v2407 = vtanh.pop %v2400
  %v2409 = vrot.slane %v2144, 6
  %v2411 = vmul.f32 %v2406, %v2409
  %2413 = vrot.lane.b32.xlu0 %v2407, 80
  %v2414 = vpop.permute.xlu0 %2413
  %v2416 = vmul.f32 %v2406, %v2414
  %2418 = vrot.lane.b32.xlu0 %v2416, 16
  %v2419 = vpop.permute.xlu0 %2418
  %v2421 = vadd.f32 %v2411, %v2419
  %v2422 = vtanh.pop %v2421
  %2424 = vrot.lane.b32.xlu0 %v2422, 16
  %v2425 = vpop.permute.xlu0 %2424
  %v2427 = vmul.f32 %v2406, %v2425
  %v2429 = vrot.slane %v2427, 6
  %2430 = vrot.lane.b32.xlu0 %v2429, 96
  %v2431 = vpop.permute.xlu0 %2430
  %v2432 = vsel %vm186, %v2431, 0
  %2434 = vmatprep.subr.mxu0 0.0
  %2435 = vmatpush1.msra.mxu0 0.0
  %2436 = vmatprep.subr.mxu0 0.0
  %2437 = vmatpush1.msra.mxu0 0.0
  %2438 = vmatprep.subr.mxu0 0.0
  %2439 = vmatpush1.msra.mxu0 0.0
  %2440 = vmatprep.subr.mxu0 0.0
  %2441 = vmatpush1.msra.mxu0 0.0
  %2442 = vmatprep.subr.mxu0 0.0
  %2443 = vmatpush1.msra.mxu0 0.0
  %2444 = vmatprep.subr.mxu0 0.0
  %2445 = vmatpush1.msra.mxu0 0.0
  %2446 = vmatprep.subr.mxu0 0.0
  %2447 = vmatpush1.msra.mxu0 0.0
  %2448 = vmatprep.subr.mxu0 0.0
  %2449 = vmatpush1.msra.mxu0 0.0
  %2450 = vmatprep.subr.mxu0 0.0
  %2451 = vmatpush1.msra.mxu0 0.0
  %2452 = vmatprep.subr.mxu0 0.0
  %2453 = vmatpush1.msra.mxu0 0.0
  %2454 = vmatprep.subr.mxu0 0.0
  %2455 = vmatpush1.msra.mxu0 0.0
  %2456 = vmatprep.subr.mxu0 0.0
  %2457 = vmatpush1.msra.mxu0 0.0
  %2458 = vmatprep.subr.mxu0 0.0
  %2459 = vmatpush1.msra.mxu0 0.0
  %2460 = vmatprep.subr.mxu0 0.0
  %2461 = vmatpush1.msra.mxu0 0.0
  %2462 = vmatprep.subr.mxu0 0.0
  %2463 = vmatpush1.msra.mxu0 %v301
  %2464 = vmatprep.subr.mxu0 0.0
  %2465 = vmatpush1.msra.mxu0 %v300
  %2466 = vmatprep.subr.mxu0 0.0
  %2467 = vmatpush2.msra.mxu0 0.0
  %2468 = vmatprep.subr.mxu0 0.0
  %2469 = vmatpush2.msra.mxu0 0.0
  %2470 = vmatprep.subr.mxu0 0.0
  %2471 = vmatpush2.msra.mxu0 0.0
  %2472 = vmatprep.subr.mxu0 0.0
  %2473 = vmatpush2.msra.mxu0 0.0
  %2474 = vmatprep.subr.mxu0 0.0
  %2475 = vmatpush2.msra.mxu0 0.0
  %2476 = vmatprep.subr.mxu0 0.0
  %2477 = vmatpush2.msra.mxu0 0.0
  %2478 = vmatprep.subr.mxu0 0.0
  %2479 = vmatpush2.msra.mxu0 0.0
  %2480 = vmatprep.subr.mxu0 0.0
  %2481 = vmatpush2.msra.mxu0 0.0
  %2482 = vmatprep.subr.mxu0 0.0
  %2483 = vmatpush2.msra.mxu0 0.0
  %2484 = vmatprep.subr.mxu0 0.0
  %2485 = vmatpush2.msra.mxu0 0.0
  %2486 = vmatprep.subr.mxu0 0.0
  %2487 = vmatpush2.msra.mxu0 0.0
  %2488 = vmatprep.subr.mxu0 0.0
  %2489 = vmatpush2.msra.mxu0 0.0
  %2490 = vmatprep.subr.mxu0 0.0
  %2491 = vmatpush2.msra.mxu0 0.0
  %2492 = vmatprep.subr.mxu0 0.0
  %2493 = vmatpush2.msra.mxu0 0.0
  %2494 = vmatprep.subr.mxu0 0.0
  %2495 = vmatpush2.msra.mxu0 0.0
  %2496 = vmatprep.subr.mxu0 0.0
  %2497 = vmatpush2.msra.mxu0 0.0
  %2498 = vmatprep.mubr.f32.mxu0 0.0
  %2499 = vmatmul.mubr.f32.gmra.mxu0 %v2432
  %v2500 = vpop.f32.mrf.mxu0
  %v2501 = vadd.f32 %v498, %v2500
  %v2502 = vpop.f32.mrf.mxu0
  %2503 = vdwg.mxu0
  %2505 = vrot.lane.b32.xlu0 %v2326, 96
  %v2506 = vpop.permute.xlu0 %2505
  %v2507 = vsel %vm186, %v2506, 0
  %2509 = vmatprep.subr.mxu0 0.0
  %2510 = vmatpush1.msra.mxu0 0.0
  %2511 = vmatprep.subr.mxu0 0.0
  %2512 = vmatpush1.msra.mxu0 0.0
  %2513 = vmatprep.subr.mxu0 0.0
  %2514 = vmatpush1.msra.mxu0 0.0
  %2515 = vmatprep.subr.mxu0 0.0
  %2516 = vmatpush1.msra.mxu0 0.0
  %2517 = vmatprep.subr.mxu0 0.0
  %2518 = vmatpush1.msra.mxu0 0.0
  %2519 = vmatprep.subr.mxu0 0.0
  %2520 = vmatpush1.msra.mxu0 0.0
  %2521 = vmatprep.subr.mxu0 0.0
  %2522 = vmatpush1.msra.mxu0 0.0
  %2523 = vmatprep.subr.mxu0 0.0
  %2524 = vmatpush1.msra.mxu0 0.0
  %2525 = vmatprep.subr.mxu0 0.0
  %2526 = vmatpush1.msra.mxu0 0.0
  %2527 = vmatprep.subr.mxu0 0.0
  %2528 = vmatpush1.msra.mxu0 0.0
  %2529 = vmatprep.subr.mxu0 0.0
  %2530 = vmatpush1.msra.mxu0 0.0
  %2531 = vmatprep.subr.mxu0 0.0
  %2532 = vmatpush1.msra.mxu0 0.0
  %2533 = vmatprep.subr.mxu0 0.0
  %2534 = vmatpush1.msra.mxu0 0.0
  %2535 = vmatprep.subr.mxu0 0.0
  %2536 = vmatpush1.msra.mxu0 0.0
  %2537 = vmatprep.subr.mxu0 0.0
  %2538 = vmatpush1.msra.mxu0 %v303
  %2539 = vmatprep.subr.mxu0 0.0
  %2540 = vmatpush1.msra.mxu0 %v302
  %2541 = vmatprep.subr.mxu0 0.0
  %2542 = vmatpush2.msra.mxu0 0.0
  %2543 = vmatprep.subr.mxu0 0.0
  %2544 = vmatpush2.msra.mxu0 0.0
  %2545 = vmatprep.subr.mxu0 0.0
  %2546 = vmatpush2.msra.mxu0 0.0
  %2547 = vmatprep.subr.mxu0 0.0
  %2548 = vmatpush2.msra.mxu0 0.0
  %2549 = vmatprep.subr.mxu0 0.0
  %2550 = vmatpush2.msra.mxu0 0.0
  %2551 = vmatprep.subr.mxu0 0.0
  %2552 = vmatpush2.msra.mxu0 0.0
  %2553 = vmatprep.subr.mxu0 0.0
  %2554 = vmatpush2.msra.mxu0 0.0
  %2555 = vmatprep.subr.mxu0 0.0
  %2556 = vmatpush2.msra.mxu0 0.0
  %2557 = vmatprep.subr.mxu0 0.0
  %2558 = vmatpush2.msra.mxu0 0.0
  %2559 = vmatprep.subr.mxu0 0.0
  %2560 = vmatpush2.msra.mxu0 0.0
  %2561 = vmatprep.subr.mxu0 0.0
  %2562 = vmatpush2.msra.mxu0 0.0
  %2563 = vmatprep.subr.mxu0 0.0
  %2564 = vmatpush2.msra.mxu0 0.0
  %2565 = vmatprep.subr.mxu0 0.0
  %2566 = vmatpush2.msra.mxu0 0.0
  %2567 = vmatprep.subr.mxu0 0.0
  %2568 = vmatpush2.msra.mxu0 0.0
  %2569 = vmatprep.subr.mxu0 0.0
  %2570 = vmatpush2.msra.mxu0 0.0
  %2571 = vmatprep.subr.mxu0 0.0
  %2572 = vmatpush2.msra.mxu0 0.0
  %2573 = vmatprep.mubr.f32.mxu0 0.0
  %2574 = vmatmul.mubr.f32.gmra.mxu0 %v2507
  %v2575 = vpop.f32.mrf.mxu0
  %v2576 = vadd.f32 0.0, %v2575
  %v2577 = vpop.f32.mrf.mxu0
  %2578 = vdwg.mxu0
  %v2579 = vadd.f32 %v2501, %v2576
  %v2580 = vxor.u32 %v2579, 2147483648
  %v2581 = vmul.f32 %v2580, 1.442695
  %v2582 = vpow.pop %v2581
  %v2583 = vadd.f32 %v2582, 1.0
  %v2584 = vrcp.pop %v2583
  %v2585 = vmul.f32 1.0, %v2584
  %v2586 = vtanh.pop %v2579
  %v2587 = vmul.f32 %v2585, %v2320
  %2589 = vrot.lane.b32.xlu0 %v2586, 80
  %v2590 = vpop.permute.xlu0 %2589
  %v2592 = vmul.f32 %v2585, %v2590
  %2594 = vrot.lane.b32.xlu0 %v2592, 16
  %v2595 = vpop.permute.xlu0 %2594
  %v2597 = vadd.f32 %v2587, %v2595
  %v2598 = vtanh.pop %v2597
  %2600 = vrot.lane.b32.xlu0 %v2598, 16
  %v2601 = vpop.permute.xlu0 %2600
  %v2603 = vmul.f32 %v2585, %v2601
  %2604 = vmatprep.subr.mxu0 0.0
  %2605 = vmatpush1.msra.mxu0 0.0
  %2606 = vmatprep.subr.mxu0 0.0
  %2607 = vmatpush1.msra.mxu0 0.0
  %2608 = vmatprep.subr.mxu0 0.0
  %2609 = vmatpush1.msra.mxu0 0.0
  %2610 = vmatprep.subr.mxu0 0.0
  %2611 = vmatpush1.msra.mxu0 0.0
  %2612 = vmatprep.subr.mxu0 0.0
  %2613 = vmatpush1.msra.mxu0 0.0
  %2614 = vmatprep.subr.mxu0 0.0
  %2615 = vmatpush1.msra.mxu0 0.0
  %2616 = vmatprep.subr.mxu0 0.0
  %2617 = vmatpush1.msra.mxu0 0.0
  %2618 = vmatprep.subr.mxu0 0.0
  %2619 = vmatpush1.msra.mxu0 0.0
  %2620 = vmatprep.subr.mxu0 0.0
  %2621 = vmatpush1.msra.mxu0 0.0
  %2622 = vmatprep.subr.mxu0 0.0
  %2623 = vmatpush1.msra.mxu0 0.0
  %2624 = vmatprep.subr.mxu0 0.0
  %2625 = vmatpush1.msra.mxu0 0.0
  %2626 = vmatprep.subr.mxu0 0.0
  %2627 = vmatpush1.msra.mxu0 0.0
  %2628 = vmatprep.subr.mxu0 0.0
  %2629 = vmatpush1.msra.mxu0 0.0
  %2630 = vmatprep.subr.mxu0 0.0
  %2631 = vmatpush1.msra.mxu0 0.0
  %2632 = vmatprep.subr.mxu0 0.0
  %2633 = vmatpush1.msra.mxu0 %v298
  %2634 = vmatprep.subr.mxu0 0.0
  %2635 = vmatpush1.msra.mxu0 %v297
  %2636 = vmatprep.subr.mxu0 0.0
  %2637 = vmatpush2.msra.mxu0 0.0
  %2638 = vmatprep.subr.mxu0 0.0
  %2639 = vmatpush2.msra.mxu0 0.0
  %2640 = vmatprep.subr.mxu0 0.0
  %2641 = vmatpush2.msra.mxu0 0.0
  %2642 = vmatprep.subr.mxu0 0.0
  %2643 = vmatpush2.msra.mxu0 0.0
  %2644 = vmatprep.subr.mxu0 0.0
  %2645 = vmatpush2.msra.mxu0 0.0
  %2646 = vmatprep.subr.mxu0 0.0
  %2647 = vmatpush2.msra.mxu0 0.0
  %2648 = vmatprep.subr.mxu0 0.0
  %2649 = vmatpush2.msra.mxu0 0.0
  %2650 = vmatprep.subr.mxu0 0.0
  %2651 = vmatpush2.msra.mxu0 0.0
  %2652 = vmatprep.subr.mxu0 0.0
  %2653 = vmatpush2.msra.mxu0 0.0
  %2654 = vmatprep.subr.mxu0 0.0
  %2655 = vmatpush2.msra.mxu0 0.0
  %2656 = vmatprep.subr.mxu0 0.0
  %2657 = vmatpush2.msra.mxu0 0.0
  %2658 = vmatprep.subr.mxu0 0.0
  %2659 = vmatpush2.msra.mxu0 0.0
  %2660 = vmatprep.subr.mxu0 0.0
  %2661 = vmatpush2.msra.mxu0 0.0
  %2662 = vmatprep.subr.mxu0 0.0
  %2663 = vmatpush2.msra.mxu0 0.0
  %2664 = vmatprep.subr.mxu0 0.0
  %2665 = vmatpush2.msra.mxu0 0.0
  %2666 = vmatprep.subr.mxu0 0.0
  %2667 = vmatpush2.msra.mxu0 0.0
  %2668 = vmatprep.mubr.f32.mxu0 0.0
  %2669 = vmatmul.mubr.f32.gmra.mxu0 %v2432
  %v2670 = vpop.f32.mrf.mxu0
  %v2671 = vadd.f32 0.0, %v2670
  %v2672 = vpop.f32.mrf.mxu0
  %2673 = vdwg.mxu0
  %v2674 = vadd.f32 %v395, %v2671
  %v2675 = vxor.u32 %v2674, 2147483648
  %v2676 = vmul.f32 %v2675, 1.442695
  %v2677 = vpow.pop %v2676
  %v2678 = vadd.f32 %v2677, 1.0
  %v2679 = vrcp.pop %v2678
  %v2680 = vmul.f32 1.0, %v2679
  %v2681 = vtanh.pop %v2674
  %v2683 = vrot.slane %v2421, 6
  %v2685 = vmul.f32 %v2680, %v2683
  %2687 = vrot.lane.b32.xlu0 %v2681, 80
  %v2688 = vpop.permute.xlu0 %2687
  %v2690 = vmul.f32 %v2680, %v2688
  %2692 = vrot.lane.b32.xlu0 %v2690, 16
  %v2693 = vpop.permute.xlu0 %2692
  %v2695 = vadd.f32 %v2685, %v2693
  %v2696 = vtanh.pop %v2695
  %2698 = vrot.lane.b32.xlu0 %v2696, 16
  %v2699 = vpop.permute.xlu0 %2698
  %v2701 = vmul.f32 %v2680, %v2699
  %2703 = vrot.lane.b32.xlu0 %v2701, 96
  %v2704 = vpop.permute.xlu0 %2703
  %v2705 = vsel %vm186, %v2704, 0
  %2707 = vmatprep.subr.mxu0 0.0
  %2708 = vmatpush1.msra.mxu0 0.0
  %2709 = vmatprep.subr.mxu0 0.0
  %2710 = vmatpush1.msra.mxu0 0.0
  %2711 = vmatprep.subr.mxu0 0.0
  %2712 = vmatpush1.msra.mxu0 0.0
  %2713 = vmatprep.subr.mxu0 0.0
  %2714 = vmatpush1.msra.mxu0 0.0
  %2715 = vmatprep.subr.mxu0 0.0
  %2716 = vmatpush1.msra.mxu0 0.0
  %2717 = vmatprep.subr.mxu0 0.0
  %2718 = vmatpush1.msra.mxu0 0.0
  %2719 = vmatprep.subr.mxu0 0.0
  %2720 = vmatpush1.msra.mxu0 0.0
  %2721 = vmatprep.subr.mxu0 0.0
  %2722 = vmatpush1.msra.mxu0 0.0
  %2723 = vmatprep.subr.mxu0 0.0
  %2724 = vmatpush1.msra.mxu0 0.0
  %2725 = vmatprep.subr.mxu0 0.0
  %2726 = vmatpush1.msra.mxu0 0.0
  %2727 = vmatprep.subr.mxu0 0.0
  %2728 = vmatpush1.msra.mxu0 0.0
  %2729 = vmatprep.subr.mxu0 0.0
  %2730 = vmatpush1.msra.mxu0 0.0
  %2731 = vmatprep.subr.mxu0 0.0
  %2732 = vmatpush1.msra.mxu0 0.0
  %2733 = vmatprep.subr.mxu0 0.0
  %2734 = vmatpush1.msra.mxu0 0.0
  %2735 = vmatprep.subr.mxu0 0.0
  %2736 = vmatpush1.msra.mxu0 %v301
  %2737 = vmatprep.subr.mxu0 0.0
  %2738 = vmatpush1.msra.mxu0 %v300
  %2739 = vmatprep.subr.mxu0 0.0
  %2740 = vmatpush2.msra.mxu0 0.0
  %2741 = vmatprep.subr.mxu0 0.0
  %2742 = vmatpush2.msra.mxu0 0.0
  %2743 = vmatprep.subr.mxu0 0.0
  %2744 = vmatpush2.msra.mxu0 0.0
  %2745 = vmatprep.subr.mxu0 0.0
  %2746 = vmatpush2.msra.mxu0 0.0
  %2747 = vmatprep.subr.mxu0 0.0
  %2748 = vmatpush2.msra.mxu0 0.0
  %2749 = vmatprep.subr.mxu0 0.0
  %2750 = vmatpush2.msra.mxu0 0.0
  %2751 = vmatprep.subr.mxu0 0.0
  %2752 = vmatpush2.msra.mxu0 0.0
  %2753 = vmatprep.subr.mxu0 0.0
  %2754 = vmatpush2.msra.mxu0 0.0
  %2755 = vmatprep.subr.mxu0 0.0
  %2756 = vmatpush2.msra.mxu0 0.0
  %2757 = vmatprep.subr.mxu0 0.0
  %2758 = vmatpush2.msra.mxu0 0.0
  %2759 = vmatprep.subr.mxu0 0.0
  %2760 = vmatpush2.msra.mxu0 0.0
  %2761 = vmatprep.subr.mxu0 0.0
  %2762 = vmatpush2.msra.mxu0 0.0
  %2763 = vmatprep.subr.mxu0 0.0
  %2764 = vmatpush2.msra.mxu0 0.0
  %2765 = vmatprep.subr.mxu0 0.0
  %2766 = vmatpush2.msra.mxu0 0.0
  %2767 = vmatprep.subr.mxu0 0.0
  %2768 = vmatpush2.msra.mxu0 0.0
  %2769 = vmatprep.subr.mxu0 0.0
  %2770 = vmatpush2.msra.mxu0 0.0
  %2771 = vmatprep.mubr.f32.mxu0 0.0
  %2772 = vmatmul.mubr.f32.gmra.mxu0 %v2705
  %v2773 = vpop.f32.mrf.mxu0
  %v2774 = vadd.f32 %v498, %v2773
  %v2775 = vpop.f32.mrf.mxu0
  %2776 = vdwg.mxu0
  %2778 = vrot.lane.b32.xlu0 %v2603, 96
  %v2779 = vpop.permute.xlu0 %2778
  %v2780 = vsel %vm186, %v2779, 0
  %2782 = vmatprep.subr.mxu0 0.0
  %2783 = vmatpush1.msra.mxu0 0.0
  %2784 = vmatprep.subr.mxu0 0.0
  %2785 = vmatpush1.msra.mxu0 0.0
  %2786 = vmatprep.subr.mxu0 0.0
  %2787 = vmatpush1.msra.mxu0 0.0
  %2788 = vmatprep.subr.mxu0 0.0
  %2789 = vmatpush1.msra.mxu0 0.0
  %2790 = vmatprep.subr.mxu0 0.0
  %2791 = vmatpush1.msra.mxu0 0.0
  %2792 = vmatprep.subr.mxu0 0.0
  %2793 = vmatpush1.msra.mxu0 0.0
  %2794 = vmatprep.subr.mxu0 0.0
  %2795 = vmatpush1.msra.mxu0 0.0
  %2796 = vmatprep.subr.mxu0 0.0
  %2797 = vmatpush1.msra.mxu0 0.0
  %2798 = vmatprep.subr.mxu0 0.0
  %2799 = vmatpush1.msra.mxu0 0.0
  %2800 = vmatprep.subr.mxu0 0.0
  %2801 = vmatpush1.msra.mxu0 0.0
  %2802 = vmatprep.subr.mxu0 0.0
  %2803 = vmatpush1.msra.mxu0 0.0
  %2804 = vmatprep.subr.mxu0 0.0
  %2805 = vmatpush1.msra.mxu0 0.0
  %2806 = vmatprep.subr.mxu0 0.0
  %2807 = vmatpush1.msra.mxu0 0.0
  %2808 = vmatprep.subr.mxu0 0.0
  %2809 = vmatpush1.msra.mxu0 0.0
  %2810 = vmatprep.subr.mxu0 0.0
  %2811 = vmatpush1.msra.mxu0 %v303
  %2812 = vmatprep.subr.mxu0 0.0
  %2813 = vmatpush1.msra.mxu0 %v302
  %2814 = vmatprep.subr.mxu0 0.0
  %2815 = vmatpush2.msra.mxu0 0.0
  %2816 = vmatprep.subr.mxu0 0.0
  %2817 = vmatpush2.msra.mxu0 0.0
  %2818 = vmatprep.subr.mxu0 0.0
  %2819 = vmatpush2.msra.mxu0 0.0
  %2820 = vmatprep.subr.mxu0 0.0
  %2821 = vmatpush2.msra.mxu0 0.0
  %2822 = vmatprep.subr.mxu0 0.0
  %2823 = vmatpush2.msra.mxu0 0.0
  %2824 = vmatprep.subr.mxu0 0.0
  %2825 = vmatpush2.msra.mxu0 0.0
  %2826 = vmatprep.subr.mxu0 0.0
  %2827 = vmatpush2.msra.mxu0 0.0
  %2828 = vmatprep.subr.mxu0 0.0
  %2829 = vmatpush2.msra.mxu0 0.0
  %2830 = vmatprep.subr.mxu0 0.0
  %2831 = vmatpush2.msra.mxu0 0.0
  %2832 = vmatprep.subr.mxu0 0.0
  %2833 = vmatpush2.msra.mxu0 0.0
  %2834 = vmatprep.subr.mxu0 0.0
  %2835 = vmatpush2.msra.mxu0 0.0
  %2836 = vmatprep.subr.mxu0 0.0
  %2837 = vmatpush2.msra.mxu0 0.0
  %2838 = vmatprep.subr.mxu0 0.0
  %2839 = vmatpush2.msra.mxu0 0.0
  %2840 = vmatprep.subr.mxu0 0.0
  %2841 = vmatpush2.msra.mxu0 0.0
  %2842 = vmatprep.subr.mxu0 0.0
  %2843 = vmatpush2.msra.mxu0 0.0
  %2844 = vmatprep.subr.mxu0 0.0
  %2845 = vmatpush2.msra.mxu0 0.0
  %2846 = vmatprep.mubr.f32.mxu0 0.0
  %2847 = vmatmul.mubr.f32.gmra.mxu0 %v2780
  %v2848 = vpop.f32.mrf.mxu0
  %v2849 = vadd.f32 0.0, %v2848
  %v2850 = vpop.f32.mrf.mxu0
  %2851 = vdwg.mxu0
  %v2852 = vadd.f32 %v2774, %v2849
  %v2853 = vxor.u32 %v2852, 2147483648
  %v2854 = vmul.f32 %v2853, 1.442695
  %v2855 = vpow.pop %v2854
  %v2856 = vadd.f32 %v2855, 1.0
  %v2857 = vrcp.pop %v2856
  %v2858 = vmul.f32 1.0, %v2857
  %v2859 = vtanh.pop %v2852
  %v2860 = vmul.f32 %v2858, %v2597
  %2862 = vrot.lane.b32.xlu0 %v2859, 80
  %v2863 = vpop.permute.xlu0 %2862
  %v2865 = vmul.f32 %v2858, %v2863
  %2867 = vrot.lane.b32.xlu0 %v2865, 16
  %v2868 = vpop.permute.xlu0 %2867
  %v2870 = vadd.f32 %v2860, %v2868
  %v2871 = vtanh.pop %v2870
  %2873 = vrot.lane.b32.xlu0 %v2871, 16
  %v2874 = vpop.permute.xlu0 %2873
  %v2876 = vmul.f32 %v2858, %v2874
  %2877 = vmatprep.subr.mxu0 0.0
  %2878 = vmatpush1.msra.mxu0 0.0
  %2879 = vmatprep.subr.mxu0 0.0
  %2880 = vmatpush1.msra.mxu0 0.0
  %2881 = vmatprep.subr.mxu0 0.0
  %2882 = vmatpush1.msra.mxu0 0.0
  %2883 = vmatprep.subr.mxu0 0.0
  %2884 = vmatpush1.msra.mxu0 0.0
  %2885 = vmatprep.subr.mxu0 0.0
  %2886 = vmatpush1.msra.mxu0 0.0
  %2887 = vmatprep.subr.mxu0 0.0
  %2888 = vmatpush1.msra.mxu0 0.0
  %2889 = vmatprep.subr.mxu0 0.0
  %2890 = vmatpush1.msra.mxu0 0.0
  %2891 = vmatprep.subr.mxu0 0.0
  %2892 = vmatpush1.msra.mxu0 0.0
  %2893 = vmatprep.subr.mxu0 0.0
  %2894 = vmatpush1.msra.mxu0 0.0
  %2895 = vmatprep.subr.mxu0 0.0
  %2896 = vmatpush1.msra.mxu0 0.0
  %2897 = vmatprep.subr.mxu0 0.0
  %2898 = vmatpush1.msra.mxu0 0.0
  %2899 = vmatprep.subr.mxu0 0.0
  %2900 = vmatpush1.msra.mxu0 0.0
  %2901 = vmatprep.subr.mxu0 0.0
  %2902 = vmatpush1.msra.mxu0 0.0
  %2903 = vmatprep.subr.mxu0 0.0
  %2904 = vmatpush1.msra.mxu0 0.0
  %2905 = vmatprep.subr.mxu0 0.0
  %2906 = vmatpush1.msra.mxu0 %v298
  %2907 = vmatprep.subr.mxu0 0.0
  %2908 = vmatpush1.msra.mxu0 %v297
  %2909 = vmatprep.subr.mxu0 0.0
  %2910 = vmatpush2.msra.mxu0 0.0
  %2911 = vmatprep.subr.mxu0 0.0
  %2912 = vmatpush2.msra.mxu0 0.0
  %2913 = vmatprep.subr.mxu0 0.0
  %2914 = vmatpush2.msra.mxu0 0.0
  %2915 = vmatprep.subr.mxu0 0.0
  %2916 = vmatpush2.msra.mxu0 0.0
  %2917 = vmatprep.subr.mxu0 0.0
  %2918 = vmatpush2.msra.mxu0 0.0
  %2919 = vmatprep.subr.mxu0 0.0
  %2920 = vmatpush2.msra.mxu0 0.0
  %2921 = vmatprep.subr.mxu0 0.0
  %2922 = vmatpush2.msra.mxu0 0.0
  %2923 = vmatprep.subr.mxu0 0.0
  %2924 = vmatpush2.msra.mxu0 0.0
  %2925 = vmatprep.subr.mxu0 0.0
  %2926 = vmatpush2.msra.mxu0 0.0
  %2927 = vmatprep.subr.mxu0 0.0
  %2928 = vmatpush2.msra.mxu0 0.0
  %2929 = vmatprep.subr.mxu0 0.0
  %2930 = vmatpush2.msra.mxu0 0.0
  %2931 = vmatprep.subr.mxu0 0.0
  %2932 = vmatpush2.msra.mxu0 0.0
  %2933 = vmatprep.subr.mxu0 0.0
  %2934 = vmatpush2.msra.mxu0 0.0
  %2935 = vmatprep.subr.mxu0 0.0
  %2936 = vmatpush2.msra.mxu0 0.0
  %2937 = vmatprep.subr.mxu0 0.0
  %2938 = vmatpush2.msra.mxu0 0.0
  %2939 = vmatprep.subr.mxu0 0.0
  %2940 = vmatpush2.msra.mxu0 0.0
  %2941 = vmatprep.mubr.f32.mxu0 0.0
  %2942 = vmatmul.mubr.f32.gmra.mxu0 %v2705
  %v2943 = vpop.f32.mrf.mxu0
  %v2944 = vadd.f32 0.0, %v2943
  %v2945 = vpop.f32.mrf.mxu0
  %2946 = vdwg.mxu0
  %v2948 = vrot.slane %v2944, 6
  %v2950 = vadd.f32 %v395, %v2948
  %v2951 = vxor.u32 %v2950, 2147483648
  %v2952 = vmul.f32 %v2951, 1.442695
  %v2953 = vpow.pop %v2952
  %v2954 = vadd.f32 %v2953, 1.0
  %v2955 = vrcp.pop %v2954
  %v2956 = vmul.f32 1.0, %v2955
  %v2957 = vtanh.pop %v2950
  %v2959 = vrot.slane %v2695, 6
  %v2961 = vmul.f32 %v2956, %v2959
  %2963 = vrot.lane.b32.xlu0 %v2957, 80
  %v2964 = vpop.permute.xlu0 %2963
  %v2966 = vmul.f32 %v2956, %v2964
  %2968 = vrot.lane.b32.xlu0 %v2966, 16
  %v2969 = vpop.permute.xlu0 %2968
  %v2971 = vadd.f32 %v2961, %v2969
  %v2972 = vtanh.pop %v2971
  %2974 = vrot.lane.b32.xlu0 %v2972, 16
  %v2975 = vpop.permute.xlu0 %2974
  %v2977 = vmul.f32 %v2956, %v2975
  %v2979 = vrot.slane %v2977, 2
  %2980 = vrot.lane.b32.xlu0 %v2979, 96
  %v2981 = vpop.permute.xlu0 %2980
  %v2982 = vsel %vm186, %v2981, 0
  %2984 = vmatprep.subr.mxu0 0.0
  %2985 = vmatpush1.msra.mxu0 0.0
  %2986 = vmatprep.subr.mxu0 0.0
  %2987 = vmatpush1.msra.mxu0 0.0
  %2988 = vmatprep.subr.mxu0 0.0
  %2989 = vmatpush1.msra.mxu0 0.0
  %2990 = vmatprep.subr.mxu0 0.0
  %2991 = vmatpush1.msra.mxu0 0.0
  %2992 = vmatprep.subr.mxu0 0.0
  %2993 = vmatpush1.msra.mxu0 0.0
  %2994 = vmatprep.subr.mxu0 0.0
  %2995 = vmatpush1.msra.mxu0 0.0
  %2996 = vmatprep.subr.mxu0 0.0
  %2997 = vmatpush1.msra.mxu0 0.0
  %2998 = vmatprep.subr.mxu0 0.0
  %2999 = vmatpush1.msra.mxu0 0.0
  %3000 = vmatprep.subr.mxu0 0.0
  %3001 = vmatpush1.msra.mxu0 0.0
  %3002 = vmatprep.subr.mxu0 0.0
  %3003 = vmatpush1.msra.mxu0 0.0
  %3004 = vmatprep.subr.mxu0 0.0
  %3005 = vmatpush1.msra.mxu0 0.0
  %3006 = vmatprep.subr.mxu0 0.0
  %3007 = vmatpush1.msra.mxu0 0.0
  %3008 = vmatprep.subr.mxu0 0.0
  %3009 = vmatpush1.msra.mxu0 0.0
  %3010 = vmatprep.subr.mxu0 0.0
  %3011 = vmatpush1.msra.mxu0 0.0
  %3012 = vmatprep.subr.mxu0 0.0
  %3013 = vmatpush1.msra.mxu0 %v301
  %3014 = vmatprep.subr.mxu0 0.0
  %3015 = vmatpush1.msra.mxu0 %v300
  %3016 = vmatprep.subr.mxu0 0.0
  %3017 = vmatpush2.msra.mxu0 0.0
  %3018 = vmatprep.subr.mxu0 0.0
  %3019 = vmatpush2.msra.mxu0 0.0
  %3020 = vmatprep.subr.mxu0 0.0
  %3021 = vmatpush2.msra.mxu0 0.0
  %3022 = vmatprep.subr.mxu0 0.0
  %3023 = vmatpush2.msra.mxu0 0.0
  %3024 = vmatprep.subr.mxu0 0.0
  %3025 = vmatpush2.msra.mxu0 0.0
  %3026 = vmatprep.subr.mxu0 0.0
  %3027 = vmatpush2.msra.mxu0 0.0
  %3028 = vmatprep.subr.mxu0 0.0
  %3029 = vmatpush2.msra.mxu0 0.0
  %3030 = vmatprep.subr.mxu0 0.0
  %3031 = vmatpush2.msra.mxu0 0.0
  %3032 = vmatprep.subr.mxu0 0.0
  %3033 = vmatpush2.msra.mxu0 0.0
  %3034 = vmatprep.subr.mxu0 0.0
  %3035 = vmatpush2.msra.mxu0 0.0
  %3036 = vmatprep.subr.mxu0 0.0
  %3037 = vmatpush2.msra.mxu0 0.0
  %3038 = vmatprep.subr.mxu0 0.0
  %3039 = vmatpush2.msra.mxu0 0.0
  %3040 = vmatprep.subr.mxu0 0.0
  %3041 = vmatpush2.msra.mxu0 0.0
  %3042 = vmatprep.subr.mxu0 0.0
  %3043 = vmatpush2.msra.mxu0 0.0
  %3044 = vmatprep.subr.mxu0 0.0
  %3045 = vmatpush2.msra.mxu0 0.0
  %3046 = vmatprep.subr.mxu0 0.0
  %3047 = vmatpush2.msra.mxu0 0.0
  %3048 = vmatprep.mubr.f32.mxu0 0.0
  %3049 = vmatmul.mubr.f32.gmra.mxu0 %v2982
  %v3050 = vpop.f32.mrf.mxu0
  %v3051 = vadd.f32 %v498, %v3050
  %v3052 = vpop.f32.mrf.mxu0
  %3053 = vdwg.mxu0
  %3055 = vrot.lane.b32.xlu0 %v2876, 96
  %v3056 = vpop.permute.xlu0 %3055
  %v3057 = vsel %vm186, %v3056, 0
  %3059 = vmatprep.subr.mxu0 0.0
  %3060 = vmatpush1.msra.mxu0 0.0
  %3061 = vmatprep.subr.mxu0 0.0
  %3062 = vmatpush1.msra.mxu0 0.0
  %3063 = vmatprep.subr.mxu0 0.0
  %3064 = vmatpush1.msra.mxu0 0.0
  %3065 = vmatprep.subr.mxu0 0.0
  %3066 = vmatpush1.msra.mxu0 0.0
  %3067 = vmatprep.subr.mxu0 0.0
  %3068 = vmatpush1.msra.mxu0 0.0
  %3069 = vmatprep.subr.mxu0 0.0
  %3070 = vmatpush1.msra.mxu0 0.0
  %3071 = vmatprep.subr.mxu0 0.0
  %3072 = vmatpush1.msra.mxu0 0.0
  %3073 = vmatprep.subr.mxu0 0.0
  %3074 = vmatpush1.msra.mxu0 0.0
  %3075 = vmatprep.subr.mxu0 0.0
  %3076 = vmatpush1.msra.mxu0 0.0
  %3077 = vmatprep.subr.mxu0 0.0
  %3078 = vmatpush1.msra.mxu0 0.0
  %3079 = vmatprep.subr.mxu0 0.0
  %3080 = vmatpush1.msra.mxu0 0.0
  %3081 = vmatprep.subr.mxu0 0.0
  %3082 = vmatpush1.msra.mxu0 0.0
  %3083 = vmatprep.subr.mxu0 0.0
  %3084 = vmatpush1.msra.mxu0 0.0
  %3085 = vmatprep.subr.mxu0 0.0
  %3086 = vmatpush1.msra.mxu0 0.0
  %3087 = vmatprep.subr.mxu0 0.0
  %3088 = vmatpush1.msra.mxu0 %v303
  %3089 = vmatprep.subr.mxu0 0.0
  %3090 = vmatpush1.msra.mxu0 %v302
  %3091 = vmatprep.subr.mxu0 0.0
  %3092 = vmatpush2.msra.mxu0 0.0
  %3093 = vmatprep.subr.mxu0 0.0
  %3094 = vmatpush2.msra.mxu0 0.0
  %3095 = vmatprep.subr.mxu0 0.0
  %3096 = vmatpush2.msra.mxu0 0.0
  %3097 = vmatprep.subr.mxu0 0.0
  %3098 = vmatpush2.msra.mxu0 0.0
  %3099 = vmatprep.subr.mxu0 0.0
  %3100 = vmatpush2.msra.mxu0 0.0
  %3101 = vmatprep.subr.mxu0 0.0
  %3102 = vmatpush2.msra.mxu0 0.0
  %3103 = vmatprep.subr.mxu0 0.0
  %3104 = vmatpush2.msra.mxu0 0.0
  %3105 = vmatprep.subr.mxu0 0.0
  %3106 = vmatpush2.msra.mxu0 0.0
  %3107 = vmatprep.subr.mxu0 0.0
  %3108 = vmatpush2.msra.mxu0 0.0
  %3109 = vmatprep.subr.mxu0 0.0
  %3110 = vmatpush2.msra.mxu0 0.0
  %3111 = vmatprep.subr.mxu0 0.0
  %3112 = vmatpush2.msra.mxu0 0.0
  %3113 = vmatprep.subr.mxu0 0.0
  %3114 = vmatpush2.msra.mxu0 0.0
  %3115 = vmatprep.subr.mxu0 0.0
  %3116 = vmatpush2.msra.mxu0 0.0
  %3117 = vmatprep.subr.mxu0 0.0
  %3118 = vmatpush2.msra.mxu0 0.0
  %3119 = vmatprep.subr.mxu0 0.0
  %3120 = vmatpush2.msra.mxu0 0.0
  %3121 = vmatprep.subr.mxu0 0.0
  %3122 = vmatpush2.msra.mxu0 0.0
  %3123 = vmatprep.mubr.f32.mxu0 0.0
  %3124 = vmatmul.mubr.f32.gmra.mxu0 %v3057
  %v3125 = vpop.f32.mrf.mxu0
  %v3126 = vadd.f32 0.0, %v3125
  %v3127 = vpop.f32.mrf.mxu0
  %3128 = vdwg.mxu0
  %v3129 = vadd.f32 %v3051, %v3126
  %v3130 = vxor.u32 %v3129, 2147483648
  %v3131 = vmul.f32 %v3130, 1.442695
  %v3132 = vpow.pop %v3131
  %v3133 = vadd.f32 %v3132, 1.0
  %v3134 = vrcp.pop %v3133
  %v3135 = vmul.f32 1.0, %v3134
  %v3136 = vtanh.pop %v3129
  %v3137 = vmul.f32 %v3135, %v2870
  %3139 = vrot.lane.b32.xlu0 %v3136, 80
  %v3140 = vpop.permute.xlu0 %3139
  %v3142 = vmul.f32 %v3135, %v3140
  %3144 = vrot.lane.b32.xlu0 %v3142, 16
  %v3145 = vpop.permute.xlu0 %3144
  %v3147 = vadd.f32 %v3137, %v3145
  %v3148 = vtanh.pop %v3147
  %3150 = vrot.lane.b32.xlu0 %v3148, 16
  %v3151 = vpop.permute.xlu0 %3150
  %v3153 = vmul.f32 %v3135, %v3151
  %3154 = vmatprep.subr.mxu0 0.0
  %3155 = vmatpush1.msra.mxu0 0.0
  %3156 = vmatprep.subr.mxu0 0.0
  %3157 = vmatpush1.msra.mxu0 0.0
  %3158 = vmatprep.subr.mxu0 0.0
  %3159 = vmatpush1.msra.mxu0 0.0
  %3160 = vmatprep.subr.mxu0 0.0
  %3161 = vmatpush1.msra.mxu0 0.0
  %3162 = vmatprep.subr.mxu0 0.0
  %3163 = vmatpush1.msra.mxu0 0.0
  %3164 = vmatprep.subr.mxu0 0.0
  %3165 = vmatpush1.msra.mxu0 0.0
  %3166 = vmatprep.subr.mxu0 0.0
  %3167 = vmatpush1.msra.mxu0 0.0
  %3168 = vmatprep.subr.mxu0 0.0
  %3169 = vmatpush1.msra.mxu0 0.0
  %3170 = vmatprep.subr.mxu0 0.0
  %3171 = vmatpush1.msra.mxu0 0.0
  %3172 = vmatprep.subr.mxu0 0.0
  %3173 = vmatpush1.msra.mxu0 0.0
  %3174 = vmatprep.subr.mxu0 0.0
  %3175 = vmatpush1.msra.mxu0 0.0
  %3176 = vmatprep.subr.mxu0 0.0
  %3177 = vmatpush1.msra.mxu0 0.0
  %3178 = vmatprep.subr.mxu0 0.0
  %3179 = vmatpush1.msra.mxu0 0.0
  %3180 = vmatprep.subr.mxu0 0.0
  %3181 = vmatpush1.msra.mxu0 0.0
  %3182 = vmatprep.subr.mxu0 0.0
  %3183 = vmatpush1.msra.mxu0 %v298
  %3184 = vmatprep.subr.mxu0 0.0
  %3185 = vmatpush1.msra.mxu0 %v297
  %3186 = vmatprep.subr.mxu0 0.0
  %3187 = vmatpush2.msra.mxu0 0.0
  %3188 = vmatprep.subr.mxu0 0.0
  %3189 = vmatpush2.msra.mxu0 0.0
  %3190 = vmatprep.subr.mxu0 0.0
  %3191 = vmatpush2.msra.mxu0 0.0
  %3192 = vmatprep.subr.mxu0 0.0
  %3193 = vmatpush2.msra.mxu0 0.0
  %3194 = vmatprep.subr.mxu0 0.0
  %3195 = vmatpush2.msra.mxu0 0.0
  %3196 = vmatprep.subr.mxu0 0.0
  %3197 = vmatpush2.msra.mxu0 0.0
  %3198 = vmatprep.subr.mxu0 0.0
  %3199 = vmatpush2.msra.mxu0 0.0
  %3200 = vmatprep.subr.mxu0 0.0
  %3201 = vmatpush2.msra.mxu0 0.0
  %3202 = vmatprep.subr.mxu0 0.0
  %3203 = vmatpush2.msra.mxu0 0.0
  %3204 = vmatprep.subr.mxu0 0.0
  %3205 = vmatpush2.msra.mxu0 0.0
  %3206 = vmatprep.subr.mxu0 0.0
  %3207 = vmatpush2.msra.mxu0 0.0
  %3208 = vmatprep.subr.mxu0 0.0
  %3209 = vmatpush2.msra.mxu0 0.0
  %3210 = vmatprep.subr.mxu0 0.0
  %3211 = vmatpush2.msra.mxu0 0.0
  %3212 = vmatprep.subr.mxu0 0.0
  %3213 = vmatpush2.msra.mxu0 0.0
  %3214 = vmatprep.subr.mxu0 0.0
  %3215 = vmatpush2.msra.mxu0 0.0
  %3216 = vmatprep.subr.mxu0 0.0
  %3217 = vmatpush2.msra.mxu0 0.0
  %3218 = vmatprep.mubr.f32.mxu0 0.0
  %3219 = vmatmul.mubr.f32.gmra.mxu0 %v2982
  %v3220 = vpop.f32.mrf.mxu0
  %v3221 = vadd.f32 0.0, %v3220
  %v3222 = vpop.f32.mrf.mxu0
  %3223 = vdwg.mxu0
  %v3225 = vrot.slane %v3221, 4
  %v3227 = vadd.f32 %v395, %v3225
  %v3228 = vxor.u32 %v3227, 2147483648
  %v3229 = vmul.f32 %v3228, 1.442695
  %v3230 = vpow.pop %v3229
  %v3231 = vadd.f32 %v3230, 1.0
  %v3232 = vrcp.pop %v3231
  %v3233 = vmul.f32 1.0, %v3232
  %v3234 = vtanh.pop %v3227
  %v3236 = vrot.slane %v2971, 6
  %v3238 = vmul.f32 %v3233, %v3236
  %3240 = vrot.lane.b32.xlu0 %v3234, 80
  %v3241 = vpop.permute.xlu0 %3240
  %v3243 = vmul.f32 %v3233, %v3241
  %3245 = vrot.lane.b32.xlu0 %v3243, 16
  %v3246 = vpop.permute.xlu0 %3245
  %v3248 = vadd.f32 %v3238, %v3246
  %v3249 = vtanh.pop %v3248
  %3251 = vrot.lane.b32.xlu0 %v3249, 16
  %v3252 = vpop.permute.xlu0 %3251
  %v3254 = vmul.f32 %v3233, %v3252
  %v3256 = vrot.slane %v3254, 4
  %3257 = vrot.lane.b32.xlu0 %v3256, 96
  %v3258 = vpop.permute.xlu0 %3257
  %v3259 = vsel %vm186, %v3258, 0
  %3261 = vmatprep.subr.mxu0 0.0
  %3262 = vmatpush1.msra.mxu0 0.0
  %3263 = vmatprep.subr.mxu0 0.0
  %3264 = vmatpush1.msra.mxu0 0.0
  %3265 = vmatprep.subr.mxu0 0.0
  %3266 = vmatpush1.msra.mxu0 0.0
  %3267 = vmatprep.subr.mxu0 0.0
  %3268 = vmatpush1.msra.mxu0 0.0
  %3269 = vmatprep.subr.mxu0 0.0
  %3270 = vmatpush1.msra.mxu0 0.0
  %3271 = vmatprep.subr.mxu0 0.0
  %3272 = vmatpush1.msra.mxu0 0.0
  %3273 = vmatprep.subr.mxu0 0.0
  %3274 = vmatpush1.msra.mxu0 0.0
  %3275 = vmatprep.subr.mxu0 0.0
  %3276 = vmatpush1.msra.mxu0 0.0
  %3277 = vmatprep.subr.mxu0 0.0
  %3278 = vmatpush1.msra.mxu0 0.0
  %3279 = vmatprep.subr.mxu0 0.0
  %3280 = vmatpush1.msra.mxu0 0.0
  %3281 = vmatprep.subr.mxu0 0.0
  %3282 = vmatpush1.msra.mxu0 0.0
  %3283 = vmatprep.subr.mxu0 0.0
  %3284 = vmatpush1.msra.mxu0 0.0
  %3285 = vmatprep.subr.mxu0 0.0
  %3286 = vmatpush1.msra.mxu0 0.0
  %3287 = vmatprep.subr.mxu0 0.0
  %3288 = vmatpush1.msra.mxu0 0.0
  %3289 = vmatprep.subr.mxu0 0.0
  %3290 = vmatpush1.msra.mxu0 %v301
  %3291 = vmatprep.subr.mxu0 0.0
  %3292 = vmatpush1.msra.mxu0 %v300
  %3293 = vmatprep.subr.mxu0 0.0
  %3294 = vmatpush2.msra.mxu0 0.0
  %3295 = vmatprep.subr.mxu0 0.0
  %3296 = vmatpush2.msra.mxu0 0.0
  %3297 = vmatprep.subr.mxu0 0.0
  %3298 = vmatpush2.msra.mxu0 0.0
  %3299 = vmatprep.subr.mxu0 0.0
  %3300 = vmatpush2.msra.mxu0 0.0
  %3301 = vmatprep.subr.mxu0 0.0
  %3302 = vmatpush2.msra.mxu0 0.0
  %3303 = vmatprep.subr.mxu0 0.0
  %3304 = vmatpush2.msra.mxu0 0.0
  %3305 = vmatprep.subr.mxu0 0.0
  %3306 = vmatpush2.msra.mxu0 0.0
  %3307 = vmatprep.subr.mxu0 0.0
  %3308 = vmatpush2.msra.mxu0 0.0
  %3309 = vmatprep.subr.mxu0 0.0
  %3310 = vmatpush2.msra.mxu0 0.0
  %3311 = vmatprep.subr.mxu0 0.0
  %3312 = vmatpush2.msra.mxu0 0.0
  %3313 = vmatprep.subr.mxu0 0.0
  %3314 = vmatpush2.msra.mxu0 0.0
  %3315 = vmatprep.subr.mxu0 0.0
  %3316 = vmatpush2.msra.mxu0 0.0
  %3317 = vmatprep.subr.mxu0 0.0
  %3318 = vmatpush2.msra.mxu0 0.0
  %3319 = vmatprep.subr.mxu0 0.0
  %3320 = vmatpush2.msra.mxu0 0.0
  %3321 = vmatprep.subr.mxu0 0.0
  %3322 = vmatpush2.msra.mxu0 0.0
  %3323 = vmatprep.subr.mxu0 0.0
  %3324 = vmatpush2.msra.mxu0 0.0
  %3325 = vmatprep.mubr.f32.mxu0 0.0
  %3326 = vmatmul.mubr.f32.gmra.mxu0 %v3259
  %v3327 = vpop.f32.mrf.mxu0
  %v3328 = vadd.f32 %v498, %v3327
  %v3329 = vpop.f32.mrf.mxu0
  %3330 = vdwg.mxu0
  %3332 = vrot.lane.b32.xlu0 %v3153, 96
  %v3333 = vpop.permute.xlu0 %3332
  %v3334 = vsel %vm186, %v3333, 0
  %3336 = vmatprep.subr.mxu0 0.0
  %3337 = vmatpush1.msra.mxu0 0.0
  %3338 = vmatprep.subr.mxu0 0.0
  %3339 = vmatpush1.msra.mxu0 0.0
  %3340 = vmatprep.subr.mxu0 0.0
  %3341 = vmatpush1.msra.mxu0 0.0
  %3342 = vmatprep.subr.mxu0 0.0
  %3343 = vmatpush1.msra.mxu0 0.0
  %3344 = vmatprep.subr.mxu0 0.0
  %3345 = vmatpush1.msra.mxu0 0.0
  %3346 = vmatprep.subr.mxu0 0.0
  %3347 = vmatpush1.msra.mxu0 0.0
  %3348 = vmatprep.subr.mxu0 0.0
  %3349 = vmatpush1.msra.mxu0 0.0
  %3350 = vmatprep.subr.mxu0 0.0
  %3351 = vmatpush1.msra.mxu0 0.0
  %3352 = vmatprep.subr.mxu0 0.0
  %3353 = vmatpush1.msra.mxu0 0.0
  %3354 = vmatprep.subr.mxu0 0.0
  %3355 = vmatpush1.msra.mxu0 0.0
  %3356 = vmatprep.subr.mxu0 0.0
  %3357 = vmatpush1.msra.mxu0 0.0
  %3358 = vmatprep.subr.mxu0 0.0
  %3359 = vmatpush1.msra.mxu0 0.0
  %3360 = vmatprep.subr.mxu0 0.0
  %3361 = vmatpush1.msra.mxu0 0.0
  %3362 = vmatprep.subr.mxu0 0.0
  %3363 = vmatpush1.msra.mxu0 0.0
  %3364 = vmatprep.subr.mxu0 0.0
  %3365 = vmatpush1.msra.mxu0 %v303
  %3366 = vmatprep.subr.mxu0 0.0
  %3367 = vmatpush1.msra.mxu0 %v302
  %3368 = vmatprep.subr.mxu0 0.0
  %3369 = vmatpush2.msra.mxu0 0.0
  %3370 = vmatprep.subr.mxu0 0.0
  %3371 = vmatpush2.msra.mxu0 0.0
  %3372 = vmatprep.subr.mxu0 0.0
  %3373 = vmatpush2.msra.mxu0 0.0
  %3374 = vmatprep.subr.mxu0 0.0
  %3375 = vmatpush2.msra.mxu0 0.0
  %3376 = vmatprep.subr.mxu0 0.0
  %3377 = vmatpush2.msra.mxu0 0.0
  %3378 = vmatprep.subr.mxu0 0.0
  %3379 = vmatpush2.msra.mxu0 0.0
  %3380 = vmatprep.subr.mxu0 0.0
  %3381 = vmatpush2.msra.mxu0 0.0
  %3382 = vmatprep.subr.mxu0 0.0
  %3383 = vmatpush2.msra.mxu0 0.0
  %3384 = vmatprep.subr.mxu0 0.0
  %3385 = vmatpush2.msra.mxu0 0.0
  %3386 = vmatprep.subr.mxu0 0.0
  %3387 = vmatpush2.msra.mxu0 0.0
  %3388 = vmatprep.subr.mxu0 0.0
  %3389 = vmatpush2.msra.mxu0 0.0
  %3390 = vmatprep.subr.mxu0 0.0
  %3391 = vmatpush2.msra.mxu0 0.0
  %3392 = vmatprep.subr.mxu0 0.0
  %3393 = vmatpush2.msra.mxu0 0.0
  %3394 = vmatprep.subr.mxu0 0.0
  %3395 = vmatpush2.msra.mxu0 0.0
  %3396 = vmatprep.subr.mxu0 0.0
  %3397 = vmatpush2.msra.mxu0 0.0
  %3398 = vmatprep.subr.mxu0 0.0
  %3399 = vmatpush2.msra.mxu0 0.0
  %3400 = vmatprep.mubr.f32.mxu0 0.0
  %3401 = vmatmul.mubr.f32.gmra.mxu0 %v3334
  %v3402 = vpop.f32.mrf.mxu0
  %v3403 = vadd.f32 0.0, %v3402
  %v3404 = vpop.f32.mrf.mxu0
  %3405 = vdwg.mxu0
  %v3406 = vadd.f32 %v3328, %v3403
  %v3407 = vxor.u32 %v3406, 2147483648
  %v3408 = vmul.f32 %v3407, 1.442695
  %v3409 = vpow.pop %v3408
  %v3410 = vadd.f32 %v3409, 1.0
  %v3411 = vrcp.pop %v3410
  %v3412 = vmul.f32 1.0, %v3411
  %v3413 = vtanh.pop %v3406
  %v3414 = vmul.f32 %v3412, %v3147
  %3416 = vrot.lane.b32.xlu0 %v3413, 80
  %v3417 = vpop.permute.xlu0 %3416
  %v3419 = vmul.f32 %v3412, %v3417
  %3421 = vrot.lane.b32.xlu0 %v3419, 16
  %v3422 = vpop.permute.xlu0 %3421
  %v3424 = vadd.f32 %v3414, %v3422
  %v3425 = vtanh.pop %v3424
  %3427 = vrot.lane.b32.xlu0 %v3425, 16
  %v3428 = vpop.permute.xlu0 %3427
  %v3430 = vmul.f32 %v3412, %v3428
  %3431 = vmatprep.subr.mxu0 0.0
  %3432 = vmatpush1.msra.mxu0 0.0
  %3433 = vmatprep.subr.mxu0 0.0
  %3434 = vmatpush1.msra.mxu0 0.0
  %3435 = vmatprep.subr.mxu0 0.0
  %3436 = vmatpush1.msra.mxu0 0.0
  %3437 = vmatprep.subr.mxu0 0.0
  %3438 = vmatpush1.msra.mxu0 0.0
  %3439 = vmatprep.subr.mxu0 0.0
  %3440 = vmatpush1.msra.mxu0 0.0
  %3441 = vmatprep.subr.mxu0 0.0
  %3442 = vmatpush1.msra.mxu0 0.0
  %3443 = vmatprep.subr.mxu0 0.0
  %3444 = vmatpush1.msra.mxu0 0.0
  %3445 = vmatprep.subr.mxu0 0.0
  %3446 = vmatpush1.msra.mxu0 0.0
  %3447 = vmatprep.subr.mxu0 0.0
  %3448 = vmatpush1.msra.mxu0 0.0
  %3449 = vmatprep.subr.mxu0 0.0
  %3450 = vmatpush1.msra.mxu0 0.0
  %3451 = vmatprep.subr.mxu0 0.0
  %3452 = vmatpush1.msra.mxu0 0.0
  %3453 = vmatprep.subr.mxu0 0.0
  %3454 = vmatpush1.msra.mxu0 0.0
  %3455 = vmatprep.subr.mxu0 0.0
  %3456 = vmatpush1.msra.mxu0 0.0
  %3457 = vmatprep.subr.mxu0 0.0
  %3458 = vmatpush1.msra.mxu0 0.0
  %3459 = vmatprep.subr.mxu0 0.0
  %3460 = vmatpush1.msra.mxu0 %v298
  %3461 = vmatprep.subr.mxu0 0.0
  %3462 = vmatpush1.msra.mxu0 %v297
  %3463 = vmatprep.subr.mxu0 0.0
  %3464 = vmatpush2.msra.mxu0 0.0
  %3465 = vmatprep.subr.mxu0 0.0
  %3466 = vmatpush2.msra.mxu0 0.0
  %3467 = vmatprep.subr.mxu0 0.0
  %3468 = vmatpush2.msra.mxu0 0.0
  %3469 = vmatprep.subr.mxu0 0.0
  %3470 = vmatpush2.msra.mxu0 0.0
  %3471 = vmatprep.subr.mxu0 0.0
  %3472 = vmatpush2.msra.mxu0 0.0
  %3473 = vmatprep.subr.mxu0 0.0
  %3474 = vmatpush2.msra.mxu0 0.0
  %3475 = vmatprep.subr.mxu0 0.0
  %3476 = vmatpush2.msra.mxu0 0.0
  %3477 = vmatprep.subr.mxu0 0.0
  %3478 = vmatpush2.msra.mxu0 0.0
  %3479 = vmatprep.subr.mxu0 0.0
  %3480 = vmatpush2.msra.mxu0 0.0
  %3481 = vmatprep.subr.mxu0 0.0
  %3482 = vmatpush2.msra.mxu0 0.0
  %3483 = vmatprep.subr.mxu0 0.0
  %3484 = vmatpush2.msra.mxu0 0.0
  %3485 = vmatprep.subr.mxu0 0.0
  %3486 = vmatpush2.msra.mxu0 0.0
  %3487 = vmatprep.subr.mxu0 0.0
  %3488 = vmatpush2.msra.mxu0 0.0
  %3489 = vmatprep.subr.mxu0 0.0
  %3490 = vmatpush2.msra.mxu0 0.0
  %3491 = vmatprep.subr.mxu0 0.0
  %3492 = vmatpush2.msra.mxu0 0.0
  %3493 = vmatprep.subr.mxu0 0.0
  %3494 = vmatpush2.msra.mxu0 0.0
  %3495 = vmatprep.mubr.f32.mxu0 0.0
  %3496 = vmatmul.mubr.f32.gmra.mxu0 %v3259
  %v3497 = vpop.f32.mrf.mxu0
  %v3498 = vadd.f32 0.0, %v3497
  %v3499 = vpop.f32.mrf.mxu0
  %3500 = vdwg.mxu0
  %v3502 = vrot.slane %v3498, 2
  %v3504 = vadd.f32 %v395, %v3502
  %v3505 = vxor.u32 %v3504, 2147483648
  %v3506 = vmul.f32 %v3505, 1.442695
  %v3507 = vpow.pop %v3506
  %v3508 = vadd.f32 %v3507, 1.0
  %v3509 = vrcp.pop %v3508
  %v3510 = vmul.f32 1.0, %v3509
  %v3511 = vtanh.pop %v3504
  %v3513 = vrot.slane %v3248, 6
  %v3515 = vmul.f32 %v3510, %v3513
  %3517 = vrot.lane.b32.xlu0 %v3511, 80
  %v3518 = vpop.permute.xlu0 %3517
  %v3520 = vmul.f32 %v3510, %v3518
  %3522 = vrot.lane.b32.xlu0 %v3520, 16
  %v3523 = vpop.permute.xlu0 %3522
  %v3525 = vadd.f32 %v3515, %v3523
  %v3526 = vtanh.pop %v3525
  %3528 = vrot.lane.b32.xlu0 %v3526, 16
  %v3529 = vpop.permute.xlu0 %3528
  %v3531 = vmul.f32 %v3510, %v3529
  %v3533 = vrot.slane %v3531, 6
  %3534 = vrot.lane.b32.xlu0 %v3533, 96
  %v3535 = vpop.permute.xlu0 %3534
  %v3536 = vsel %vm186, %v3535, 0
  %3538 = vmatprep.subr.mxu0 0.0
  %3539 = vmatpush1.msra.mxu0 0.0
  %3540 = vmatprep.subr.mxu0 0.0
  %3541 = vmatpush1.msra.mxu0 0.0
  %3542 = vmatprep.subr.mxu0 0.0
  %3543 = vmatpush1.msra.mxu0 0.0
  %3544 = vmatprep.subr.mxu0 0.0
  %3545 = vmatpush1.msra.mxu0 0.0
  %3546 = vmatprep.subr.mxu0 0.0
  %3547 = vmatpush1.msra.mxu0 0.0
  %3548 = vmatprep.subr.mxu0 0.0
  %3549 = vmatpush1.msra.mxu0 0.0
  %3550 = vmatprep.subr.mxu0 0.0
  %3551 = vmatpush1.msra.mxu0 0.0
  %3552 = vmatprep.subr.mxu0 0.0
  %3553 = vmatpush1.msra.mxu0 0.0
  %3554 = vmatprep.subr.mxu0 0.0
  %3555 = vmatpush1.msra.mxu0 0.0
  %3556 = vmatprep.subr.mxu0 0.0
  %3557 = vmatpush1.msra.mxu0 0.0
  %3558 = vmatprep.subr.mxu0 0.0
  %3559 = vmatpush1.msra.mxu0 0.0
  %3560 = vmatprep.subr.mxu0 0.0
  %3561 = vmatpush1.msra.mxu0 0.0
  %3562 = vmatprep.subr.mxu0 0.0
  %3563 = vmatpush1.msra.mxu0 0.0
  %3564 = vmatprep.subr.mxu0 0.0
  %3565 = vmatpush1.msra.mxu0 0.0
  %3566 = vmatprep.subr.mxu0 0.0
  %3567 = vmatpush1.msra.mxu0 %v301
  %3568 = vmatprep.subr.mxu0 0.0
  %3569 = vmatpush1.msra.mxu0 %v300
  %3570 = vmatprep.subr.mxu0 0.0
  %3571 = vmatpush2.msra.mxu0 0.0
  %3572 = vmatprep.subr.mxu0 0.0
  %3573 = vmatpush2.msra.mxu0 0.0
  %3574 = vmatprep.subr.mxu0 0.0
  %3575 = vmatpush2.msra.mxu0 0.0
  %3576 = vmatprep.subr.mxu0 0.0
  %3577 = vmatpush2.msra.mxu0 0.0
  %3578 = vmatprep.subr.mxu0 0.0
  %3579 = vmatpush2.msra.mxu0 0.0
  %3580 = vmatprep.subr.mxu0 0.0
  %3581 = vmatpush2.msra.mxu0 0.0
  %3582 = vmatprep.subr.mxu0 0.0
  %3583 = vmatpush2.msra.mxu0 0.0
  %3584 = vmatprep.subr.mxu0 0.0
  %3585 = vmatpush2.msra.mxu0 0.0
  %3586 = vmatprep.subr.mxu0 0.0
  %3587 = vmatpush2.msra.mxu0 0.0
  %3588 = vmatprep.subr.mxu0 0.0
  %3589 = vmatpush2.msra.mxu0 0.0
  %3590 = vmatprep.subr.mxu0 0.0
  %3591 = vmatpush2.msra.mxu0 0.0
  %3592 = vmatprep.subr.mxu0 0.0
  %3593 = vmatpush2.msra.mxu0 0.0
  %3594 = vmatprep.subr.mxu0 0.0
  %3595 = vmatpush2.msra.mxu0 0.0
  %3596 = vmatprep.subr.mxu0 0.0
  %3597 = vmatpush2.msra.mxu0 0.0
  %3598 = vmatprep.subr.mxu0 0.0
  %3599 = vmatpush2.msra.mxu0 0.0
  %3600 = vmatprep.subr.mxu0 0.0
  %3601 = vmatpush2.msra.mxu0 0.0
  %3602 = vmatprep.mubr.f32.mxu0 0.0
  %3603 = vmatmul.mubr.f32.gmra.mxu0 %v3536
  %v3604 = vpop.f32.mrf.mxu0
  %v3605 = vadd.f32 %v498, %v3604
  %v3606 = vpop.f32.mrf.mxu0
  %3607 = vdwg.mxu0
  %3609 = vrot.lane.b32.xlu0 %v3430, 96
  %v3610 = vpop.permute.xlu0 %3609
  %v3611 = vsel %vm186, %v3610, 0
  %3613 = vmatprep.subr.mxu0 0.0
  %3614 = vmatpush1.msra.mxu0 0.0
  %3615 = vmatprep.subr.mxu0 0.0
  %3616 = vmatpush1.msra.mxu0 0.0
  %3617 = vmatprep.subr.mxu0 0.0
  %3618 = vmatpush1.msra.mxu0 0.0
  %3619 = vmatprep.subr.mxu0 0.0
  %3620 = vmatpush1.msra.mxu0 0.0
  %3621 = vmatprep.subr.mxu0 0.0
  %3622 = vmatpush1.msra.mxu0 0.0
  %3623 = vmatprep.subr.mxu0 0.0
  %3624 = vmatpush1.msra.mxu0 0.0
  %3625 = vmatprep.subr.mxu0 0.0
  %3626 = vmatpush1.msra.mxu0 0.0
  %3627 = vmatprep.subr.mxu0 0.0
  %3628 = vmatpush1.msra.mxu0 0.0
  %3629 = vmatprep.subr.mxu0 0.0
  %3630 = vmatpush1.msra.mxu0 0.0
  %3631 = vmatprep.subr.mxu0 0.0
  %3632 = vmatpush1.msra.mxu0 0.0
  %3633 = vmatprep.subr.mxu0 0.0
  %3634 = vmatpush1.msra.mxu0 0.0
  %3635 = vmatprep.subr.mxu0 0.0
  %3636 = vmatpush1.msra.mxu0 0.0
  %3637 = vmatprep.subr.mxu0 0.0
  %3638 = vmatpush1.msra.mxu0 0.0
  %3639 = vmatprep.subr.mxu0 0.0
  %3640 = vmatpush1.msra.mxu0 0.0
  %3641 = vmatprep.subr.mxu0 0.0
  %3642 = vmatpush1.msra.mxu0 %v303
  %3643 = vmatprep.subr.mxu0 0.0
  %3644 = vmatpush1.msra.mxu0 %v302
  %3645 = vmatprep.subr.mxu0 0.0
  %3646 = vmatpush2.msra.mxu0 0.0
  %3647 = vmatprep.subr.mxu0 0.0
  %3648 = vmatpush2.msra.mxu0 0.0
  %3649 = vmatprep.subr.mxu0 0.0
  %3650 = vmatpush2.msra.mxu0 0.0
  %3651 = vmatprep.subr.mxu0 0.0
  %3652 = vmatpush2.msra.mxu0 0.0
  %3653 = vmatprep.subr.mxu0 0.0
  %3654 = vmatpush2.msra.mxu0 0.0
  %3655 = vmatprep.subr.mxu0 0.0
  %3656 = vmatpush2.msra.mxu0 0.0
  %3657 = vmatprep.subr.mxu0 0.0
  %3658 = vmatpush2.msra.mxu0 0.0
  %3659 = vmatprep.subr.mxu0 0.0
  %3660 = vmatpush2.msra.mxu0 0.0
  %3661 = vmatprep.subr.mxu0 0.0
  %3662 = vmatpush2.msra.mxu0 0.0
  %3663 = vmatprep.subr.mxu0 0.0
  %3664 = vmatpush2.msra.mxu0 0.0
  %3665 = vmatprep.subr.mxu0 0.0
  %3666 = vmatpush2.msra.mxu0 0.0
  %3667 = vmatprep.subr.mxu0 0.0
  %3668 = vmatpush2.msra.mxu0 0.0
  %3669 = vmatprep.subr.mxu0 0.0
  %3670 = vmatpush2.msra.mxu0 0.0
  %3671 = vmatprep.subr.mxu0 0.0
  %3672 = vmatpush2.msra.mxu0 0.0
  %3673 = vmatprep.subr.mxu0 0.0
  %3674 = vmatpush2.msra.mxu0 0.0
  %3675 = vmatprep.subr.mxu0 0.0
  %3676 = vmatpush2.msra.mxu0 0.0
  %3677 = vmatprep.mubr.f32.mxu0 0.0
  %3678 = vmatmul.mubr.f32.gmra.mxu0 %v3611
  %v3679 = vpop.f32.mrf.mxu0
  %v3680 = vadd.f32 0.0, %v3679
  %v3681 = vpop.f32.mrf.mxu0
  %3682 = vdwg.mxu0
  %v3683 = vadd.f32 %v3605, %v3680
  %v3684 = vxor.u32 %v3683, 2147483648
  %v3685 = vmul.f32 %v3684, 1.442695
  %v3686 = vpow.pop %v3685
  %v3687 = vadd.f32 %v3686, 1.0
  %v3688 = vrcp.pop %v3687
  %v3689 = vmul.f32 1.0, %v3688
  %v3690 = vtanh.pop %v3683
  %v3691 = vmul.f32 %v3689, %v3424
  %3693 = vrot.lane.b32.xlu0 %v3690, 80
  %v3694 = vpop.permute.xlu0 %3693
  %v3696 = vmul.f32 %v3689, %v3694
  %3698 = vrot.lane.b32.xlu0 %v3696, 16
  %v3699 = vpop.permute.xlu0 %3698
  %v3701 = vadd.f32 %v3691, %v3699
  %v3702 = vtanh.pop %v3701
  %3704 = vrot.lane.b32.xlu0 %v3702, 16
  %v3705 = vpop.permute.xlu0 %3704
  %v3707 = vmul.f32 %v3689, %v3705
  %v3708 = vld [vmem:[%s1 + $0x70] sm:$0x1]
  %v3709 = vlaneseq
  %v3710 = vshrl.u32 %v3709, 7
  %v3711 = vsub.s32 0, %v3710
  %v3712 = vrot.slane %v3708, %v3711
  %3714 = vrot.lane.b32.xlu0 %v3712, 32
  %v3715 = vpop.permute.xlu0 %3714
  %v3717 = vmul.f32 %v3707, %v3715
  %3719 = vrot.lane.b32.xlu0 %v3717, 96
  %v3720 = vpop.permute.xlu0 %3719
  %vm3722 = vcmask 123904
  %v3723 = vsel %vm3722, %v3720, 0.0
  %3724 = vadd.xlane.f32.xlu0 %v3723
  %v3725 = vpop.xlane.xlu0 %3724
  %v3726 = vadd.f32 %v3725, %v3712
  %3728 = vrot.lane.b32.xlu0 %v3726, 112
  %v3729 = vpop.permute.xlu0 %3728
  %vm3731 = vcmask 1024
  %3732 = vst.msk [vmem:[%s2] sm:$0x3] %vm3731, %v3729
  // Predicated region
  $region10: #{model_forward.1} parent=0 // pred_check
    _
  $region11: #{model_forward.1} parent=0 // pred_check_branch
    %3734 = sbr.rel (0) target = $region13
  $region12: #{model_forward.1} parent=0 // pred_region
    _
  $region13: #{model_forward.1} parent=0 // pred_fallthru
    _
  // Predicated region
  $region14: #{model_forward.1} parent=0 // pred_check
    _
  $region15: #{model_forward.1} parent=0 // pred_check_branch
    %3736 = sbr.rel (0) target = $region17
  $region16: #{model_forward.1} parent=0 // pred_region
    _
  $region17: #{model_forward.1} parent=0 // pred_fallthru
    _

</llo_original>
